<compile_context>
chip_gen: v7x
topology: tpu7x:2x2x1
jax: 0.10.0
libtpu: 0.0.40
codegen_flags: <defaults>
</compile_context>

<pallas_src>
import functools

import jax
import jax.numpy as jnp
from jax import lax
from jax.experimental import pallas as pl
from jax.experimental.pallas import tpu as pltpu

_EPS = 1e-5
_VMEM = pl.BlockSpec(memory_space=pltpu.MemorySpace.VMEM)


def _ilog2(v):
    assert v > 0 and (v & (v - 1)) == 0, f"{v} is not a power of two"
    return int(v).bit_length() - 1


def _pad128(m):
    return max(128, ((m + 127) // 128) * 128)


# ----------------------------------------------------------------------------
# In-kernel constant builders (broadcasted_iota + shifts/ands; no constant DMA)
# ----------------------------------------------------------------------------
def _stage_consts(n, h, w, mp):
    """Per-tap [1, mp] f32 validity masks + static lane-rotate amounts for a
    3x3 'same' conv on the flattened (n, h, w) lane axis (padded lanes -> 0)."""
    hw = h * w
    idx = lax.broadcasted_iota(jnp.int32, (1, mp), 1)
    rem = idx & (hw - 1)
    si = rem >> _ilog2(w)
    sj = rem & (w - 1)
    valid = idx < (n * hw)
    masks, shifts = [], []
    for dy in range(3):
        for dx in range(3):
            oy, ox = dy - 1, dx - 1
            ok = valid
            if oy < 0:
                ok = ok & (si >= -oy)
            if oy > 0:
                ok = ok & (si < h - oy)
            if ox < 0:
                ok = ok & (sj >= -ox)
            if ox > 0:
                ok = ok & (sj < w - ox)
            masks.append(ok.astype(jnp.float32))
            shifts.append((-(oy * w + ox)) % mp)      # roll amount: lane m reads m + oy*w + ox
    return masks, shifts


def _pool_select_mat(n, h, w, mp_in, mp_out):
    """[mp_in, mp_out] 0/1 matrix gathering the (2i, 2j) anchors after the
    roll-max and compacting to the next stage's lane layout (padded lanes = 0)."""
    hw, hh, wh = h * w, h // 2, w // 2
    src = lax.broadcasted_iota(jnp.int32, (mp_in, mp_out), 0)
    dst = lax.broadcasted_iota(jnp.int32, (mp_in, mp_out), 1)
    b = src >> _ilog2(hw)
    rem = src & (hw - 1)
    si = rem >> _ilog2(w)
    sj = rem & (w - 1)
    tgt = (b << _ilog2(hh * wh)) + ((si >> 1) << _ilog2(wh)) + (sj >> 1)
    ok = (src < n * hw) & ((si & 1) == 0) & ((sj & 1) == 0) & (dst == tgt)
    return ok.astype(jnp.float32)


def _gap_mat(n, h, w, mp_in, lanes_out):
    """[mp_in, lanes_out] matrix averaging image b's h*w pixels into column b."""
    hw = h * w
    src = lax.broadcasted_iota(jnp.int32, (mp_in, lanes_out), 0)
    dst = lax.broadcasted_iota(jnp.int32, (mp_in, lanes_out), 1)
    b = src >> _ilog2(hw)
    ok = (src < n * hw) & (dst == b)          # src < n*hw  =>  b < n
    return ok.astype(jnp.float32) * (1.0 / hw)


# ----------------------------------------------------------------------------
# In-kernel compute helpers
# ----------------------------------------------------------------------------
def _conv_bn_relu(a, w_flat, gamma, beta, masks, shifts, count):
    """a:[Cin,mp]  w_flat:[Cout, taps*Cin]  gamma/beta:[Cout,1].
    masks/shifts: per-tap lane masks / rotate amounts (None for 1x1 convs)."""
    if masks is None:
        rhs = a                                   # 1x1 conv: pool output => padded lanes are 0
    else:
        taps = []
        for m, s in zip(masks, shifts):
            t = a if s == 0 else pltpu.roll(a, s, axis=1)   # XLU lane rotate
            taps.append(t * m)                    # [1, mp] mask broadcasts over [Cin, mp]
        rhs = jnp.concatenate(taps, axis=0)       # [9*Cin, mp]: ONE matmul per conv
    y = jnp.dot(w_flat, rhs, preferred_element_type=jnp.float32)     # [Cout, mp]

    # BatchNorm2d (training-mode batch statistics, biased variance) + ReLU.
    # y is exactly 0 in padded lanes, so sums over all mp lanes / true count
    # are exact.  Fused single reduce over concat([y, y*y]).
    co = y.shape[0]
    inv_n = 1.0 / count
    ssum = jnp.sum(jnp.concatenate([y, y * y], axis=0), axis=1, keepdims=True) * inv_n
    mean, ex2 = ssum[:co], ssum[co:]
    var = ex2 - mean * mean
    scale = gamma * lax.rsqrt(var + _EPS)
    bias = beta - mean * scale
    return jnp.maximum(y * scale + bias, 0.0)


def _maxpool2x2(a, n, h, w, mp_in, mp_out):
    """2x2/stride-2 max pool in the [C, M] layout; selection matmul compacts to
    the next stage's lane layout and zeroes padded lanes exactly."""
    xh = jnp.maximum(a, pltpu.roll(a, (mp_in - 1) % mp_in, axis=1))    # max(x[m], x[m+1])
    xv = jnp.maximum(xh, pltpu.roll(xh, (mp_in - w) % mp_in, axis=1))  # ... rows m, m+w
    sel = _pool_select_mat(n, h, w, mp_in, mp_out)
    return jnp.dot(xv, sel, preferred_element_type=jnp.float32)


# ----------------------------------------------------------------------------
# The single fused forward kernel
# ----------------------------------------------------------------------------
def _fused_forward_kernel(x_ref, w_ref, o_ref, *, n, stages, ops):
    # stages: ((h, w, mp) per resolution); ops: static program of conv/pool steps.
    consts = [None, None, None]

    def stage_consts(s):
        if consts[s] is None:
            h, w, mp = stages[s]
            consts[s] = _stage_consts(n, h, w, mp)
        return consts[s]

    a = x_ref[...]                                         # [1, mp0]
    for op in ops:
        if op[0] == "conv":
            _, off, co, kd, s, is3 = op
            h, w, _ = stages[s]
            wf = w_ref[off:off + co, 0:kd]                 # [Cout, taps*Cin]
            gm = w_ref[off:off + co, 126:127]              # [Cout, 1]
            bt = w_ref[off:off + co, 127:128]              # [Cout, 1]
            masks, shifts = stage_consts(s) if is3 else (None, None)
            a = _conv_bn_relu(a, wf, gm, bt, masks, shifts, float(n * h * w))
        else:                                              # "pool"
            _, s = op
            h, w, mp = stages[s]
            a = _maxpool2x2(a, n, h, w, mp, stages[s + 1][2])

    # GAP -> [n_classes, lanes] (lane-dense), then column-wise log_softmax.
    h3, w3, mp3 = stages[2]
    g = jnp.dot(a, _gap_mat(n, h3, w3, mp3, o_ref.shape[1]),
                preferred_element_type=jnp.float32)
    z = g - jnp.max(g, axis=0, keepdims=True)
    o_ref[...] = z - jnp.log(jnp.sum(jnp.exp(z), axis=0, keepdims=True))


# ----------------------------------------------------------------------------
# Public forward (NCHW in, [N, 10] log-probs out)
# ----------------------------------------------------------------------------
def model_forward(x_nchw, params):
    n, cin, h, w = x_nchw.shape
    assert cin == 1, "expects [N, 1, H, W] input"
    assert h % 4 == 0 and w % 4 == 0 and n <= 128
    assert (h & (h - 1)) == 0 and (w & (w - 1)) == 0, \
        "in-kernel iota mask generation assumes power-of-two H, W"
    # TODO(synk): non-power-of-two spatial dims would need host-precomputed masks.
    h2, w2, h3, w3 = h // 2, w // 2, h // 4, w // 4
    mpa, mpb, mpc = _pad128(n * h * w), _pad128(n * h2 * w2), _pad128(n * h3 * w3)
    stages = ((h, w, mpa), (h2, w2, mpb), (h3, w3, mpc))

    # Pack all conv weights + BN gamma/beta into ONE [rows, 128] f32 buffer:
    # weight [Cout, kh*kw*Cin] at lanes [0:kd), gamma/beta at lanes 126/127.
    n_rows = sum(((wt.shape[3] + 7) // 8) * 8 for wt, _, _ in params)
    wbuf = jnp.zeros((n_rows, 128), jnp.float32)
    layer_meta, off = [], 0
    for wt, gamma, beta in params:
        kh, kw, ci, co = wt.shape
        kd = kh * kw * ci
        assert kd <= 126
        wf = jnp.transpose(wt, (3, 0, 1, 2)).reshape(co, kd)   # [Cout, (dy,dx,cin)]
        wbuf = wbuf.at[off:off + co, :kd].set(wf)
        wbuf = wbuf.at[off:off + co, 126].set(gamma)
        wbuf = wbuf.at[off:off + co, 127].set(beta)
        layer_meta.append((off, co, kd, kh == 3))
        off += ((co + 7) // 8) * 8

    # Static program matching the module: conv indices -> stage, pools after 1 & 4.
    conv_stage = (0, 0, 1, 1, 1, 2, 2, 2, 2)
    pools_after = {1: 0, 4: 1}
    ops = []
    for i, (o_, co, kd, is3) in enumerate(layer_meta):
        ops.append(("conv", o_, co, kd, conv_stage[i], is3))
        if i in pools_after:
            ops.append(("pool", pools_after[i]))
    ops = tuple(ops)

    # Input NCHW (Cin == 1) -> lane-dense [1, N*H*W], zero-padded to mpa lanes.
    x0 = x_nchw.reshape(1, n * h * w)
    if mpa > n * h * w:
        x0 = jnp.pad(x0, ((0, 0), (0, mpa - n * h * w)))

    n_classes = params[-1][0].shape[3]
    kernel = functools.partial(_fused_forward_kernel, n=n, stages=stages, ops=ops)
    out = pl.pallas_call(
        kernel,
        out_shape=jax.ShapeDtypeStruct((n_classes, 128), jnp.float32),
        in_specs=[_VMEM, _VMEM],
        out_specs=_VMEM,
    )(x0, wbuf)
    # TODO(synk): for large batches, add a "parallel" batch grid axis (v7x has 2
    # TensorCores) and switch the pool selection to per-image block-diagonal
    # form to avoid the O(batch^2) selection matrices.
    return out[:, :n].T                                    # [N, 10] log-probabilities


# ----------------------------------------------------------------------------
# Parameters (canonical HWIO layout) + pure-XLA reference for validation
# ----------------------------------------------------------------------------
def _make_params(key):
    specs = [(3, 1, 8), (3, 8, 8), (1, 8, 12), (3, 12, 12), (3, 12, 12),
             (1, 12, 12), (3, 12, 12), (3, 12, 12), (3, 12, 10)]
    params = []
    for i, (k, ci, co) in enumerate(specs):
        kw_, kg, kb = jax.random.split(jax.random.fold_in(key, i), 3)
        fan_in = k * k * ci
        wt = jax.random.normal(kw_, (k, k, ci, co), jnp.float32) * (2.0 / fan_in) ** 0.5
        gamma = 1.0 + 0.1 * jax.random.normal(kg, (co,), jnp.float32)
        beta = 0.1 * jax.random.normal(kb, (co,), jnp.float32)
        params.append((wt, gamma, beta))
    return params


def _reference_forward(x_nchw, params):
    """Pure-JAX (XLA) reference with identical forward semantics."""
    x = jnp.transpose(x_nchw, (0, 2, 3, 1))               # NCHW -> NHWC

    def block(x, wt, gamma, beta):
        y = jax.lax.conv_general_dilated(
            x, wt, window_strides=(1, 1), padding="SAME",
            dimension_numbers=("NHWC", "HWIO", "NHWC"),
            precision=jax.lax.Precision.HIGHEST)
        mean = jnp.mean(y, axis=(0, 1, 2))
        var = jnp.mean((y - mean) ** 2, axis=(0, 1, 2))
        y = (y - mean) * jax.lax.rsqrt(var + _EPS) * gamma + beta
        return jnp.maximum(y, 0.0)

    def pool(x):
        nn, hh, ww, cc = x.shape
        return x.reshape(nn, hh // 2, 2, ww // 2, 2, cc).max(axis=(2, 4))

    x = block(x, *params[0]); x = block(x, *params[1]); x = pool(x)
    x = block(x, *params[2]); x = block(x, *params[3]); x = block(x, *params[4]); x = pool(x)
    x = block(x, *params[5]); x = block(x, *params[6]); x = block(x, *params[7]); x = block(x, *params[8])
    g = jnp.mean(x, axis=(1, 2))
    return jax.nn.log_softmax(g, axis=-1)


if __name__ == "__main__":
    key = jax.random.PRNGKey(0)
    kx, kp = jax.random.split(key)
    # batch=2, channels=1, spatial=16 (two 2x2 pools -> final 4x4 feature map)
    x = jax.random.normal(kx, (2, 1, 16, 16), jnp.float32)
    params = _make_params(kp)

    logp = jax.jit(model_forward)(x, params)
    jax.block_until_ready(logp)

    assert logp.shape == (2, 10)
    assert bool(jnp.all(jnp.isfinite(logp)))
    # rows of log_softmax output must exponentiate to ~1
    assert jnp.allclose(jnp.exp(logp).sum(axis=-1), 1.0, atol=1e-4)
    # validate the fused Pallas kernel against the pure-XLA reference
    ref = _reference_forward(x, params)
    assert jnp.allclose(logp, ref, atol=3e-3, rtol=3e-3)
    print("KERNEL_OK")
</pallas_src>

<mosaic_0001>
module attributes {stable_mosaic.version = 11 : i64} {
  func.func @_fused_forward_kernel(%arg0: memref<1x512xf32, #tpu.memory_space<vmem>>, %arg1: memref<128x128xf32, #tpu.memory_space<vmem>>, %arg2: memref<10x128xf32, #tpu.memory_space<vmem>>) attributes {dimension_semantics = [], scalar_prefetch = 0 : i64, scratch_operands = 0 : i64, tpu.core_type = #tpu.core_type<tc>} {
    %c0 = arith.constant 0 : index
    %c0_0 = arith.constant 0 : index
    %0 = vector.load %arg0[%c0, %c0_0] : memref<1x512xf32, #tpu.memory_space<vmem>>, vector<1x512xf32>
    %c0_1 = arith.constant 0 : index
    %c0_2 = arith.constant 0 : index
    %1 = vector.load %arg1[%c0_1, %c0_2] : memref<128x128xf32, #tpu.memory_space<vmem>>, vector<8x9xf32>
    %c0_3 = arith.constant 0 : index
    %c126 = arith.constant 126 : index
    %2 = vector.load %arg1[%c0_3, %c126] : memref<128x128xf32, #tpu.memory_space<vmem>>, vector<8x1xf32>
    %c0_4 = arith.constant 0 : index
    %c127 = arith.constant 127 : index
    %3 = vector.load %arg1[%c0_4, %c127] : memref<128x128xf32, #tpu.memory_space<vmem>>, vector<8x1xf32>
    %4 = tpu.iota {dimensions = array<i32: 1>} : vector<1x512xi32>
    %c255_i32 = arith.constant 255 : i32
    %5 = vector.broadcast %c255_i32 : i32 to vector<1x512xi32>
    %6 = arith.andi %4, %5 : vector<1x512xi32>
    %c4_i32 = arith.constant 4 : i32
    %7 = vector.broadcast %c4_i32 : i32 to vector<1x512xi32>
    %8 = arith.shrsi %6, %7 : vector<1x512xi32>
    %c15_i32 = arith.constant 15 : i32
    %9 = vector.broadcast %c15_i32 : i32 to vector<1x512xi32>
    %10 = arith.andi %6, %9 : vector<1x512xi32>
    %c512_i32 = arith.constant 512 : i32
    %11 = vector.broadcast %c512_i32 : i32 to vector<1x512xi32>
    %12 = arith.cmpi slt, %4, %11 : vector<1x512xi32>
    %c1_i32 = arith.constant 1 : i32
    %13 = vector.broadcast %c1_i32 : i32 to vector<1x512xi32>
    %14 = arith.cmpi sge, %8, %13 : vector<1x512xi32>
    %15 = arith.andi %12, %14 : vector<1x512xi1>
    %c1_i32_5 = arith.constant 1 : i32
    %16 = vector.broadcast %c1_i32_5 : i32 to vector<1x512xi32>
    %17 = arith.cmpi sge, %10, %16 : vector<1x512xi32>
    %18 = arith.andi %15, %17 : vector<1x512xi1>
    %19 = arith.extui %18 : vector<1x512xi1> to vector<1x512xi32>
    %20 = arith.sitofp %19 : vector<1x512xi32> to vector<1x512xf32>
    %c1_i32_6 = arith.constant 1 : i32
    %21 = vector.broadcast %c1_i32_6 : i32 to vector<1x512xi32>
    %22 = arith.cmpi sge, %8, %21 : vector<1x512xi32>
    %23 = arith.andi %12, %22 : vector<1x512xi1>
    %24 = arith.extui %23 : vector<1x512xi1> to vector<1x512xi32>
    %25 = arith.sitofp %24 : vector<1x512xi32> to vector<1x512xf32>
    %c1_i32_7 = arith.constant 1 : i32
    %26 = vector.broadcast %c1_i32_7 : i32 to vector<1x512xi32>
    %27 = arith.cmpi sge, %8, %26 : vector<1x512xi32>
    %28 = arith.andi %12, %27 : vector<1x512xi1>
    %c15_i32_8 = arith.constant 15 : i32
    %29 = vector.broadcast %c15_i32_8 : i32 to vector<1x512xi32>
    %30 = arith.cmpi slt, %10, %29 : vector<1x512xi32>
    %31 = arith.andi %28, %30 : vector<1x512xi1>
    %32 = arith.extui %31 : vector<1x512xi1> to vector<1x512xi32>
    %33 = arith.sitofp %32 : vector<1x512xi32> to vector<1x512xf32>
    %c1_i32_9 = arith.constant 1 : i32
    %34 = vector.broadcast %c1_i32_9 : i32 to vector<1x512xi32>
    %35 = arith.cmpi sge, %10, %34 : vector<1x512xi32>
    %36 = arith.andi %12, %35 : vector<1x512xi1>
    %37 = arith.extui %36 : vector<1x512xi1> to vector<1x512xi32>
    %38 = arith.sitofp %37 : vector<1x512xi32> to vector<1x512xf32>
    %39 = arith.extui %12 : vector<1x512xi1> to vector<1x512xi32>
    %40 = arith.sitofp %39 : vector<1x512xi32> to vector<1x512xf32>
    %c15_i32_10 = arith.constant 15 : i32
    %41 = vector.broadcast %c15_i32_10 : i32 to vector<1x512xi32>
    %42 = arith.cmpi slt, %10, %41 : vector<1x512xi32>
    %43 = arith.andi %12, %42 : vector<1x512xi1>
    %44 = arith.extui %43 : vector<1x512xi1> to vector<1x512xi32>
    %45 = arith.sitofp %44 : vector<1x512xi32> to vector<1x512xf32>
    %c15_i32_11 = arith.constant 15 : i32
    %46 = vector.broadcast %c15_i32_11 : i32 to vector<1x512xi32>
    %47 = arith.cmpi slt, %8, %46 : vector<1x512xi32>
    %48 = arith.andi %12, %47 : vector<1x512xi1>
    %c1_i32_12 = arith.constant 1 : i32
    %49 = vector.broadcast %c1_i32_12 : i32 to vector<1x512xi32>
    %50 = arith.cmpi sge, %10, %49 : vector<1x512xi32>
    %51 = arith.andi %48, %50 : vector<1x512xi1>
    %52 = arith.extui %51 : vector<1x512xi1> to vector<1x512xi32>
    %53 = arith.sitofp %52 : vector<1x512xi32> to vector<1x512xf32>
    %c15_i32_13 = arith.constant 15 : i32
    %54 = vector.broadcast %c15_i32_13 : i32 to vector<1x512xi32>
    %55 = arith.cmpi slt, %8, %54 : vector<1x512xi32>
    %56 = arith.andi %12, %55 : vector<1x512xi1>
    %57 = arith.extui %56 : vector<1x512xi1> to vector<1x512xi32>
    %58 = arith.sitofp %57 : vector<1x512xi32> to vector<1x512xf32>
    %c15_i32_14 = arith.constant 15 : i32
    %59 = vector.broadcast %c15_i32_14 : i32 to vector<1x512xi32>
    %60 = arith.cmpi slt, %8, %59 : vector<1x512xi32>
    %61 = arith.andi %12, %60 : vector<1x512xi1>
    %c15_i32_15 = arith.constant 15 : i32
    %62 = vector.broadcast %c15_i32_15 : i32 to vector<1x512xi32>
    %63 = arith.cmpi slt, %10, %62 : vector<1x512xi32>
    %64 = arith.andi %61, %63 : vector<1x512xi1>
    %65 = arith.extui %64 : vector<1x512xi1> to vector<1x512xi32>
    %66 = arith.sitofp %65 : vector<1x512xi32> to vector<1x512xf32>
    %c17_i32 = arith.constant 17 : i32
    %67 = tpu.dynamic_rotate %0 by %c17_i32 dim 1 : vector<1x512xf32>, i32 -> vector<1x512xf32>
    %68 = arith.mulf %67, %20 : vector<1x512xf32>
    %c16_i32 = arith.constant 16 : i32
    %69 = tpu.dynamic_rotate %0 by %c16_i32 dim 1 : vector<1x512xf32>, i32 -> vector<1x512xf32>
    %70 = arith.mulf %69, %25 : vector<1x512xf32>
    %c15_i32_16 = arith.constant 15 : i32
    %71 = tpu.dynamic_rotate %0 by %c15_i32_16 dim 1 : vector<1x512xf32>, i32 -> vector<1x512xf32>
    %72 = arith.mulf %71, %33 : vector<1x512xf32>
    %c1_i32_17 = arith.constant 1 : i32
    %73 = tpu.dynamic_rotate %0 by %c1_i32_17 dim 1 : vector<1x512xf32>, i32 -> vector<1x512xf32>
    %74 = arith.mulf %73, %38 : vector<1x512xf32>
    %75 = arith.mulf %0, %40 : vector<1x512xf32>
    %c511_i32 = arith.constant 511 : i32
    %76 = tpu.dynamic_rotate %0 by %c511_i32 dim 1 : vector<1x512xf32>, i32 -> vector<1x512xf32>
    %77 = arith.mulf %76, %45 : vector<1x512xf32>
    %c497_i32 = arith.constant 497 : i32
    %78 = tpu.dynamic_rotate %0 by %c497_i32 dim 1 : vector<1x512xf32>, i32 -> vector<1x512xf32>
    %79 = arith.mulf %78, %53 : vector<1x512xf32>
    %c496_i32 = arith.constant 496 : i32
    %80 = tpu.dynamic_rotate %0 by %c496_i32 dim 1 : vector<1x512xf32>, i32 -> vector<1x512xf32>
    %81 = arith.mulf %80, %58 : vector<1x512xf32>
    %c495_i32 = arith.constant 495 : i32
    %82 = tpu.dynamic_rotate %0 by %c495_i32 dim 1 : vector<1x512xf32>, i32 -> vector<1x512xf32>
    %83 = arith.mulf %82, %66 : vector<1x512xf32>
    %84 = tpu.concatenate %68, %70, %72, %74, %75, %77, %79, %81, %83 in 0 : vector<1x512xf32>, vector<1x512xf32>, vector<1x512xf32>, vector<1x512xf32>, vector<1x512xf32>, vector<1x512xf32>, vector<1x512xf32>, vector<1x512xf32>, vector<1x512xf32> -> vector<9x512xf32>
    %cst = arith.constant dense<0.000000e+00> : vector<8x512xf32>
    %85 = tpu.matmul %1, %84, %cst {dimension_numbers = #tpu.dot_dimension_numbers<[1], [0], [0], [1], [0, 0, 1, 1], [], []>} : vector<8x9xf32>, vector<9x512xf32>, vector<8x512xf32> -> vector<8x512xf32>
    %86 = arith.mulf %85, %85 : vector<8x512xf32>
    %87 = tpu.concatenate %85, %86 in 0 : vector<8x512xf32>, vector<8x512xf32> -> vector<16x512xf32>
    %cst_18 = arith.constant dense<0.000000e+00> : vector<16xf32>
    %88 = vector.multi_reduction <add>, %87, %cst_18 [1] : vector<16x512xf32> to vector<16xf32>
    %89 = vector.shape_cast %88 : vector<16xf32> to vector<16x1xf32>
    %cst_19 = arith.constant 0.001953125 : f32
    %90 = vector.broadcast %cst_19 : f32 to vector<16x1xf32>
    %91 = arith.mulf %89, %90 : vector<16x1xf32>
    %92 = vector.extract_strided_slice %91 {offsets = [0, 0], sizes = [8, 1], strides = [1, 1]} : vector<16x1xf32> to vector<8x1xf32>
    %93 = vector.extract_strided_slice %91 {offsets = [8, 0], sizes = [8, 1], strides = [1, 1]} : vector<16x1xf32> to vector<8x1xf32>
    %94 = arith.mulf %92, %92 : vector<8x1xf32>
    %95 = arith.subf %93, %94 : vector<8x1xf32>
    %cst_20 = arith.constant 9.99999974E-6 : f32
    %96 = vector.broadcast %cst_20 : f32 to vector<8x1xf32>
    %97 = arith.addf %95, %96 : vector<8x1xf32>
    %98 = math.rsqrt %97 : vector<8x1xf32>
    %99 = arith.mulf %2, %98 : vector<8x1xf32>
    %100 = arith.mulf %92, %99 : vector<8x1xf32>
    %101 = arith.subf %3, %100 : vector<8x1xf32>
    %102 = vector.broadcast %99 : vector<8x1xf32> to vector<8x512xf32>
    %103 = arith.mulf %85, %102 : vector<8x512xf32>
    %104 = vector.broadcast %101 : vector<8x1xf32> to vector<8x512xf32>
    %105 = arith.addf %103, %104 : vector<8x512xf32>
    %cst_21 = arith.constant 0.000000e+00 : f32
    %106 = vector.broadcast %cst_21 : f32 to vector<8x512xf32>
    %107 = arith.maximumf %105, %106 : vector<8x512xf32>
    %c8 = arith.constant 8 : index
    %c0_22 = arith.constant 0 : index
    %108 = vector.load %arg1[%c8, %c0_22] : memref<128x128xf32, #tpu.memory_space<vmem>>, vector<8x72xf32>
    %c8_23 = arith.constant 8 : index
    %c126_24 = arith.constant 126 : index
    %109 = vector.load %arg1[%c8_23, %c126_24] : memref<128x128xf32, #tpu.memory_space<vmem>>, vector<8x1xf32>
    %c8_25 = arith.constant 8 : index
    %c127_26 = arith.constant 127 : index
    %110 = vector.load %arg1[%c8_25, %c127_26] : memref<128x128xf32, #tpu.memory_space<vmem>>, vector<8x1xf32>
    %c17_i32_27 = arith.constant 17 : i32
    %111 = tpu.dynamic_rotate %107 by %c17_i32_27 dim 1 : vector<8x512xf32>, i32 -> vector<8x512xf32>
    %112 = vector.broadcast %20 : vector<1x512xf32> to vector<8x512xf32>
    %113 = arith.mulf %111, %112 : vector<8x512xf32>
    %c16_i32_28 = arith.constant 16 : i32
    %114 = tpu.dynamic_rotate %107 by %c16_i32_28 dim 1 : vector<8x512xf32>, i32 -> vector<8x512xf32>
    %115 = vector.broadcast %25 : vector<1x512xf32> to vector<8x512xf32>
    %116 = arith.mulf %114, %115 : vector<8x512xf32>
    %c15_i32_29 = arith.constant 15 : i32
    %117 = tpu.dynamic_rotate %107 by %c15_i32_29 dim 1 : vector<8x512xf32>, i32 -> vector<8x512xf32>
    %118 = vector.broadcast %33 : vector<1x512xf32> to vector<8x512xf32>
    %119 = arith.mulf %117, %118 : vector<8x512xf32>
    %c1_i32_30 = arith.constant 1 : i32
    %120 = tpu.dynamic_rotate %107 by %c1_i32_30 dim 1 : vector<8x512xf32>, i32 -> vector<8x512xf32>
    %121 = vector.broadcast %38 : vector<1x512xf32> to vector<8x512xf32>
    %122 = arith.mulf %120, %121 : vector<8x512xf32>
    %123 = vector.broadcast %40 : vector<1x512xf32> to vector<8x512xf32>
    %124 = arith.mulf %107, %123 : vector<8x512xf32>
    %c511_i32_31 = arith.constant 511 : i32
    %125 = tpu.dynamic_rotate %107 by %c511_i32_31 dim 1 : vector<8x512xf32>, i32 -> vector<8x512xf32>
    %126 = vector.broadcast %45 : vector<1x512xf32> to vector<8x512xf32>
    %127 = arith.mulf %125, %126 : vector<8x512xf32>
    %c497_i32_32 = arith.constant 497 : i32
    %128 = tpu.dynamic_rotate %107 by %c497_i32_32 dim 1 : vector<8x512xf32>, i32 -> vector<8x512xf32>
    %129 = vector.broadcast %53 : vector<1x512xf32> to vector<8x512xf32>
    %130 = arith.mulf %128, %129 : vector<8x512xf32>
    %c496_i32_33 = arith.constant 496 : i32
    %131 = tpu.dynamic_rotate %107 by %c496_i32_33 dim 1 : vector<8x512xf32>, i32 -> vector<8x512xf32>
    %132 = vector.broadcast %58 : vector<1x512xf32> to vector<8x512xf32>
    %133 = arith.mulf %131, %132 : vector<8x512xf32>
    %c495_i32_34 = arith.constant 495 : i32
    %134 = tpu.dynamic_rotate %107 by %c495_i32_34 dim 1 : vector<8x512xf32>, i32 -> vector<8x512xf32>
    %135 = vector.broadcast %66 : vector<1x512xf32> to vector<8x512xf32>
    %136 = arith.mulf %134, %135 : vector<8x512xf32>
    %137 = tpu.concatenate %113, %116, %119, %122, %124, %127, %130, %133, %136 in 0 : vector<8x512xf32>, vector<8x512xf32>, vector<8x512xf32>, vector<8x512xf32>, vector<8x512xf32>, vector<8x512xf32>, vector<8x512xf32>, vector<8x512xf32>, vector<8x512xf32> -> vector<72x512xf32>
    %cst_35 = arith.constant dense<0.000000e+00> : vector<8x512xf32>
    %138 = tpu.matmul %108, %137, %cst_35 {dimension_numbers = #tpu.dot_dimension_numbers<[1], [0], [0], [1], [0, 0, 1, 1], [], []>} : vector<8x72xf32>, vector<72x512xf32>, vector<8x512xf32> -> vector<8x512xf32>
    %139 = arith.mulf %138, %138 : vector<8x512xf32>
    %140 = tpu.concatenate %138, %139 in 0 : vector<8x512xf32>, vector<8x512xf32> -> vector<16x512xf32>
    %cst_36 = arith.constant dense<0.000000e+00> : vector<16xf32>
    %141 = vector.multi_reduction <add>, %140, %cst_36 [1] : vector<16x512xf32> to vector<16xf32>
    %142 = vector.shape_cast %141 : vector<16xf32> to vector<16x1xf32>
    %cst_37 = arith.constant 0.001953125 : f32
    %143 = vector.broadcast %cst_37 : f32 to vector<16x1xf32>
    %144 = arith.mulf %142, %143 : vector<16x1xf32>
    %145 = vector.extract_strided_slice %144 {offsets = [0, 0], sizes = [8, 1], strides = [1, 1]} : vector<16x1xf32> to vector<8x1xf32>
    %146 = vector.extract_strided_slice %144 {offsets = [8, 0], sizes = [8, 1], strides = [1, 1]} : vector<16x1xf32> to vector<8x1xf32>
    %147 = arith.mulf %145, %145 : vector<8x1xf32>
    %148 = arith.subf %146, %147 : vector<8x1xf32>
    %cst_38 = arith.constant 9.99999974E-6 : f32
    %149 = vector.broadcast %cst_38 : f32 to vector<8x1xf32>
    %150 = arith.addf %148, %149 : vector<8x1xf32>
    %151 = math.rsqrt %150 : vector<8x1xf32>
    %152 = arith.mulf %109, %151 : vector<8x1xf32>
    %153 = arith.mulf %145, %152 : vector<8x1xf32>
    %154 = arith.subf %110, %153 : vector<8x1xf32>
    %155 = vector.broadcast %152 : vector<8x1xf32> to vector<8x512xf32>
    %156 = arith.mulf %138, %155 : vector<8x512xf32>
    %157 = vector.broadcast %154 : vector<8x1xf32> to vector<8x512xf32>
    %158 = arith.addf %156, %157 : vector<8x512xf32>
    %cst_39 = arith.constant 0.000000e+00 : f32
    %159 = vector.broadcast %cst_39 : f32 to vector<8x512xf32>
    %160 = arith.maximumf %158, %159 : vector<8x512xf32>
    %c511_i32_40 = arith.constant 511 : i32
    %161 = tpu.dynamic_rotate %160 by %c511_i32_40 dim 1 : vector<8x512xf32>, i32 -> vector<8x512xf32>
    %162 = arith.maximumf %160, %161 : vector<8x512xf32>
    %c496_i32_41 = arith.constant 496 : i32
    %163 = tpu.dynamic_rotate %162 by %c496_i32_41 dim 1 : vector<8x512xf32>, i32 -> vector<8x512xf32>
    %164 = arith.maximumf %162, %163 : vector<8x512xf32>
    %165 = tpu.iota {dimensions = array<i32: 0>} : vector<512x128xi32>
    %166 = tpu.iota {dimensions = array<i32: 1>} : vector<512x128xi32>
    %c8_i32 = arith.constant 8 : i32
    %167 = vector.broadcast %c8_i32 : i32 to vector<512x128xi32>
    %168 = arith.shrsi %165, %167 : vector<512x128xi32>
    %c255_i32_42 = arith.constant 255 : i32
    %169 = vector.broadcast %c255_i32_42 : i32 to vector<512x128xi32>
    %170 = arith.andi %165, %169 : vector<512x128xi32>
    %c4_i32_43 = arith.constant 4 : i32
    %171 = vector.broadcast %c4_i32_43 : i32 to vector<512x128xi32>
    %172 = arith.shrsi %170, %171 : vector<512x128xi32>
    %c15_i32_44 = arith.constant 15 : i32
    %173 = vector.broadcast %c15_i32_44 : i32 to vector<512x128xi32>
    %174 = arith.andi %170, %173 : vector<512x128xi32>
    %c6_i32 = arith.constant 6 : i32
    %175 = vector.broadcast %c6_i32 : i32 to vector<512x128xi32>
    %176 = arith.shli %168, %175 : vector<512x128xi32>
    %c1_i32_45 = arith.constant 1 : i32
    %177 = vector.broadcast %c1_i32_45 : i32 to vector<512x128xi32>
    %178 = arith.shrsi %172, %177 : vector<512x128xi32>
    %c3_i32 = arith.constant 3 : i32
    %179 = vector.broadcast %c3_i32 : i32 to vector<512x128xi32>
    %180 = arith.shli %178, %179 : vector<512x128xi32>
    %181 = arith.addi %176, %180 : vector<512x128xi32>
    %c1_i32_46 = arith.constant 1 : i32
    %182 = vector.broadcast %c1_i32_46 : i32 to vector<512x128xi32>
    %183 = arith.shrsi %174, %182 : vector<512x128xi32>
    %184 = arith.addi %181, %183 : vector<512x128xi32>
    %c512_i32_47 = arith.constant 512 : i32
    %185 = vector.broadcast %c512_i32_47 : i32 to vector<512x128xi32>
    %186 = arith.cmpi slt, %165, %185 : vector<512x128xi32>
    %c1_i32_48 = arith.constant 1 : i32
    %187 = vector.broadcast %c1_i32_48 : i32 to vector<512x128xi32>
    %188 = arith.andi %172, %187 : vector<512x128xi32>
    %c0_i32 = arith.constant 0 : i32
    %189 = vector.broadcast %c0_i32 : i32 to vector<512x128xi32>
    %190 = arith.cmpi eq, %188, %189 : vector<512x128xi32>
    %191 = arith.andi %186, %190 : vector<512x128xi1>
    %c1_i32_49 = arith.constant 1 : i32
    %192 = vector.broadcast %c1_i32_49 : i32 to vector<512x128xi32>
    %193 = arith.andi %174, %192 : vector<512x128xi32>
    %c0_i32_50 = arith.constant 0 : i32
    %194 = vector.broadcast %c0_i32_50 : i32 to vector<512x128xi32>
    %195 = arith.cmpi eq, %193, %194 : vector<512x128xi32>
    %196 = arith.andi %191, %195 : vector<512x128xi1>
    %197 = arith.cmpi eq, %166, %184 : vector<512x128xi32>
    %198 = arith.andi %196, %197 : vector<512x128xi1>
    %199 = arith.extui %198 : vector<512x128xi1> to vector<512x128xi32>
    %200 = arith.sitofp %199 : vector<512x128xi32> to vector<512x128xf32>
    %cst_51 = arith.constant dense<0.000000e+00> : vector<8x128xf32>
    %201 = tpu.matmul %164, %200, %cst_51 {dimension_numbers = #tpu.dot_dimension_numbers<[1], [0], [0], [1], [0, 0, 1, 1], [], []>} : vector<8x512xf32>, vector<512x128xf32>, vector<8x128xf32> -> vector<8x128xf32>
    %c16 = arith.constant 16 : index
    %c0_52 = arith.constant 0 : index
    %202 = vector.load %arg1[%c16, %c0_52] : memref<128x128xf32, #tpu.memory_space<vmem>>, vector<12x8xf32>
    %c16_53 = arith.constant 16 : index
    %c126_54 = arith.constant 126 : index
    %203 = vector.load %arg1[%c16_53, %c126_54] : memref<128x128xf32, #tpu.memory_space<vmem>>, vector<12x1xf32>
    %c16_55 = arith.constant 16 : index
    %c127_56 = arith.constant 127 : index
    %204 = vector.load %arg1[%c16_55, %c127_56] : memref<128x128xf32, #tpu.memory_space<vmem>>, vector<12x1xf32>
    %cst_57 = arith.constant dense<0.000000e+00> : vector<12x128xf32>
    %205 = tpu.matmul %202, %201, %cst_57 {dimension_numbers = #tpu.dot_dimension_numbers<[1], [0], [0], [1], [0, 0, 1, 1], [], []>} : vector<12x8xf32>, vector<8x128xf32>, vector<12x128xf32> -> vector<12x128xf32>
    %206 = arith.mulf %205, %205 : vector<12x128xf32>
    %207 = tpu.concatenate %205, %206 in 0 : vector<12x128xf32>, vector<12x128xf32> -> vector<24x128xf32>
    %cst_58 = arith.constant dense<0.000000e+00> : vector<24xf32>
    %208 = vector.multi_reduction <add>, %207, %cst_58 [1] : vector<24x128xf32> to vector<24xf32>
    %209 = vector.shape_cast %208 : vector<24xf32> to vector<24x1xf32>
    %cst_59 = arith.constant 7.812500e-03 : f32
    %210 = vector.broadcast %cst_59 : f32 to vector<24x1xf32>
    %211 = arith.mulf %209, %210 : vector<24x1xf32>
    %212 = vector.extract_strided_slice %211 {offsets = [0, 0], sizes = [12, 1], strides = [1, 1]} : vector<24x1xf32> to vector<12x1xf32>
    %213 = vector.extract_strided_slice %211 {offsets = [12, 0], sizes = [12, 1], strides = [1, 1]} : vector<24x1xf32> to vector<12x1xf32>
    %214 = arith.mulf %212, %212 : vector<12x1xf32>
    %215 = arith.subf %213, %214 : vector<12x1xf32>
    %cst_60 = arith.constant 9.99999974E-6 : f32
    %216 = vector.broadcast %cst_60 : f32 to vector<12x1xf32>
    %217 = arith.addf %215, %216 : vector<12x1xf32>
    %218 = math.rsqrt %217 : vector<12x1xf32>
    %219 = arith.mulf %203, %218 : vector<12x1xf32>
    %220 = arith.mulf %212, %219 : vector<12x1xf32>
    %221 = arith.subf %204, %220 : vector<12x1xf32>
    %222 = vector.broadcast %219 : vector<12x1xf32> to vector<12x128xf32>
    %223 = arith.mulf %205, %222 : vector<12x128xf32>
    %224 = vector.broadcast %221 : vector<12x1xf32> to vector<12x128xf32>
    %225 = arith.addf %223, %224 : vector<12x128xf32>
    %cst_61 = arith.constant 0.000000e+00 : f32
    %226 = vector.broadcast %cst_61 : f32 to vector<12x128xf32>
    %227 = arith.maximumf %225, %226 : vector<12x128xf32>
    %c32 = arith.constant 32 : index
    %c0_62 = arith.constant 0 : index
    %228 = vector.load %arg1[%c32, %c0_62] : memref<128x128xf32, #tpu.memory_space<vmem>>, vector<12x108xf32>
    %c32_63 = arith.constant 32 : index
    %c126_64 = arith.constant 126 : index
    %229 = vector.load %arg1[%c32_63, %c126_64] : memref<128x128xf32, #tpu.memory_space<vmem>>, vector<12x1xf32>
    %c32_65 = arith.constant 32 : index
    %c127_66 = arith.constant 127 : index
    %230 = vector.load %arg1[%c32_65, %c127_66] : memref<128x128xf32, #tpu.memory_space<vmem>>, vector<12x1xf32>
    %231 = tpu.iota {dimensions = array<i32: 1>} : vector<1x128xi32>
    %c63_i32 = arith.constant 63 : i32
    %232 = vector.broadcast %c63_i32 : i32 to vector<1x128xi32>
    %233 = arith.andi %231, %232 : vector<1x128xi32>
    %c3_i32_67 = arith.constant 3 : i32
    %234 = vector.broadcast %c3_i32_67 : i32 to vector<1x128xi32>
    %235 = arith.shrsi %233, %234 : vector<1x128xi32>
    %c7_i32 = arith.constant 7 : i32
    %236 = vector.broadcast %c7_i32 : i32 to vector<1x128xi32>
    %237 = arith.andi %233, %236 : vector<1x128xi32>
    %c128_i32 = arith.constant 128 : i32
    %238 = vector.broadcast %c128_i32 : i32 to vector<1x128xi32>
    %239 = arith.cmpi slt, %231, %238 : vector<1x128xi32>
    %c1_i32_68 = arith.constant 1 : i32
    %240 = vector.broadcast %c1_i32_68 : i32 to vector<1x128xi32>
    %241 = arith.cmpi sge, %235, %240 : vector<1x128xi32>
    %242 = arith.andi %239, %241 : vector<1x128xi1>
    %c1_i32_69 = arith.constant 1 : i32
    %243 = vector.broadcast %c1_i32_69 : i32 to vector<1x128xi32>
    %244 = arith.cmpi sge, %237, %243 : vector<1x128xi32>
    %245 = arith.andi %242, %244 : vector<1x128xi1>
    %246 = arith.extui %245 : vector<1x128xi1> to vector<1x128xi32>
    %247 = arith.sitofp %246 : vector<1x128xi32> to vector<1x128xf32>
    %c1_i32_70 = arith.constant 1 : i32
    %248 = vector.broadcast %c1_i32_70 : i32 to vector<1x128xi32>
    %249 = arith.cmpi sge, %235, %248 : vector<1x128xi32>
    %250 = arith.andi %239, %249 : vector<1x128xi1>
    %251 = arith.extui %250 : vector<1x128xi1> to vector<1x128xi32>
    %252 = arith.sitofp %251 : vector<1x128xi32> to vector<1x128xf32>
    %c1_i32_71 = arith.constant 1 : i32
    %253 = vector.broadcast %c1_i32_71 : i32 to vector<1x128xi32>
    %254 = arith.cmpi sge, %235, %253 : vector<1x128xi32>
    %255 = arith.andi %239, %254 : vector<1x128xi1>
    %c7_i32_72 = arith.constant 7 : i32
    %256 = vector.broadcast %c7_i32_72 : i32 to vector<1x128xi32>
    %257 = arith.cmpi slt, %237, %256 : vector<1x128xi32>
    %258 = arith.andi %255, %257 : vector<1x128xi1>
    %259 = arith.extui %258 : vector<1x128xi1> to vector<1x128xi32>
    %260 = arith.sitofp %259 : vector<1x128xi32> to vector<1x128xf32>
    %c1_i32_73 = arith.constant 1 : i32
    %261 = vector.broadcast %c1_i32_73 : i32 to vector<1x128xi32>
    %262 = arith.cmpi sge, %237, %261 : vector<1x128xi32>
    %263 = arith.andi %239, %262 : vector<1x128xi1>
    %264 = arith.extui %263 : vector<1x128xi1> to vector<1x128xi32>
    %265 = arith.sitofp %264 : vector<1x128xi32> to vector<1x128xf32>
    %266 = arith.extui %239 : vector<1x128xi1> to vector<1x128xi32>
    %267 = arith.sitofp %266 : vector<1x128xi32> to vector<1x128xf32>
    %c7_i32_74 = arith.constant 7 : i32
    %268 = vector.broadcast %c7_i32_74 : i32 to vector<1x128xi32>
    %269 = arith.cmpi slt, %237, %268 : vector<1x128xi32>
    %270 = arith.andi %239, %269 : vector<1x128xi1>
    %271 = arith.extui %270 : vector<1x128xi1> to vector<1x128xi32>
    %272 = arith.sitofp %271 : vector<1x128xi32> to vector<1x128xf32>
    %c7_i32_75 = arith.constant 7 : i32
    %273 = vector.broadcast %c7_i32_75 : i32 to vector<1x128xi32>
    %274 = arith.cmpi slt, %235, %273 : vector<1x128xi32>
    %275 = arith.andi %239, %274 : vector<1x128xi1>
    %c1_i32_76 = arith.constant 1 : i32
    %276 = vector.broadcast %c1_i32_76 : i32 to vector<1x128xi32>
    %277 = arith.cmpi sge, %237, %276 : vector<1x128xi32>
    %278 = arith.andi %275, %277 : vector<1x128xi1>
    %279 = arith.extui %278 : vector<1x128xi1> to vector<1x128xi32>
    %280 = arith.sitofp %279 : vector<1x128xi32> to vector<1x128xf32>
    %c7_i32_77 = arith.constant 7 : i32
    %281 = vector.broadcast %c7_i32_77 : i32 to vector<1x128xi32>
    %282 = arith.cmpi slt, %235, %281 : vector<1x128xi32>
    %283 = arith.andi %239, %282 : vector<1x128xi1>
    %284 = arith.extui %283 : vector<1x128xi1> to vector<1x128xi32>
    %285 = arith.sitofp %284 : vector<1x128xi32> to vector<1x128xf32>
    %c7_i32_78 = arith.constant 7 : i32
    %286 = vector.broadcast %c7_i32_78 : i32 to vector<1x128xi32>
    %287 = arith.cmpi slt, %235, %286 : vector<1x128xi32>
    %288 = arith.andi %239, %287 : vector<1x128xi1>
    %c7_i32_79 = arith.constant 7 : i32
    %289 = vector.broadcast %c7_i32_79 : i32 to vector<1x128xi32>
    %290 = arith.cmpi slt, %237, %289 : vector<1x128xi32>
    %291 = arith.andi %288, %290 : vector<1x128xi1>
    %292 = arith.extui %291 : vector<1x128xi1> to vector<1x128xi32>
    %293 = arith.sitofp %292 : vector<1x128xi32> to vector<1x128xf32>
    %c9_i32 = arith.constant 9 : i32
    %294 = tpu.dynamic_rotate %227 by %c9_i32 dim 1 : vector<12x128xf32>, i32 -> vector<12x128xf32>
    %295 = vector.broadcast %247 : vector<1x128xf32> to vector<12x128xf32>
    %296 = arith.mulf %294, %295 : vector<12x128xf32>
    %c8_i32_80 = arith.constant 8 : i32
    %297 = tpu.dynamic_rotate %227 by %c8_i32_80 dim 1 : vector<12x128xf32>, i32 -> vector<12x128xf32>
    %298 = vector.broadcast %252 : vector<1x128xf32> to vector<12x128xf32>
    %299 = arith.mulf %297, %298 : vector<12x128xf32>
    %c7_i32_81 = arith.constant 7 : i32
    %300 = tpu.dynamic_rotate %227 by %c7_i32_81 dim 1 : vector<12x128xf32>, i32 -> vector<12x128xf32>
    %301 = vector.broadcast %260 : vector<1x128xf32> to vector<12x128xf32>
    %302 = arith.mulf %300, %301 : vector<12x128xf32>
    %c1_i32_82 = arith.constant 1 : i32
    %303 = tpu.dynamic_rotate %227 by %c1_i32_82 dim 1 : vector<12x128xf32>, i32 -> vector<12x128xf32>
    %304 = vector.broadcast %265 : vector<1x128xf32> to vector<12x128xf32>
    %305 = arith.mulf %303, %304 : vector<12x128xf32>
    %306 = vector.broadcast %267 : vector<1x128xf32> to vector<12x128xf32>
    %307 = arith.mulf %227, %306 : vector<12x128xf32>
    %c127_i32 = arith.constant 127 : i32
    %308 = tpu.dynamic_rotate %227 by %c127_i32 dim 1 : vector<12x128xf32>, i32 -> vector<12x128xf32>
    %309 = vector.broadcast %272 : vector<1x128xf32> to vector<12x128xf32>
    %310 = arith.mulf %308, %309 : vector<12x128xf32>
    %c121_i32 = arith.constant 121 : i32
    %311 = tpu.dynamic_rotate %227 by %c121_i32 dim 1 : vector<12x128xf32>, i32 -> vector<12x128xf32>
    %312 = vector.broadcast %280 : vector<1x128xf32> to vector<12x128xf32>
    %313 = arith.mulf %311, %312 : vector<12x128xf32>
    %c120_i32 = arith.constant 120 : i32
    %314 = tpu.dynamic_rotate %227 by %c120_i32 dim 1 : vector<12x128xf32>, i32 -> vector<12x128xf32>
    %315 = vector.broadcast %285 : vector<1x128xf32> to vector<12x128xf32>
    %316 = arith.mulf %314, %315 : vector<12x128xf32>
    %c119_i32 = arith.constant 119 : i32
    %317 = tpu.dynamic_rotate %227 by %c119_i32 dim 1 : vector<12x128xf32>, i32 -> vector<12x128xf32>
    %318 = vector.broadcast %293 : vector<1x128xf32> to vector<12x128xf32>
    %319 = arith.mulf %317, %318 : vector<12x128xf32>
    %320 = tpu.concatenate %296, %299, %302, %305, %307, %310, %313, %316, %319 in 0 : vector<12x128xf32>, vector<12x128xf32>, vector<12x128xf32>, vector<12x128xf32>, vector<12x128xf32>, vector<12x128xf32>, vector<12x128xf32>, vector<12x128xf32>, vector<12x128xf32> -> vector<108x128xf32>
    %cst_83 = arith.constant dense<0.000000e+00> : vector<12x128xf32>
    %321 = tpu.matmul %228, %320, %cst_83 {dimension_numbers = #tpu.dot_dimension_numbers<[1], [0], [0], [1], [0, 0, 1, 1], [], []>} : vector<12x108xf32>, vector<108x128xf32>, vector<12x128xf32> -> vector<12x128xf32>
    %322 = arith.mulf %321, %321 : vector<12x128xf32>
    %323 = tpu.concatenate %321, %322 in 0 : vector<12x128xf32>, vector<12x128xf32> -> vector<24x128xf32>
    %cst_84 = arith.constant dense<0.000000e+00> : vector<24xf32>
    %324 = vector.multi_reduction <add>, %323, %cst_84 [1] : vector<24x128xf32> to vector<24xf32>
    %325 = vector.shape_cast %324 : vector<24xf32> to vector<24x1xf32>
    %cst_85 = arith.constant 7.812500e-03 : f32
    %326 = vector.broadcast %cst_85 : f32 to vector<24x1xf32>
    %327 = arith.mulf %325, %326 : vector<24x1xf32>
    %328 = vector.extract_strided_slice %327 {offsets = [0, 0], sizes = [12, 1], strides = [1, 1]} : vector<24x1xf32> to vector<12x1xf32>
    %329 = vector.extract_strided_slice %327 {offsets = [12, 0], sizes = [12, 1], strides = [1, 1]} : vector<24x1xf32> to vector<12x1xf32>
    %330 = arith.mulf %328, %328 : vector<12x1xf32>
    %331 = arith.subf %329, %330 : vector<12x1xf32>
    %cst_86 = arith.constant 9.99999974E-6 : f32
    %332 = vector.broadcast %cst_86 : f32 to vector<12x1xf32>
    %333 = arith.addf %331, %332 : vector<12x1xf32>
    %334 = math.rsqrt %333 : vector<12x1xf32>
    %335 = arith.mulf %229, %334 : vector<12x1xf32>
    %336 = arith.mulf %328, %335 : vector<12x1xf32>
    %337 = arith.subf %230, %336 : vector<12x1xf32>
    %338 = vector.broadcast %335 : vector<12x1xf32> to vector<12x128xf32>
    %339 = arith.mulf %321, %338 : vector<12x128xf32>
    %340 = vector.broadcast %337 : vector<12x1xf32> to vector<12x128xf32>
    %341 = arith.addf %339, %340 : vector<12x128xf32>
    %cst_87 = arith.constant 0.000000e+00 : f32
    %342 = vector.broadcast %cst_87 : f32 to vector<12x128xf32>
    %343 = arith.maximumf %341, %342 : vector<12x128xf32>
    %c48 = arith.constant 48 : index
    %c0_88 = arith.constant 0 : index
    %344 = vector.load %arg1[%c48, %c0_88] : memref<128x128xf32, #tpu.memory_space<vmem>>, vector<12x108xf32>
    %c48_89 = arith.constant 48 : index
    %c126_90 = arith.constant 126 : index
    %345 = vector.load %arg1[%c48_89, %c126_90] : memref<128x128xf32, #tpu.memory_space<vmem>>, vector<12x1xf32>
    %c48_91 = arith.constant 48 : index
    %c127_92 = arith.constant 127 : index
    %346 = vector.load %arg1[%c48_91, %c127_92] : memref<128x128xf32, #tpu.memory_space<vmem>>, vector<12x1xf32>
    %c9_i32_93 = arith.constant 9 : i32
    %347 = tpu.dynamic_rotate %343 by %c9_i32_93 dim 1 : vector<12x128xf32>, i32 -> vector<12x128xf32>
    %348 = vector.broadcast %247 : vector<1x128xf32> to vector<12x128xf32>
    %349 = arith.mulf %347, %348 : vector<12x128xf32>
    %c8_i32_94 = arith.constant 8 : i32
    %350 = tpu.dynamic_rotate %343 by %c8_i32_94 dim 1 : vector<12x128xf32>, i32 -> vector<12x128xf32>
    %351 = vector.broadcast %252 : vector<1x128xf32> to vector<12x128xf32>
    %352 = arith.mulf %350, %351 : vector<12x128xf32>
    %c7_i32_95 = arith.constant 7 : i32
    %353 = tpu.dynamic_rotate %343 by %c7_i32_95 dim 1 : vector<12x128xf32>, i32 -> vector<12x128xf32>
    %354 = vector.broadcast %260 : vector<1x128xf32> to vector<12x128xf32>
    %355 = arith.mulf %353, %354 : vector<12x128xf32>
    %c1_i32_96 = arith.constant 1 : i32
    %356 = tpu.dynamic_rotate %343 by %c1_i32_96 dim 1 : vector<12x128xf32>, i32 -> vector<12x128xf32>
    %357 = vector.broadcast %265 : vector<1x128xf32> to vector<12x128xf32>
    %358 = arith.mulf %356, %357 : vector<12x128xf32>
    %359 = vector.broadcast %267 : vector<1x128xf32> to vector<12x128xf32>
    %360 = arith.mulf %343, %359 : vector<12x128xf32>
    %c127_i32_97 = arith.constant 127 : i32
    %361 = tpu.dynamic_rotate %343 by %c127_i32_97 dim 1 : vector<12x128xf32>, i32 -> vector<12x128xf32>
    %362 = vector.broadcast %272 : vector<1x128xf32> to vector<12x128xf32>
    %363 = arith.mulf %361, %362 : vector<12x128xf32>
    %c121_i32_98 = arith.constant 121 : i32
    %364 = tpu.dynamic_rotate %343 by %c121_i32_98 dim 1 : vector<12x128xf32>, i32 -> vector<12x128xf32>
    %365 = vector.broadcast %280 : vector<1x128xf32> to vector<12x128xf32>
    %366 = arith.mulf %364, %365 : vector<12x128xf32>
    %c120_i32_99 = arith.constant 120 : i32
    %367 = tpu.dynamic_rotate %343 by %c120_i32_99 dim 1 : vector<12x128xf32>, i32 -> vector<12x128xf32>
    %368 = vector.broadcast %285 : vector<1x128xf32> to vector<12x128xf32>
    %369 = arith.mulf %367, %368 : vector<12x128xf32>
    %c119_i32_100 = arith.constant 119 : i32
    %370 = tpu.dynamic_rotate %343 by %c119_i32_100 dim 1 : vector<12x128xf32>, i32 -> vector<12x128xf32>
    %371 = vector.broadcast %293 : vector<1x128xf32> to vector<12x128xf32>
    %372 = arith.mulf %370, %371 : vector<12x128xf32>
    %373 = tpu.concatenate %349, %352, %355, %358, %360, %363, %366, %369, %372 in 0 : vector<12x128xf32>, vector<12x128xf32>, vector<12x128xf32>, vector<12x128xf32>, vector<12x128xf32>, vector<12x128xf32>, vector<12x128xf32>, vector<12x128xf32>, vector<12x128xf32> -> vector<108x128xf32>
    %cst_101 = arith.constant dense<0.000000e+00> : vector<12x128xf32>
    %374 = tpu.matmul %344, %373, %cst_101 {dimension_numbers = #tpu.dot_dimension_numbers<[1], [0], [0], [1], [0, 0, 1, 1], [], []>} : vector<12x108xf32>, vector<108x128xf32>, vector<12x128xf32> -> vector<12x128xf32>
    %375 = arith.mulf %374, %374 : vector<12x128xf32>
    %376 = tpu.concatenate %374, %375 in 0 : vector<12x128xf32>, vector<12x128xf32> -> vector<24x128xf32>
    %cst_102 = arith.constant dense<0.000000e+00> : vector<24xf32>
    %377 = vector.multi_reduction <add>, %376, %cst_102 [1] : vector<24x128xf32> to vector<24xf32>
    %378 = vector.shape_cast %377 : vector<24xf32> to vector<24x1xf32>
    %cst_103 = arith.constant 7.812500e-03 : f32
    %379 = vector.broadcast %cst_103 : f32 to vector<24x1xf32>
    %380 = arith.mulf %378, %379 : vector<24x1xf32>
    %381 = vector.extract_strided_slice %380 {offsets = [0, 0], sizes = [12, 1], strides = [1, 1]} : vector<24x1xf32> to vector<12x1xf32>
    %382 = vector.extract_strided_slice %380 {offsets = [12, 0], sizes = [12, 1], strides = [1, 1]} : vector<24x1xf32> to vector<12x1xf32>
    %383 = arith.mulf %381, %381 : vector<12x1xf32>
    %384 = arith.subf %382, %383 : vector<12x1xf32>
    %cst_104 = arith.constant 9.99999974E-6 : f32
    %385 = vector.broadcast %cst_104 : f32 to vector<12x1xf32>
    %386 = arith.addf %384, %385 : vector<12x1xf32>
    %387 = math.rsqrt %386 : vector<12x1xf32>
    %388 = arith.mulf %345, %387 : vector<12x1xf32>
    %389 = arith.mulf %381, %388 : vector<12x1xf32>
    %390 = arith.subf %346, %389 : vector<12x1xf32>
    %391 = vector.broadcast %388 : vector<12x1xf32> to vector<12x128xf32>
    %392 = arith.mulf %374, %391 : vector<12x128xf32>
    %393 = vector.broadcast %390 : vector<12x1xf32> to vector<12x128xf32>
    %394 = arith.addf %392, %393 : vector<12x128xf32>
    %cst_105 = arith.constant 0.000000e+00 : f32
    %395 = vector.broadcast %cst_105 : f32 to vector<12x128xf32>
    %396 = arith.maximumf %394, %395 : vector<12x128xf32>
    %c127_i32_106 = arith.constant 127 : i32
    %397 = tpu.dynamic_rotate %396 by %c127_i32_106 dim 1 : vector<12x128xf32>, i32 -> vector<12x128xf32>
    %398 = arith.maximumf %396, %397 : vector<12x128xf32>
    %c120_i32_107 = arith.constant 120 : i32
    %399 = tpu.dynamic_rotate %398 by %c120_i32_107 dim 1 : vector<12x128xf32>, i32 -> vector<12x128xf32>
    %400 = arith.maximumf %398, %399 : vector<12x128xf32>
    %401 = tpu.iota {dimensions = array<i32: 0>} : vector<128x128xi32>
    %402 = tpu.iota {dimensions = array<i32: 1>} : vector<128x128xi32>
    %c6_i32_108 = arith.constant 6 : i32
    %403 = vector.broadcast %c6_i32_108 : i32 to vector<128x128xi32>
    %404 = arith.shrsi %401, %403 : vector<128x128xi32>
    %c63_i32_109 = arith.constant 63 : i32
    %405 = vector.broadcast %c63_i32_109 : i32 to vector<128x128xi32>
    %406 = arith.andi %401, %405 : vector<128x128xi32>
    %c3_i32_110 = arith.constant 3 : i32
    %407 = vector.broadcast %c3_i32_110 : i32 to vector<128x128xi32>
    %408 = arith.shrsi %406, %407 : vector<128x128xi32>
    %c7_i32_111 = arith.constant 7 : i32
    %409 = vector.broadcast %c7_i32_111 : i32 to vector<128x128xi32>
    %410 = arith.andi %406, %409 : vector<128x128xi32>
    %c4_i32_112 = arith.constant 4 : i32
    %411 = vector.broadcast %c4_i32_112 : i32 to vector<128x128xi32>
    %412 = arith.shli %404, %411 : vector<128x128xi32>
    %c1_i32_113 = arith.constant 1 : i32
    %413 = vector.broadcast %c1_i32_113 : i32 to vector<128x128xi32>
    %414 = arith.shrsi %408, %413 : vector<128x128xi32>
    %c2_i32 = arith.constant 2 : i32
    %415 = vector.broadcast %c2_i32 : i32 to vector<128x128xi32>
    %416 = arith.shli %414, %415 : vector<128x128xi32>
    %417 = arith.addi %412, %416 : vector<128x128xi32>
    %c1_i32_114 = arith.constant 1 : i32
    %418 = vector.broadcast %c1_i32_114 : i32 to vector<128x128xi32>
    %419 = arith.shrsi %410, %418 : vector<128x128xi32>
    %420 = arith.addi %417, %419 : vector<128x128xi32>
    %c128_i32_115 = arith.constant 128 : i32
    %421 = vector.broadcast %c128_i32_115 : i32 to vector<128x128xi32>
    %422 = arith.cmpi slt, %401, %421 : vector<128x128xi32>
    %c1_i32_116 = arith.constant 1 : i32
    %423 = vector.broadcast %c1_i32_116 : i32 to vector<128x128xi32>
    %424 = arith.andi %408, %423 : vector<128x128xi32>
    %c0_i32_117 = arith.constant 0 : i32
    %425 = vector.broadcast %c0_i32_117 : i32 to vector<128x128xi32>
    %426 = arith.cmpi eq, %424, %425 : vector<128x128xi32>
    %427 = arith.andi %422, %426 : vector<128x128xi1>
    %c1_i32_118 = arith.constant 1 : i32
    %428 = vector.broadcast %c1_i32_118 : i32 to vector<128x128xi32>
    %429 = arith.andi %410, %428 : vector<128x128xi32>
    %c0_i32_119 = arith.constant 0 : i32
    %430 = vector.broadcast %c0_i32_119 : i32 to vector<128x128xi32>
    %431 = arith.cmpi eq, %429, %430 : vector<128x128xi32>
    %432 = arith.andi %427, %431 : vector<128x128xi1>
    %433 = arith.cmpi eq, %402, %420 : vector<128x128xi32>
    %434 = arith.andi %432, %433 : vector<128x128xi1>
    %435 = arith.extui %434 : vector<128x128xi1> to vector<128x128xi32>
    %436 = arith.sitofp %435 : vector<128x128xi32> to vector<128x128xf32>
    %cst_120 = arith.constant dense<0.000000e+00> : vector<12x128xf32>
    %437 = tpu.matmul %400, %436, %cst_120 {dimension_numbers = #tpu.dot_dimension_numbers<[1], [0], [0], [1], [0, 0, 1, 1], [], []>} : vector<12x128xf32>, vector<128x128xf32>, vector<12x128xf32> -> vector<12x128xf32>
    %c64 = arith.constant 64 : index
    %c0_121 = arith.constant 0 : index
    %438 = vector.load %arg1[%c64, %c0_121] : memref<128x128xf32, #tpu.memory_space<vmem>>, vector<12x12xf32>
    %c64_122 = arith.constant 64 : index
    %c126_123 = arith.constant 126 : index
    %439 = vector.load %arg1[%c64_122, %c126_123] : memref<128x128xf32, #tpu.memory_space<vmem>>, vector<12x1xf32>
    %c64_124 = arith.constant 64 : index
    %c127_125 = arith.constant 127 : index
    %440 = vector.load %arg1[%c64_124, %c127_125] : memref<128x128xf32, #tpu.memory_space<vmem>>, vector<12x1xf32>
    %cst_126 = arith.constant dense<0.000000e+00> : vector<12x128xf32>
    %441 = tpu.matmul %438, %437, %cst_126 {dimension_numbers = #tpu.dot_dimension_numbers<[1], [0], [0], [1], [0, 0, 1, 1], [], []>} : vector<12x12xf32>, vector<12x128xf32>, vector<12x128xf32> -> vector<12x128xf32>
    %442 = arith.mulf %441, %441 : vector<12x128xf32>
    %443 = tpu.concatenate %441, %442 in 0 : vector<12x128xf32>, vector<12x128xf32> -> vector<24x128xf32>
    %cst_127 = arith.constant dense<0.000000e+00> : vector<24xf32>
    %444 = vector.multi_reduction <add>, %443, %cst_127 [1] : vector<24x128xf32> to vector<24xf32>
    %445 = vector.shape_cast %444 : vector<24xf32> to vector<24x1xf32>
    %cst_128 = arith.constant 3.125000e-02 : f32
    %446 = vector.broadcast %cst_128 : f32 to vector<24x1xf32>
    %447 = arith.mulf %445, %446 : vector<24x1xf32>
    %448 = vector.extract_strided_slice %447 {offsets = [0, 0], sizes = [12, 1], strides = [1, 1]} : vector<24x1xf32> to vector<12x1xf32>
    %449 = vector.extract_strided_slice %447 {offsets = [12, 0], sizes = [12, 1], strides = [1, 1]} : vector<24x1xf32> to vector<12x1xf32>
    %450 = arith.mulf %448, %448 : vector<12x1xf32>
    %451 = arith.subf %449, %450 : vector<12x1xf32>
    %cst_129 = arith.constant 9.99999974E-6 : f32
    %452 = vector.broadcast %cst_129 : f32 to vector<12x1xf32>
    %453 = arith.addf %451, %452 : vector<12x1xf32>
    %454 = math.rsqrt %453 : vector<12x1xf32>
    %455 = arith.mulf %439, %454 : vector<12x1xf32>
    %456 = arith.mulf %448, %455 : vector<12x1xf32>
    %457 = arith.subf %440, %456 : vector<12x1xf32>
    %458 = vector.broadcast %455 : vector<12x1xf32> to vector<12x128xf32>
    %459 = arith.mulf %441, %458 : vector<12x128xf32>
    %460 = vector.broadcast %457 : vector<12x1xf32> to vector<12x128xf32>
    %461 = arith.addf %459, %460 : vector<12x128xf32>
    %cst_130 = arith.constant 0.000000e+00 : f32
    %462 = vector.broadcast %cst_130 : f32 to vector<12x128xf32>
    %463 = arith.maximumf %461, %462 : vector<12x128xf32>
    %c80 = arith.constant 80 : index
    %c0_131 = arith.constant 0 : index
    %464 = vector.load %arg1[%c80, %c0_131] : memref<128x128xf32, #tpu.memory_space<vmem>>, vector<12x108xf32>
    %c80_132 = arith.constant 80 : index
    %c126_133 = arith.constant 126 : index
    %465 = vector.load %arg1[%c80_132, %c126_133] : memref<128x128xf32, #tpu.memory_space<vmem>>, vector<12x1xf32>
    %c80_134 = arith.constant 80 : index
    %c127_135 = arith.constant 127 : index
    %466 = vector.load %arg1[%c80_134, %c127_135] : memref<128x128xf32, #tpu.memory_space<vmem>>, vector<12x1xf32>
    %467 = tpu.iota {dimensions = array<i32: 1>} : vector<1x128xi32>
    %c15_i32_136 = arith.constant 15 : i32
    %468 = vector.broadcast %c15_i32_136 : i32 to vector<1x128xi32>
    %469 = arith.andi %467, %468 : vector<1x128xi32>
    %c2_i32_137 = arith.constant 2 : i32
    %470 = vector.broadcast %c2_i32_137 : i32 to vector<1x128xi32>
    %471 = arith.shrsi %469, %470 : vector<1x128xi32>
    %c3_i32_138 = arith.constant 3 : i32
    %472 = vector.broadcast %c3_i32_138 : i32 to vector<1x128xi32>
    %473 = arith.andi %469, %472 : vector<1x128xi32>
    %c32_i32 = arith.constant 32 : i32
    %474 = vector.broadcast %c32_i32 : i32 to vector<1x128xi32>
    %475 = arith.cmpi slt, %467, %474 : vector<1x128xi32>
    %c1_i32_139 = arith.constant 1 : i32
    %476 = vector.broadcast %c1_i32_139 : i32 to vector<1x128xi32>
    %477 = arith.cmpi sge, %471, %476 : vector<1x128xi32>
    %478 = arith.andi %475, %477 : vector<1x128xi1>
    %c1_i32_140 = arith.constant 1 : i32
    %479 = vector.broadcast %c1_i32_140 : i32 to vector<1x128xi32>
    %480 = arith.cmpi sge, %473, %479 : vector<1x128xi32>
    %481 = arith.andi %478, %480 : vector<1x128xi1>
    %482 = arith.extui %481 : vector<1x128xi1> to vector<1x128xi32>
    %483 = arith.sitofp %482 : vector<1x128xi32> to vector<1x128xf32>
    %c1_i32_141 = arith.constant 1 : i32
    %484 = vector.broadcast %c1_i32_141 : i32 to vector<1x128xi32>
    %485 = arith.cmpi sge, %471, %484 : vector<1x128xi32>
    %486 = arith.andi %475, %485 : vector<1x128xi1>
    %487 = arith.extui %486 : vector<1x128xi1> to vector<1x128xi32>
    %488 = arith.sitofp %487 : vector<1x128xi32> to vector<1x128xf32>
    %c1_i32_142 = arith.constant 1 : i32
    %489 = vector.broadcast %c1_i32_142 : i32 to vector<1x128xi32>
    %490 = arith.cmpi sge, %471, %489 : vector<1x128xi32>
    %491 = arith.andi %475, %490 : vector<1x128xi1>
    %c3_i32_143 = arith.constant 3 : i32
    %492 = vector.broadcast %c3_i32_143 : i32 to vector<1x128xi32>
    %493 = arith.cmpi slt, %473, %492 : vector<1x128xi32>
    %494 = arith.andi %491, %493 : vector<1x128xi1>
    %495 = arith.extui %494 : vector<1x128xi1> to vector<1x128xi32>
    %496 = arith.sitofp %495 : vector<1x128xi32> to vector<1x128xf32>
    %c1_i32_144 = arith.constant 1 : i32
    %497 = vector.broadcast %c1_i32_144 : i32 to vector<1x128xi32>
    %498 = arith.cmpi sge, %473, %497 : vector<1x128xi32>
    %499 = arith.andi %475, %498 : vector<1x128xi1>
    %500 = arith.extui %499 : vector<1x128xi1> to vector<1x128xi32>
    %501 = arith.sitofp %500 : vector<1x128xi32> to vector<1x128xf32>
    %502 = arith.extui %475 : vector<1x128xi1> to vector<1x128xi32>
    %503 = arith.sitofp %502 : vector<1x128xi32> to vector<1x128xf32>
    %c3_i32_145 = arith.constant 3 : i32
    %504 = vector.broadcast %c3_i32_145 : i32 to vector<1x128xi32>
    %505 = arith.cmpi slt, %473, %504 : vector<1x128xi32>
    %506 = arith.andi %475, %505 : vector<1x128xi1>
    %507 = arith.extui %506 : vector<1x128xi1> to vector<1x128xi32>
    %508 = arith.sitofp %507 : vector<1x128xi32> to vector<1x128xf32>
    %c3_i32_146 = arith.constant 3 : i32
    %509 = vector.broadcast %c3_i32_146 : i32 to vector<1x128xi32>
    %510 = arith.cmpi slt, %471, %509 : vector<1x128xi32>
    %511 = arith.andi %475, %510 : vector<1x128xi1>
    %c1_i32_147 = arith.constant 1 : i32
    %512 = vector.broadcast %c1_i32_147 : i32 to vector<1x128xi32>
    %513 = arith.cmpi sge, %473, %512 : vector<1x128xi32>
    %514 = arith.andi %511, %513 : vector<1x128xi1>
    %515 = arith.extui %514 : vector<1x128xi1> to vector<1x128xi32>
    %516 = arith.sitofp %515 : vector<1x128xi32> to vector<1x128xf32>
    %c3_i32_148 = arith.constant 3 : i32
    %517 = vector.broadcast %c3_i32_148 : i32 to vector<1x128xi32>
    %518 = arith.cmpi slt, %471, %517 : vector<1x128xi32>
    %519 = arith.andi %475, %518 : vector<1x128xi1>
    %520 = arith.extui %519 : vector<1x128xi1> to vector<1x128xi32>
    %521 = arith.sitofp %520 : vector<1x128xi32> to vector<1x128xf32>
    %c3_i32_149 = arith.constant 3 : i32
    %522 = vector.broadcast %c3_i32_149 : i32 to vector<1x128xi32>
    %523 = arith.cmpi slt, %471, %522 : vector<1x128xi32>
    %524 = arith.andi %475, %523 : vector<1x128xi1>
    %c3_i32_150 = arith.constant 3 : i32
    %525 = vector.broadcast %c3_i32_150 : i32 to vector<1x128xi32>
    %526 = arith.cmpi slt, %473, %525 : vector<1x128xi32>
    %527 = arith.andi %524, %526 : vector<1x128xi1>
    %528 = arith.extui %527 : vector<1x128xi1> to vector<1x128xi32>
    %529 = arith.sitofp %528 : vector<1x128xi32> to vector<1x128xf32>
    %c5_i32 = arith.constant 5 : i32
    %530 = tpu.dynamic_rotate %463 by %c5_i32 dim 1 : vector<12x128xf32>, i32 -> vector<12x128xf32>
    %531 = vector.broadcast %483 : vector<1x128xf32> to vector<12x128xf32>
    %532 = arith.mulf %530, %531 : vector<12x128xf32>
    %c4_i32_151 = arith.constant 4 : i32
    %533 = tpu.dynamic_rotate %463 by %c4_i32_151 dim 1 : vector<12x128xf32>, i32 -> vector<12x128xf32>
    %534 = vector.broadcast %488 : vector<1x128xf32> to vector<12x128xf32>
    %535 = arith.mulf %533, %534 : vector<12x128xf32>
    %c3_i32_152 = arith.constant 3 : i32
    %536 = tpu.dynamic_rotate %463 by %c3_i32_152 dim 1 : vector<12x128xf32>, i32 -> vector<12x128xf32>
    %537 = vector.broadcast %496 : vector<1x128xf32> to vector<12x128xf32>
    %538 = arith.mulf %536, %537 : vector<12x128xf32>
    %c1_i32_153 = arith.constant 1 : i32
    %539 = tpu.dynamic_rotate %463 by %c1_i32_153 dim 1 : vector<12x128xf32>, i32 -> vector<12x128xf32>
    %540 = vector.broadcast %501 : vector<1x128xf32> to vector<12x128xf32>
    %541 = arith.mulf %539, %540 : vector<12x128xf32>
    %542 = vector.broadcast %503 : vector<1x128xf32> to vector<12x128xf32>
    %543 = arith.mulf %463, %542 : vector<12x128xf32>
    %c127_i32_154 = arith.constant 127 : i32
    %544 = tpu.dynamic_rotate %463 by %c127_i32_154 dim 1 : vector<12x128xf32>, i32 -> vector<12x128xf32>
    %545 = vector.broadcast %508 : vector<1x128xf32> to vector<12x128xf32>
    %546 = arith.mulf %544, %545 : vector<12x128xf32>
    %c125_i32 = arith.constant 125 : i32
    %547 = tpu.dynamic_rotate %463 by %c125_i32 dim 1 : vector<12x128xf32>, i32 -> vector<12x128xf32>
    %548 = vector.broadcast %516 : vector<1x128xf32> to vector<12x128xf32>
    %549 = arith.mulf %547, %548 : vector<12x128xf32>
    %c124_i32 = arith.constant 124 : i32
    %550 = tpu.dynamic_rotate %463 by %c124_i32 dim 1 : vector<12x128xf32>, i32 -> vector<12x128xf32>
    %551 = vector.broadcast %521 : vector<1x128xf32> to vector<12x128xf32>
    %552 = arith.mulf %550, %551 : vector<12x128xf32>
    %c123_i32 = arith.constant 123 : i32
    %553 = tpu.dynamic_rotate %463 by %c123_i32 dim 1 : vector<12x128xf32>, i32 -> vector<12x128xf32>
    %554 = vector.broadcast %529 : vector<1x128xf32> to vector<12x128xf32>
    %555 = arith.mulf %553, %554 : vector<12x128xf32>
    %556 = tpu.concatenate %532, %535, %538, %541, %543, %546, %549, %552, %555 in 0 : vector<12x128xf32>, vector<12x128xf32>, vector<12x128xf32>, vector<12x128xf32>, vector<12x128xf32>, vector<12x128xf32>, vector<12x128xf32>, vector<12x128xf32>, vector<12x128xf32> -> vector<108x128xf32>
    %cst_155 = arith.constant dense<0.000000e+00> : vector<12x128xf32>
    %557 = tpu.matmul %464, %556, %cst_155 {dimension_numbers = #tpu.dot_dimension_numbers<[1], [0], [0], [1], [0, 0, 1, 1], [], []>} : vector<12x108xf32>, vector<108x128xf32>, vector<12x128xf32> -> vector<12x128xf32>
    %558 = arith.mulf %557, %557 : vector<12x128xf32>
    %559 = tpu.concatenate %557, %558 in 0 : vector<12x128xf32>, vector<12x128xf32> -> vector<24x128xf32>
    %cst_156 = arith.constant dense<0.000000e+00> : vector<24xf32>
    %560 = vector.multi_reduction <add>, %559, %cst_156 [1] : vector<24x128xf32> to vector<24xf32>
    %561 = vector.shape_cast %560 : vector<24xf32> to vector<24x1xf32>
    %cst_157 = arith.constant 3.125000e-02 : f32
    %562 = vector.broadcast %cst_157 : f32 to vector<24x1xf32>
    %563 = arith.mulf %561, %562 : vector<24x1xf32>
    %564 = vector.extract_strided_slice %563 {offsets = [0, 0], sizes = [12, 1], strides = [1, 1]} : vector<24x1xf32> to vector<12x1xf32>
    %565 = vector.extract_strided_slice %563 {offsets = [12, 0], sizes = [12, 1], strides = [1, 1]} : vector<24x1xf32> to vector<12x1xf32>
    %566 = arith.mulf %564, %564 : vector<12x1xf32>
    %567 = arith.subf %565, %566 : vector<12x1xf32>
    %cst_158 = arith.constant 9.99999974E-6 : f32
    %568 = vector.broadcast %cst_158 : f32 to vector<12x1xf32>
    %569 = arith.addf %567, %568 : vector<12x1xf32>
    %570 = math.rsqrt %569 : vector<12x1xf32>
    %571 = arith.mulf %465, %570 : vector<12x1xf32>
    %572 = arith.mulf %564, %571 : vector<12x1xf32>
    %573 = arith.subf %466, %572 : vector<12x1xf32>
    %574 = vector.broadcast %571 : vector<12x1xf32> to vector<12x128xf32>
    %575 = arith.mulf %557, %574 : vector<12x128xf32>
    %576 = vector.broadcast %573 : vector<12x1xf32> to vector<12x128xf32>
    %577 = arith.addf %575, %576 : vector<12x128xf32>
    %cst_159 = arith.constant 0.000000e+00 : f32
    %578 = vector.broadcast %cst_159 : f32 to vector<12x128xf32>
    %579 = arith.maximumf %577, %578 : vector<12x128xf32>
    %c96 = arith.constant 96 : index
    %c0_160 = arith.constant 0 : index
    %580 = vector.load %arg1[%c96, %c0_160] : memref<128x128xf32, #tpu.memory_space<vmem>>, vector<12x108xf32>
    %c96_161 = arith.constant 96 : index
    %c126_162 = arith.constant 126 : index
    %581 = vector.load %arg1[%c96_161, %c126_162] : memref<128x128xf32, #tpu.memory_space<vmem>>, vector<12x1xf32>
    %c96_163 = arith.constant 96 : index
    %c127_164 = arith.constant 127 : index
    %582 = vector.load %arg1[%c96_163, %c127_164] : memref<128x128xf32, #tpu.memory_space<vmem>>, vector<12x1xf32>
    %c5_i32_165 = arith.constant 5 : i32
    %583 = tpu.dynamic_rotate %579 by %c5_i32_165 dim 1 : vector<12x128xf32>, i32 -> vector<12x128xf32>
    %584 = vector.broadcast %483 : vector<1x128xf32> to vector<12x128xf32>
    %585 = arith.mulf %583, %584 : vector<12x128xf32>
    %c4_i32_166 = arith.constant 4 : i32
    %586 = tpu.dynamic_rotate %579 by %c4_i32_166 dim 1 : vector<12x128xf32>, i32 -> vector<12x128xf32>
    %587 = vector.broadcast %488 : vector<1x128xf32> to vector<12x128xf32>
    %588 = arith.mulf %586, %587 : vector<12x128xf32>
    %c3_i32_167 = arith.constant 3 : i32
    %589 = tpu.dynamic_rotate %579 by %c3_i32_167 dim 1 : vector<12x128xf32>, i32 -> vector<12x128xf32>
    %590 = vector.broadcast %496 : vector<1x128xf32> to vector<12x128xf32>
    %591 = arith.mulf %589, %590 : vector<12x128xf32>
    %c1_i32_168 = arith.constant 1 : i32
    %592 = tpu.dynamic_rotate %579 by %c1_i32_168 dim 1 : vector<12x128xf32>, i32 -> vector<12x128xf32>
    %593 = vector.broadcast %501 : vector<1x128xf32> to vector<12x128xf32>
    %594 = arith.mulf %592, %593 : vector<12x128xf32>
    %595 = vector.broadcast %503 : vector<1x128xf32> to vector<12x128xf32>
    %596 = arith.mulf %579, %595 : vector<12x128xf32>
    %c127_i32_169 = arith.constant 127 : i32
    %597 = tpu.dynamic_rotate %579 by %c127_i32_169 dim 1 : vector<12x128xf32>, i32 -> vector<12x128xf32>
    %598 = vector.broadcast %508 : vector<1x128xf32> to vector<12x128xf32>
    %599 = arith.mulf %597, %598 : vector<12x128xf32>
    %c125_i32_170 = arith.constant 125 : i32
    %600 = tpu.dynamic_rotate %579 by %c125_i32_170 dim 1 : vector<12x128xf32>, i32 -> vector<12x128xf32>
    %601 = vector.broadcast %516 : vector<1x128xf32> to vector<12x128xf32>
    %602 = arith.mulf %600, %601 : vector<12x128xf32>
    %c124_i32_171 = arith.constant 124 : i32
    %603 = tpu.dynamic_rotate %579 by %c124_i32_171 dim 1 : vector<12x128xf32>, i32 -> vector<12x128xf32>
    %604 = vector.broadcast %521 : vector<1x128xf32> to vector<12x128xf32>
    %605 = arith.mulf %603, %604 : vector<12x128xf32>
    %c123_i32_172 = arith.constant 123 : i32
    %606 = tpu.dynamic_rotate %579 by %c123_i32_172 dim 1 : vector<12x128xf32>, i32 -> vector<12x128xf32>
    %607 = vector.broadcast %529 : vector<1x128xf32> to vector<12x128xf32>
    %608 = arith.mulf %606, %607 : vector<12x128xf32>
    %609 = tpu.concatenate %585, %588, %591, %594, %596, %599, %602, %605, %608 in 0 : vector<12x128xf32>, vector<12x128xf32>, vector<12x128xf32>, vector<12x128xf32>, vector<12x128xf32>, vector<12x128xf32>, vector<12x128xf32>, vector<12x128xf32>, vector<12x128xf32> -> vector<108x128xf32>
    %cst_173 = arith.constant dense<0.000000e+00> : vector<12x128xf32>
    %610 = tpu.matmul %580, %609, %cst_173 {dimension_numbers = #tpu.dot_dimension_numbers<[1], [0], [0], [1], [0, 0, 1, 1], [], []>} : vector<12x108xf32>, vector<108x128xf32>, vector<12x128xf32> -> vector<12x128xf32>
    %611 = arith.mulf %610, %610 : vector<12x128xf32>
    %612 = tpu.concatenate %610, %611 in 0 : vector<12x128xf32>, vector<12x128xf32> -> vector<24x128xf32>
    %cst_174 = arith.constant dense<0.000000e+00> : vector<24xf32>
    %613 = vector.multi_reduction <add>, %612, %cst_174 [1] : vector<24x128xf32> to vector<24xf32>
    %614 = vector.shape_cast %613 : vector<24xf32> to vector<24x1xf32>
    %cst_175 = arith.constant 3.125000e-02 : f32
    %615 = vector.broadcast %cst_175 : f32 to vector<24x1xf32>
    %616 = arith.mulf %614, %615 : vector<24x1xf32>
    %617 = vector.extract_strided_slice %616 {offsets = [0, 0], sizes = [12, 1], strides = [1, 1]} : vector<24x1xf32> to vector<12x1xf32>
    %618 = vector.extract_strided_slice %616 {offsets = [12, 0], sizes = [12, 1], strides = [1, 1]} : vector<24x1xf32> to vector<12x1xf32>
    %619 = arith.mulf %617, %617 : vector<12x1xf32>
    %620 = arith.subf %618, %619 : vector<12x1xf32>
    %cst_176 = arith.constant 9.99999974E-6 : f32
    %621 = vector.broadcast %cst_176 : f32 to vector<12x1xf32>
    %622 = arith.addf %620, %621 : vector<12x1xf32>
    %623 = math.rsqrt %622 : vector<12x1xf32>
    %624 = arith.mulf %581, %623 : vector<12x1xf32>
    %625 = arith.mulf %617, %624 : vector<12x1xf32>
    %626 = arith.subf %582, %625 : vector<12x1xf32>
    %627 = vector.broadcast %624 : vector<12x1xf32> to vector<12x128xf32>
    %628 = arith.mulf %610, %627 : vector<12x128xf32>
    %629 = vector.broadcast %626 : vector<12x1xf32> to vector<12x128xf32>
    %630 = arith.addf %628, %629 : vector<12x128xf32>
    %cst_177 = arith.constant 0.000000e+00 : f32
    %631 = vector.broadcast %cst_177 : f32 to vector<12x128xf32>
    %632 = arith.maximumf %630, %631 : vector<12x128xf32>
    %c112 = arith.constant 112 : index
    %c0_178 = arith.constant 0 : index
    %633 = vector.load %arg1[%c112, %c0_178] : memref<128x128xf32, #tpu.memory_space<vmem>>, vector<10x108xf32>
    %c112_179 = arith.constant 112 : index
    %c126_180 = arith.constant 126 : index
    %634 = vector.load %arg1[%c112_179, %c126_180] : memref<128x128xf32, #tpu.memory_space<vmem>>, vector<10x1xf32>
    %c112_181 = arith.constant 112 : index
    %c127_182 = arith.constant 127 : index
    %635 = vector.load %arg1[%c112_181, %c127_182] : memref<128x128xf32, #tpu.memory_space<vmem>>, vector<10x1xf32>
    %c5_i32_183 = arith.constant 5 : i32
    %636 = tpu.dynamic_rotate %632 by %c5_i32_183 dim 1 : vector<12x128xf32>, i32 -> vector<12x128xf32>
    %637 = vector.broadcast %483 : vector<1x128xf32> to vector<12x128xf32>
    %638 = arith.mulf %636, %637 : vector<12x128xf32>
    %c4_i32_184 = arith.constant 4 : i32
    %639 = tpu.dynamic_rotate %632 by %c4_i32_184 dim 1 : vector<12x128xf32>, i32 -> vector<12x128xf32>
    %640 = vector.broadcast %488 : vector<1x128xf32> to vector<12x128xf32>
    %641 = arith.mulf %639, %640 : vector<12x128xf32>
    %c3_i32_185 = arith.constant 3 : i32
    %642 = tpu.dynamic_rotate %632 by %c3_i32_185 dim 1 : vector<12x128xf32>, i32 -> vector<12x128xf32>
    %643 = vector.broadcast %496 : vector<1x128xf32> to vector<12x128xf32>
    %644 = arith.mulf %642, %643 : vector<12x128xf32>
    %c1_i32_186 = arith.constant 1 : i32
    %645 = tpu.dynamic_rotate %632 by %c1_i32_186 dim 1 : vector<12x128xf32>, i32 -> vector<12x128xf32>
    %646 = vector.broadcast %501 : vector<1x128xf32> to vector<12x128xf32>
    %647 = arith.mulf %645, %646 : vector<12x128xf32>
    %648 = vector.broadcast %503 : vector<1x128xf32> to vector<12x128xf32>
    %649 = arith.mulf %632, %648 : vector<12x128xf32>
    %c127_i32_187 = arith.constant 127 : i32
    %650 = tpu.dynamic_rotate %632 by %c127_i32_187 dim 1 : vector<12x128xf32>, i32 -> vector<12x128xf32>
    %651 = vector.broadcast %508 : vector<1x128xf32> to vector<12x128xf32>
    %652 = arith.mulf %650, %651 : vector<12x128xf32>
    %c125_i32_188 = arith.constant 125 : i32
    %653 = tpu.dynamic_rotate %632 by %c125_i32_188 dim 1 : vector<12x128xf32>, i32 -> vector<12x128xf32>
    %654 = vector.broadcast %516 : vector<1x128xf32> to vector<12x128xf32>
    %655 = arith.mulf %653, %654 : vector<12x128xf32>
    %c124_i32_189 = arith.constant 124 : i32
    %656 = tpu.dynamic_rotate %632 by %c124_i32_189 dim 1 : vector<12x128xf32>, i32 -> vector<12x128xf32>
    %657 = vector.broadcast %521 : vector<1x128xf32> to vector<12x128xf32>
    %658 = arith.mulf %656, %657 : vector<12x128xf32>
    %c123_i32_190 = arith.constant 123 : i32
    %659 = tpu.dynamic_rotate %632 by %c123_i32_190 dim 1 : vector<12x128xf32>, i32 -> vector<12x128xf32>
    %660 = vector.broadcast %529 : vector<1x128xf32> to vector<12x128xf32>
    %661 = arith.mulf %659, %660 : vector<12x128xf32>
    %662 = tpu.concatenate %638, %641, %644, %647, %649, %652, %655, %658, %661 in 0 : vector<12x128xf32>, vector<12x128xf32>, vector<12x128xf32>, vector<12x128xf32>, vector<12x128xf32>, vector<12x128xf32>, vector<12x128xf32>, vector<12x128xf32>, vector<12x128xf32> -> vector<108x128xf32>
    %cst_191 = arith.constant dense<0.000000e+00> : vector<10x128xf32>
    %663 = tpu.matmul %633, %662, %cst_191 {dimension_numbers = #tpu.dot_dimension_numbers<[1], [0], [0], [1], [0, 0, 1, 1], [], []>} : vector<10x108xf32>, vector<108x128xf32>, vector<10x128xf32> -> vector<10x128xf32>
    %664 = arith.mulf %663, %663 : vector<10x128xf32>
    %665 = tpu.concatenate %663, %664 in 0 : vector<10x128xf32>, vector<10x128xf32> -> vector<20x128xf32>
    %cst_192 = arith.constant dense<0.000000e+00> : vector<20xf32>
    %666 = vector.multi_reduction <add>, %665, %cst_192 [1] : vector<20x128xf32> to vector<20xf32>
    %667 = vector.shape_cast %666 : vector<20xf32> to vector<20x1xf32>
    %cst_193 = arith.constant 3.125000e-02 : f32
    %668 = vector.broadcast %cst_193 : f32 to vector<20x1xf32>
    %669 = arith.mulf %667, %668 : vector<20x1xf32>
    %670 = vector.extract_strided_slice %669 {offsets = [0, 0], sizes = [10, 1], strides = [1, 1]} : vector<20x1xf32> to vector<10x1xf32>
    %671 = vector.extract_strided_slice %669 {offsets = [10, 0], sizes = [10, 1], strides = [1, 1]} : vector<20x1xf32> to vector<10x1xf32>
    %672 = arith.mulf %670, %670 : vector<10x1xf32>
    %673 = arith.subf %671, %672 : vector<10x1xf32>
    %cst_194 = arith.constant 9.99999974E-6 : f32
    %674 = vector.broadcast %cst_194 : f32 to vector<10x1xf32>
    %675 = arith.addf %673, %674 : vector<10x1xf32>
    %676 = math.rsqrt %675 : vector<10x1xf32>
    %677 = arith.mulf %634, %676 : vector<10x1xf32>
    %678 = arith.mulf %670, %677 : vector<10x1xf32>
    %679 = arith.subf %635, %678 : vector<10x1xf32>
    %680 = vector.broadcast %677 : vector<10x1xf32> to vector<10x128xf32>
    %681 = arith.mulf %663, %680 : vector<10x128xf32>
    %682 = vector.broadcast %679 : vector<10x1xf32> to vector<10x128xf32>
    %683 = arith.addf %681, %682 : vector<10x128xf32>
    %cst_195 = arith.constant 0.000000e+00 : f32
    %684 = vector.broadcast %cst_195 : f32 to vector<10x128xf32>
    %685 = arith.maximumf %683, %684 : vector<10x128xf32>
    %686 = tpu.iota {dimensions = array<i32: 0>} : vector<128x128xi32>
    %687 = tpu.iota {dimensions = array<i32: 1>} : vector<128x128xi32>
    %c4_i32_196 = arith.constant 4 : i32
    %688 = vector.broadcast %c4_i32_196 : i32 to vector<128x128xi32>
    %689 = arith.shrsi %686, %688 : vector<128x128xi32>
    %c32_i32_197 = arith.constant 32 : i32
    %690 = vector.broadcast %c32_i32_197 : i32 to vector<128x128xi32>
    %691 = arith.cmpi slt, %686, %690 : vector<128x128xi32>
    %692 = arith.cmpi eq, %687, %689 : vector<128x128xi32>
    %693 = arith.andi %691, %692 : vector<128x128xi1>
    %694 = arith.extui %693 : vector<128x128xi1> to vector<128x128xi32>
    %695 = arith.sitofp %694 : vector<128x128xi32> to vector<128x128xf32>
    %cst_198 = arith.constant 6.250000e-02 : f32
    %696 = vector.broadcast %cst_198 : f32 to vector<128x128xf32>
    %697 = arith.mulf %695, %696 : vector<128x128xf32>
    %cst_199 = arith.constant dense<0.000000e+00> : vector<10x128xf32>
    %698 = tpu.matmul %685, %697, %cst_199 {dimension_numbers = #tpu.dot_dimension_numbers<[1], [0], [0], [1], [0, 0, 1, 1], [], []>} : vector<10x128xf32>, vector<128x128xf32>, vector<10x128xf32> -> vector<10x128xf32>
    %cst_200 = arith.constant dense<0xFF800000> : vector<128xf32>
    %699 = vector.multi_reduction <maximumf>, %698, %cst_200 [0] : vector<10x128xf32> to vector<128xf32>
    %700 = vector.shape_cast %699 : vector<128xf32> to vector<1x128xf32>
    %701 = vector.broadcast %700 : vector<1x128xf32> to vector<10x128xf32>
    %702 = arith.subf %698, %701 : vector<10x128xf32>
    %703 = math.exp %702 : vector<10x128xf32>
    %cst_201 = arith.constant dense<0.000000e+00> : vector<128xf32>
    %704 = vector.multi_reduction <add>, %703, %cst_201 [0] : vector<10x128xf32> to vector<128xf32>
    %705 = vector.shape_cast %704 : vector<128xf32> to vector<1x128xf32>
    %706 = math.log %705 : vector<1x128xf32>
    %707 = vector.broadcast %706 : vector<1x128xf32> to vector<10x128xf32>
    %708 = arith.subf %702, %707 : vector<10x128xf32>
    %c0_202 = arith.constant 0 : index
    %c0_203 = arith.constant 0 : index
    %709 = vector.load %arg2[%c0_202, %c0_203] : memref<10x128xf32, #tpu.memory_space<vmem>>, vector<10x128xf32>
    tpu.vector_store %arg2[%c0_202, %c0_203], %708 {strides = array<i32>} : memref<10x128xf32, #tpu.memory_space<vmem>>, vector<10x128xf32>,
    return
  }
}

</mosaic_0001>

<llo_original>
// kernel: model_forward.1
$region0: #{model_forward.1}
  #allocation0 [shape = 'u32[]', space=smem, size = 0x4, offset = 0x4, fixed_abs, tag = 'smem constant byte address 0x4 - core index']
  #allocation1 [shape = 'u32[144,128]{1,0:T(1,128)}', space=vmem, size = 0x12000, scoped, tag = 'internal scratch']
  %s0 = inlined_call_operand.vmem [shape: f32[1,512], index: 0, kind: input, shape index: {}]
  %s1 = inlined_call_operand.vmem [shape: f32[128,128], index: 1, kind: input, shape index: {}]
  %s2 = inlined_call_operand.vmem [shape: f32[10,128], index: 2, kind: output, shape index: {}]
  %s3 = sld [smem:[#allocation0]]
  $region18: #{model_forward.1} parent=0
    _
  %s5 = ssub.s32 1, %s3
  %s6 = scalar_select 0, %s5, %s3
  // Predicated region
  $region2: #{model_forward.1} parent=0 // pred_check
    _
  $region3: #{model_forward.1} parent=0 // pred_check_branch
    %8 = sbr.rel (0) target = $region5
  $region4: #{model_forward.1} parent=0 // pred_region
    _
  $region5: #{model_forward.1} parent=0 // pred_fallthru
    _
  // Predicated region
  $region6: #{model_forward.1} parent=0 // pred_check
    _
  $region7: #{model_forward.1} parent=0 // pred_check_branch
    %10 = sbr.rel (0) target = $region9
  $region8: #{model_forward.1} parent=0 // pred_region
    _
  $region9: #{model_forward.1} parent=0 // pred_fallthru
    _
  %v11 = vld [vmem:[%s0] sm:$0xf]
  %v12 = vld [vmem:[%s1] sm:$0xff]
  %v13 = vlaneseq
  %v14 = vand.u32 %v13, 127
  %v15 = vadd.s32 %v14, 128
  %v16 = vadd.s32 %v14, 256
  %v17 = vadd.s32 %v14, 384
  %v18 = vand.u32 %v14, 255
  %v19 = vand.u32 %v15, 255
  %v20 = vand.u32 %v16, 255
  %v21 = vand.u32 %v17, 255
  %v22 = vshra.s32 %v18, 4
  %v23 = vshra.s32 %v19, 4
  %v24 = vshra.s32 %v20, 4
  %v25 = vshra.s32 %v21, 4
  %v26 = vand.u32 %v18, 15
  %v27 = vand.u32 %v19, 15
  %v28 = vand.u32 %v20, 15
  %v29 = vand.u32 %v21, 15
  %vm30 = vcmp.lt.s32.totalorder %v14, 512
  %vm31 = vcmp.lt.s32.totalorder %v15, 512
  %vm32 = vcmp.lt.s32.totalorder %v16, 512
  %vm33 = vcmp.lt.s32.totalorder %v17, 512
  %vm34 = vcmp.ge.s32.totalorder %v22, 1
  %vm35 = vcmp.ge.s32.totalorder %v23, 1
  %vm36 = vcmp.ge.s32.totalorder %v24, 1
  %vm37 = vcmp.ge.s32.totalorder %v25, 1
  %vm38 = vmand %vm30, %vm34
  %vm39 = vmand %vm31, %vm35
  %vm40 = vmand %vm32, %vm36
  %vm41 = vmand %vm33, %vm37
  %vm42 = vcmp.ge.s32.totalorder %v26, 1
  %vm43 = vcmp.ge.s32.totalorder %v27, 1
  %vm44 = vcmp.ge.s32.totalorder %v28, 1
  %vm45 = vcmp.ge.s32.totalorder %v29, 1
  %vm46 = vmand %vm38, %vm42
  %vm47 = vmand %vm39, %vm43
  %vm48 = vmand %vm40, %vm44
  %vm49 = vmand %vm41, %vm45
  %v50 = vsel %vm46, 1, 0
  %v51 = vsel %vm47, 1, 0
  %v52 = vsel %vm48, 1, 0
  %v53 = vsel %vm49, 1, 0
  %v54 = vcvt.s32.f32 %v50
  %v55 = vcvt.s32.f32 %v51
  %v56 = vcvt.s32.f32 %v52
  %v57 = vcvt.s32.f32 %v53
  %v58 = vsel %vm38, 1, 0
  %v59 = vsel %vm39, 1, 0
  %v60 = vsel %vm40, 1, 0
  %v61 = vsel %vm41, 1, 0
  %v62 = vcvt.s32.f32 %v58
  %v63 = vcvt.s32.f32 %v59
  %v64 = vcvt.s32.f32 %v60
  %v65 = vcvt.s32.f32 %v61
  %vm66 = vcmp.lt.s32.totalorder %v26, 15
  %vm67 = vcmp.lt.s32.totalorder %v27, 15
  %vm68 = vcmp.lt.s32.totalorder %v28, 15
  %vm69 = vcmp.lt.s32.totalorder %v29, 15
  %vm70 = vmand %vm38, %vm66
  %vm71 = vmand %vm39, %vm67
  %vm72 = vmand %vm40, %vm68
  %vm73 = vmand %vm41, %vm69
  %v74 = vsel %vm70, 1, 0
  %v75 = vsel %vm71, 1, 0
  %v76 = vsel %vm72, 1, 0
  %v77 = vsel %vm73, 1, 0
  %v78 = vcvt.s32.f32 %v74
  %v79 = vcvt.s32.f32 %v75
  %v80 = vcvt.s32.f32 %v76
  %v81 = vcvt.s32.f32 %v77
  %vm82 = vmand %vm30, %vm42
  %vm83 = vmand %vm31, %vm43
  %vm84 = vmand %vm32, %vm44
  %vm85 = vmand %vm33, %vm45
  %v86 = vsel %vm82, 1, 0
  %v87 = vsel %vm83, 1, 0
  %v88 = vsel %vm84, 1, 0
  %v89 = vsel %vm85, 1, 0
  %v90 = vcvt.s32.f32 %v86
  %v91 = vcvt.s32.f32 %v87
  %v92 = vcvt.s32.f32 %v88
  %v93 = vcvt.s32.f32 %v89
  %v94 = vsel %vm30, 1, 0
  %v95 = vsel %vm31, 1, 0
  %v96 = vsel %vm32, 1, 0
  %v97 = vsel %vm33, 1, 0
  %v98 = vcvt.s32.f32 %v94
  %v99 = vcvt.s32.f32 %v95
  %v100 = vcvt.s32.f32 %v96
  %v101 = vcvt.s32.f32 %v97
  %vm102 = vmand %vm30, %vm66
  %vm103 = vmand %vm31, %vm67
  %vm104 = vmand %vm32, %vm68
  %vm105 = vmand %vm33, %vm69
  %v106 = vsel %vm102, 1, 0
  %v107 = vsel %vm103, 1, 0
  %v108 = vsel %vm104, 1, 0
  %v109 = vsel %vm105, 1, 0
  %v110 = vcvt.s32.f32 %v106
  %v111 = vcvt.s32.f32 %v107
  %v112 = vcvt.s32.f32 %v108
  %v113 = vcvt.s32.f32 %v109
  %vm114 = vcmp.lt.s32.totalorder %v22, 15
  %vm115 = vcmp.lt.s32.totalorder %v23, 15
  %vm116 = vcmp.lt.s32.totalorder %v24, 15
  %vm117 = vcmp.lt.s32.totalorder %v25, 15
  %vm118 = vmand %vm30, %vm114
  %vm119 = vmand %vm31, %vm115
  %vm120 = vmand %vm32, %vm116
  %vm121 = vmand %vm33, %vm117
  %vm122 = vmand %vm118, %vm42
  %vm123 = vmand %vm119, %vm43
  %vm124 = vmand %vm120, %vm44
  %vm125 = vmand %vm121, %vm45
  %v126 = vsel %vm122, 1, 0
  %v127 = vsel %vm123, 1, 0
  %v128 = vsel %vm124, 1, 0
  %v129 = vsel %vm125, 1, 0
  %v130 = vcvt.s32.f32 %v126
  %v131 = vcvt.s32.f32 %v127
  %v132 = vcvt.s32.f32 %v128
  %v133 = vcvt.s32.f32 %v129
  %v134 = vsel %vm118, 1, 0
  %v135 = vsel %vm119, 1, 0
  %v136 = vsel %vm120, 1, 0
  %v137 = vsel %vm121, 1, 0
  %v138 = vcvt.s32.f32 %v134
  %v139 = vcvt.s32.f32 %v135
  %v140 = vcvt.s32.f32 %v136
  %v141 = vcvt.s32.f32 %v137
  %vm142 = vmand %vm118, %vm66
  %vm143 = vmand %vm119, %vm67
  %vm144 = vmand %vm120, %vm68
  %vm145 = vmand %vm121, %vm69
  %v146 = vsel %vm142, 1, 0
  %v147 = vsel %vm143, 1, 0
  %v148 = vsel %vm144, 1, 0
  %v149 = vsel %vm145, 1, 0
  %v150 = vcvt.s32.f32 %v146
  %v151 = vcvt.s32.f32 %v147
  %v152 = vcvt.s32.f32 %v148
  %v153 = vcvt.s32.f32 %v149
  %v155 = vlaneseq
  %v156 = vshrl.u32 %v155, 7
  %v157 = vsub.s32 0, %v156
  %v158 = vrot.slane %v11, %v157
  %v159 = vlaneseq
  %v160 = vshrl.u32 %v159, 7
  %v161 = vsub.s32 1, %v160
  %v162 = vrot.slane %v11, %v161
  %v163 = vlaneseq
  %v164 = vshrl.u32 %v163, 7
  %v165 = vsub.s32 2, %v164
  %v166 = vrot.slane %v11, %v165
  %v167 = vlaneseq
  %v168 = vshrl.u32 %v167, 7
  %v169 = vsub.s32 3, %v168
  %v170 = vrot.slane %v11, %v169
  %175 = vrot.lane.b32.xlu0 %v158, 17
  %v176 = vpop.permute.xlu0 %175
  %177 = vrot.lane.b32.xlu0 %v162, 17
  %v178 = vpop.permute.xlu0 %177
  %179 = vrot.lane.b32.xlu0 %v166, 17
  %v180 = vpop.permute.xlu0 %179
  %181 = vrot.lane.b32.xlu0 %v170, 17
  %v182 = vpop.permute.xlu0 %181
  %vm183 = vcmp.lt.s32.totalorder %v14, 17
  %v184 = vsel %vm183, %v180, %v182
  %v185 = vsel %vm183, %v178, %v180
  %v186 = vsel %vm183, %v176, %v178
  %v187 = vsel %vm183, %v182, %v176
  %v188 = vmul.f32 %v187, %v54
  %v189 = vmul.f32 %v186, %v55
  %v190 = vmul.f32 %v185, %v56
  %v191 = vmul.f32 %v184, %v57
  %192 = vrot.lane.b32.xlu0 %v158, 16
  %v193 = vpop.permute.xlu0 %192
  %194 = vrot.lane.b32.xlu0 %v162, 16
  %v195 = vpop.permute.xlu0 %194
  %196 = vrot.lane.b32.xlu0 %v166, 16
  %v197 = vpop.permute.xlu0 %196
  %198 = vrot.lane.b32.xlu0 %v170, 16
  %v199 = vpop.permute.xlu0 %198
  %vm200 = vcmp.lt.s32.totalorder %v14, 16
  %v201 = vsel %vm200, %v197, %v199
  %v202 = vsel %vm200, %v195, %v197
  %v203 = vsel %vm200, %v193, %v195
  %v204 = vsel %vm200, %v199, %v193
  %v205 = vmul.f32 %v204, %v62
  %v206 = vmul.f32 %v203, %v63
  %v207 = vmul.f32 %v202, %v64
  %v208 = vmul.f32 %v201, %v65
  %209 = vrot.lane.b32.xlu0 %v158, 15
  %v210 = vpop.permute.xlu0 %209
  %211 = vrot.lane.b32.xlu0 %v162, 15
  %v212 = vpop.permute.xlu0 %211
  %213 = vrot.lane.b32.xlu0 %v166, 15
  %v214 = vpop.permute.xlu0 %213
  %215 = vrot.lane.b32.xlu0 %v170, 15
  %v216 = vpop.permute.xlu0 %215
  %vm217 = vcmp.lt.s32.totalorder %v14, 15
  %v218 = vsel %vm217, %v214, %v216
  %v219 = vsel %vm217, %v212, %v214
  %v220 = vsel %vm217, %v210, %v212
  %v221 = vsel %vm217, %v216, %v210
  %v222 = vmul.f32 %v221, %v78
  %v223 = vmul.f32 %v220, %v79
  %v224 = vmul.f32 %v219, %v80
  %v225 = vmul.f32 %v218, %v81
  %226 = vrot.lane.b32.xlu0 %v158, 1
  %v227 = vpop.permute.xlu0 %226
  %228 = vrot.lane.b32.xlu0 %v162, 1
  %v229 = vpop.permute.xlu0 %228
  %230 = vrot.lane.b32.xlu0 %v166, 1
  %v231 = vpop.permute.xlu0 %230
  %232 = vrot.lane.b32.xlu0 %v170, 1
  %v233 = vpop.permute.xlu0 %232
  %vm234 = vcmp.lt.s32.totalorder %v14, 1
  %v235 = vsel %vm234, %v231, %v233
  %v236 = vsel %vm234, %v229, %v231
  %v237 = vsel %vm234, %v227, %v229
  %v238 = vsel %vm234, %v233, %v227
  %v239 = vmul.f32 %v238, %v90
  %v240 = vmul.f32 %v237, %v91
  %v241 = vmul.f32 %v236, %v92
  %v242 = vmul.f32 %v235, %v93
  %v247 = vcombine.low %v98, %v99
  %v248 = vcombine.low %v100, %v101
  %v250 = vunpack.c.l.s4 1966171168
  %v251 = vunpack.c.0.s8 %v250
  %v252 = vlaneseq
  %v253 = vshrl.u32 %v252, 7
  %v254 = vsub.s32 %v251, %v253
  %v255 = vrot.slane %v247, %v254
  %v257 = vunpack.c.l.s4 1966171168
  %v258 = vunpack.c.0.s8 %v257
  %v259 = vlaneseq
  %v260 = vshrl.u32 %v259, 7
  %v261 = vsub.s32 %v258, %v260
  %v262 = vrot.slane %v248, %v261
  %v263 = vcombine.low %v255, %v262
  %v265 = vunpack.c.l.s4 1966171168
  %v266 = vunpack.c.0.s8 %v265
  %v267 = vlaneseq
  %v268 = vshrl.u32 %v267, 7
  %v269 = vsub.s32 %v266, %v268
  %v270 = vrot.slane %v263, %v269
  %v272 = vmul.f32 %v11, %v270
  %273 = vrot.lane.b32.xlu0 %v158, 127
  %v274 = vpop.permute.xlu0 %273
  %275 = vrot.lane.b32.xlu0 %v162, 127
  %v276 = vpop.permute.xlu0 %275
  %277 = vrot.lane.b32.xlu0 %v166, 127
  %v278 = vpop.permute.xlu0 %277
  %279 = vrot.lane.b32.xlu0 %v170, 127
  %v280 = vpop.permute.xlu0 %279
  %vm281 = vcmp.lt.s32.totalorder %v14, 127
  %v282 = vsel %vm281, %v278, %v280
  %v283 = vsel %vm281, %v276, %v278
  %v284 = vsel %vm281, %v274, %v276
  %v285 = vsel %vm281, %v280, %v274
  %v286 = vmul.f32 %v284, %v110
  %v287 = vmul.f32 %v283, %v111
  %v288 = vmul.f32 %v282, %v112
  %v289 = vmul.f32 %v285, %v113
  %290 = vrot.lane.b32.xlu0 %v158, 113
  %v291 = vpop.permute.xlu0 %290
  %292 = vrot.lane.b32.xlu0 %v162, 113
  %v293 = vpop.permute.xlu0 %292
  %294 = vrot.lane.b32.xlu0 %v166, 113
  %v295 = vpop.permute.xlu0 %294
  %296 = vrot.lane.b32.xlu0 %v170, 113
  %v297 = vpop.permute.xlu0 %296
  %vm298 = vcmp.lt.s32.totalorder %v14, 113
  %v299 = vsel %vm298, %v295, %v297
  %v300 = vsel %vm298, %v293, %v295
  %v301 = vsel %vm298, %v291, %v293
  %v302 = vsel %vm298, %v297, %v291
  %v303 = vmul.f32 %v301, %v130
  %v304 = vmul.f32 %v300, %v131
  %v305 = vmul.f32 %v299, %v132
  %v306 = vmul.f32 %v302, %v133
  %307 = vrot.lane.b32.xlu0 %v158, 112
  %v308 = vpop.permute.xlu0 %307
  %309 = vrot.lane.b32.xlu0 %v162, 112
  %v310 = vpop.permute.xlu0 %309
  %311 = vrot.lane.b32.xlu0 %v166, 112
  %v312 = vpop.permute.xlu0 %311
  %313 = vrot.lane.b32.xlu0 %v170, 112
  %v314 = vpop.permute.xlu0 %313
  %vm315 = vcmp.lt.s32.totalorder %v14, 112
  %v316 = vsel %vm315, %v312, %v314
  %v317 = vsel %vm315, %v310, %v312
  %v318 = vsel %vm315, %v308, %v310
  %v319 = vsel %vm315, %v314, %v308
  %v320 = vmul.f32 %v318, %v138
  %v321 = vmul.f32 %v317, %v139
  %v322 = vmul.f32 %v316, %v140
  %v323 = vmul.f32 %v319, %v141
  %324 = vrot.lane.b32.xlu0 %v158, 111
  %v325 = vpop.permute.xlu0 %324
  %326 = vrot.lane.b32.xlu0 %v162, 111
  %v327 = vpop.permute.xlu0 %326
  %328 = vrot.lane.b32.xlu0 %v166, 111
  %v329 = vpop.permute.xlu0 %328
  %330 = vrot.lane.b32.xlu0 %v170, 111
  %v331 = vpop.permute.xlu0 %330
  %vm332 = vcmp.lt.s32.totalorder %v14, 111
  %v333 = vsel %vm332, %v329, %v331
  %v334 = vsel %vm332, %v327, %v329
  %v335 = vsel %vm332, %v325, %v327
  %v336 = vsel %vm332, %v331, %v325
  %v337 = vmul.f32 %v335, %v150
  %v338 = vmul.f32 %v334, %v151
  %v339 = vmul.f32 %v333, %v152
  %v340 = vmul.f32 %v336, %v153
  %v345 = vrot.slane %v205, 7
  %v346 = vrot.slane %v206, 7
  %v347 = vrot.slane %v207, 7
  %v348 = vrot.slane %v208, 7
  %v357 = vrot.slane %v222, 6
  %v358 = vrot.slane %v223, 6
  %v359 = vrot.slane %v224, 6
  %v360 = vrot.slane %v225, 6
  %v369 = vrot.slane %v239, 5
  %v370 = vrot.slane %v240, 5
  %v371 = vrot.slane %v241, 5
  %v372 = vrot.slane %v242, 5
  %v378 = vlaneseq
  %v379 = vshrl.u32 %v378, 7
  %v380 = vsub.s32 0, %v379
  %v381 = vrot.slane %v272, %v380
  %v382 = vlaneseq
  %v383 = vshrl.u32 %v382, 7
  %v384 = vsub.s32 1, %v383
  %v385 = vrot.slane %v272, %v384
  %v386 = vlaneseq
  %v387 = vshrl.u32 %v386, 7
  %v388 = vsub.s32 2, %v387
  %v389 = vrot.slane %v272, %v388
  %v390 = vlaneseq
  %v391 = vshrl.u32 %v390, 7
  %v392 = vsub.s32 3, %v391
  %v393 = vrot.slane %v272, %v392
  %v402 = vrot.slane %v286, 3
  %v403 = vrot.slane %v287, 3
  %v404 = vrot.slane %v288, 3
  %v405 = vrot.slane %v289, 3
  %v414 = vrot.slane %v303, 2
  %v415 = vrot.slane %v304, 2
  %v416 = vrot.slane %v305, 2
  %v417 = vrot.slane %v306, 2
  %v426 = vrot.slane %v320, 1
  %v427 = vrot.slane %v321, 1
  %v428 = vrot.slane %v322, 1
  %v429 = vrot.slane %v323, 1
  %vm434 = vcmask 1040384
  %v435 = vsel %vm434, %v188, %v345
  %v436 = vsel %vm434, %v189, %v346
  %v437 = vsel %vm434, %v190, %v347
  %v438 = vsel %vm434, %v191, %v348
  %vm439 = vcmask 1041408
  %v440 = vsel %vm439, %v435, %v357
  %v441 = vsel %vm439, %v436, %v358
  %v442 = vsel %vm439, %v437, %v359
  %v443 = vsel %vm439, %v438, %v360
  %vm444 = vcmask 1042432
  %v445 = vsel %vm444, %v440, %v369
  %v446 = vsel %vm444, %v441, %v370
  %v447 = vsel %vm444, %v442, %v371
  %v448 = vsel %vm444, %v443, %v372
  %vm449 = vcmask 1043456
  %v450 = vsel %vm449, %v445, %v381
  %v451 = vsel %vm449, %v446, %v385
  %v452 = vsel %vm449, %v447, %v389
  %v453 = vsel %vm449, %v448, %v393
  %vm454 = vcmask 1044480
  %v455 = vsel %vm454, %v450, %v402
  %v456 = vsel %vm454, %v451, %v403
  %v457 = vsel %vm454, %v452, %v404
  %v458 = vsel %vm454, %v453, %v405
  %vm459 = vcmask 1045504
  %v460 = vsel %vm459, %v455, %v414
  %v461 = vsel %vm459, %v456, %v415
  %v462 = vsel %vm459, %v457, %v416
  %v463 = vsel %vm459, %v458, %v417
  %vm464 = vcmask 1046528
  %v465 = vsel %vm464, %v460, %v426
  %v466 = vsel %vm464, %v461, %v427
  %v467 = vsel %vm464, %v462, %v428
  %v468 = vsel %vm464, %v463, %v429
  %vm469 = vcmask 72704
  %v471 = vsel %vm469, %v12, 0
  %v474 = vsel %vm434, %v337, 0
  %v477 = vsel %vm434, %v338, 0
  %v480 = vsel %vm434, %v339, 0
  %v483 = vsel %vm434, %v340, 0
  %485 = vmatprep.subr.mxu0 %v466
  %486 = vmatpush1.msra.mxu0 %v465
  %487 = vmatprep.subr.mxu0 %v477
  %488 = vmatpush1.msra.mxu0 %v474
  %489 = vmatprep.subr.mxu0 0.0
  %490 = vmatpush1.msra.mxu0 0.0
  %491 = vmatprep.subr.mxu0 0.0
  %492 = vmatpush1.msra.mxu0 0.0
  %493 = vmatprep.subr.mxu0 0.0
  %494 = vmatpush1.msra.mxu0 0.0
  %495 = vmatprep.subr.mxu0 0.0
  %496 = vmatpush1.msra.mxu0 0.0
  %497 = vmatprep.subr.mxu0 0.0
  %498 = vmatpush1.msra.mxu0 0.0
  %499 = vmatprep.subr.mxu0 0.0
  %500 = vmatpush1.msra.mxu0 0.0
  %501 = vmatprep.subr.mxu0 0.0
  %502 = vmatpush1.msra.mxu0 0.0
  %503 = vmatprep.subr.mxu0 0.0
  %504 = vmatpush1.msra.mxu0 0.0
  %505 = vmatprep.subr.mxu0 0.0
  %506 = vmatpush1.msra.mxu0 0.0
  %507 = vmatprep.subr.mxu0 0.0
  %508 = vmatpush1.msra.mxu0 0.0
  %509 = vmatprep.subr.mxu0 0.0
  %510 = vmatpush1.msra.mxu0 0.0
  %511 = vmatprep.subr.mxu0 0.0
  %512 = vmatpush1.msra.mxu0 0.0
  %513 = vmatprep.subr.mxu0 0.0
  %514 = vmatpush1.msra.mxu0 0.0
  %515 = vmatprep.subr.mxu0 0.0
  %516 = vmatpush1.msra.mxu0 0.0
  %517 = vmatprep.subr.mxu0 0.0
  %518 = vmatpush1.msra.mxu0 0.0
  %519 = vmatprep.subr.mxu0 0.0
  %520 = vmatpush1.msra.mxu0 0.0
  %521 = vmatprep.subr.mxu0 0.0
  %522 = vmatpush1.msra.mxu0 0.0
  %523 = vmatprep.subr.mxu0 0.0
  %524 = vmatpush1.msra.mxu0 0.0
  %525 = vmatprep.subr.mxu0 0.0
  %526 = vmatpush1.msra.mxu0 0.0
  %527 = vmatprep.subr.mxu0 0.0
  %528 = vmatpush1.msra.mxu0 0.0
  %529 = vmatprep.subr.mxu0 0.0
  %530 = vmatpush1.msra.mxu0 0.0
  %531 = vmatprep.subr.mxu0 0.0
  %532 = vmatpush1.msra.mxu0 0.0
  %533 = vmatprep.subr.mxu0 0.0
  %534 = vmatpush1.msra.mxu0 0.0
  %535 = vmatprep.subr.mxu0 0.0
  %536 = vmatpush1.msra.mxu0 0.0
  %537 = vmatprep.subr.mxu0 0.0
  %538 = vmatpush1.msra.mxu0 0.0
  %539 = vmatprep.subr.mxu0 0.0
  %540 = vmatpush1.msra.mxu0 0.0
  %541 = vmatprep.subr.mxu0 0.0
  %542 = vmatpush1.msra.mxu0 0.0
  %543 = vmatprep.subr.mxu0 0.0
  %544 = vmatpush1.msra.mxu0 0.0
  %545 = vmatprep.subr.mxu0 0.0
  %546 = vmatpush1.msra.mxu0 0.0
  %547 = vmatprep.subr.mxu0 0.0
  %548 = vmatpush1.msra.mxu0 0.0
  %549 = vmatprep.mubr.f32.mxu0 0.0
  %550 = vmatmul.mubr.f32.gmra.mrb[0].mxu0 %v471
  %v551 = vpop.f32.mrb[0].mxu0
  %v552 = vadd.f32 0.0, %v551
  %v553 = vpop.f32.mrb[0].mxu0
  %v554 = vadd.f32 0.0, %v553
  %555 = vdwg.mxu0
  %556 = vmatprep.subr.mxu0 %v468
  %557 = vmatpush1.msra.mxu0 %v467
  %558 = vmatprep.subr.mxu0 %v483
  %559 = vmatpush1.msra.mxu0 %v480
  %560 = vmatprep.subr.mxu0 0.0
  %561 = vmatpush1.msra.mxu0 0.0
  %562 = vmatprep.subr.mxu0 0.0
  %563 = vmatpush1.msra.mxu0 0.0
  %564 = vmatprep.subr.mxu0 0.0
  %565 = vmatpush1.msra.mxu0 0.0
  %566 = vmatprep.subr.mxu0 0.0
  %567 = vmatpush1.msra.mxu0 0.0
  %568 = vmatprep.subr.mxu0 0.0
  %569 = vmatpush1.msra.mxu0 0.0
  %570 = vmatprep.subr.mxu0 0.0
  %571 = vmatpush1.msra.mxu0 0.0
  %572 = vmatprep.subr.mxu0 0.0
  %573 = vmatpush1.msra.mxu0 0.0
  %574 = vmatprep.subr.mxu0 0.0
  %575 = vmatpush1.msra.mxu0 0.0
  %576 = vmatprep.subr.mxu0 0.0
  %577 = vmatpush1.msra.mxu0 0.0
  %578 = vmatprep.subr.mxu0 0.0
  %579 = vmatpush1.msra.mxu0 0.0
  %580 = vmatprep.subr.mxu0 0.0
  %581 = vmatpush1.msra.mxu0 0.0
  %582 = vmatprep.subr.mxu0 0.0
  %583 = vmatpush1.msra.mxu0 0.0
  %584 = vmatprep.subr.mxu0 0.0
  %585 = vmatpush1.msra.mxu0 0.0
  %586 = vmatprep.subr.mxu0 0.0
  %587 = vmatpush1.msra.mxu0 0.0
  %588 = vmatprep.subr.mxu0 0.0
  %589 = vmatpush1.msra.mxu0 0.0
  %590 = vmatprep.subr.mxu0 0.0
  %591 = vmatpush1.msra.mxu0 0.0
  %592 = vmatprep.subr.mxu0 0.0
  %593 = vmatpush1.msra.mxu0 0.0
  %594 = vmatprep.subr.mxu0 0.0
  %595 = vmatpush1.msra.mxu0 0.0
  %596 = vmatprep.subr.mxu0 0.0
  %597 = vmatpush1.msra.mxu0 0.0
  %598 = vmatprep.subr.mxu0 0.0
  %599 = vmatpush1.msra.mxu0 0.0
  %600 = vmatprep.subr.mxu0 0.0
  %601 = vmatpush1.msra.mxu0 0.0
  %602 = vmatprep.subr.mxu0 0.0
  %603 = vmatpush1.msra.mxu0 0.0
  %604 = vmatprep.subr.mxu0 0.0
  %605 = vmatpush1.msra.mxu0 0.0
  %606 = vmatprep.subr.mxu0 0.0
  %607 = vmatpush1.msra.mxu0 0.0
  %608 = vmatprep.subr.mxu0 0.0
  %609 = vmatpush1.msra.mxu0 0.0
  %610 = vmatprep.subr.mxu0 0.0
  %611 = vmatpush1.msra.mxu0 0.0
  %612 = vmatprep.subr.mxu0 0.0
  %613 = vmatpush1.msra.mxu0 0.0
  %614 = vmatprep.subr.mxu0 0.0
  %615 = vmatpush1.msra.mxu0 0.0
  %616 = vmatprep.subr.mxu0 0.0
  %617 = vmatpush1.msra.mxu0 0.0
  %618 = vmatprep.subr.mxu0 0.0
  %619 = vmatpush1.msra.mxu0 0.0
  %620 = vmatprep.mubr.f32.mxu0 0.0
  %621 = vmatmul.mubr.f32.gmra.mrb[0].mxu0 %v471
  %v622 = vpop.f32.mrb[0].mxu0
  %v623 = vadd.f32 0.0, %v622
  %v624 = vpop.f32.mrb[0].mxu0
  %v625 = vadd.f32 0.0, %v624
  %626 = vdwg.mxu0
  %v627 = vmul.f32 %v552, %v552
  %v628 = vmul.f32 %v554, %v554
  %v629 = vmul.f32 %v623, %v623
  %v630 = vmul.f32 %v625, %v625
  %v631 = vadd.f32 %v552, %v554
  %v632 = vadd.f32 %v631, %v623
  %v633 = vadd.f32 %v632, %v625
  %634 = vadd.xlane.f32.xlu0 %v633
  %v635 = vpop.xlane.xlu0 %634
  %v636 = vadd.f32 %v627, %v628
  %v637 = vadd.f32 %v636, %v629
  %v638 = vadd.f32 %v637, %v630
  %639 = vadd.xlane.f32.xlu0 %v638
  %v640 = vpop.xlane.xlu0 %639
  %v641 = vmul.f32 %v635, 0.001953125
  %v642 = vmul.f32 %v640, 0.001953125
  %v643 = vmul.f32 %v641, %v641
  %v644 = vsub.f32 %v642, %v643
  %v645 = vadd.f32 %v644, 1e-05
  %v646 = vrsqrt.pop %v645
  %v647 = vmul.f32 %v12, %v646
  %v648 = vmul.f32 %v641, %v647
  %650 = vrot.lane.b32.xlu0 %v648, 1
  %v651 = vpop.permute.xlu0 %650
  %v653 = vsub.f32 %v12, %v651
  %655 = vset.pattern.permute.xlu0 126
  %656 = vperm.xlu0 %655, %v647
  %v657 = vpop.permute.xlu0 %656
  %v659 = vmul.f32 %v552, %v657
  %v660 = vmul.f32 %v554, %v657
  %v661 = vmul.f32 %v623, %v657
  %v662 = vmul.f32 %v625, %v657
  %664 = vset.pattern.permute.xlu0 127
  %665 = vperm.xlu0 %664, %v653
  %v666 = vpop.permute.xlu0 %665
  %v668 = vadd.f32 %v659, %v666
  %v669 = vadd.f32 %v660, %v666
  %v670 = vadd.f32 %v661, %v666
  %v671 = vadd.f32 %v662, %v666
  %v672 = vmax.f32 %v668, 0.0
  %v673 = vmax.f32 %v669, 0.0
  %v674 = vmax.f32 %v670, 0.0
  %v675 = vmax.f32 %v671, 0.0
  %v676 = vld [vmem:[%s1 + $0x8] sm:$0xff]
  %677 = vrot.lane.b32.xlu0 %v672, 17
  %v678 = vpop.permute.xlu0 %677
  %679 = vrot.lane.b32.xlu0 %v673, 17
  %v680 = vpop.permute.xlu0 %679
  %681 = vrot.lane.b32.xlu0 %v674, 17
  %v682 = vpop.permute.xlu0 %681
  %683 = vrot.lane.b32.xlu0 %v675, 17
  %v684 = vpop.permute.xlu0 %683
  %v685 = vsel %vm183, %v682, %v684
  %v686 = vsel %vm183, %v680, %v682
  %v687 = vsel %vm183, %v678, %v680
  %v688 = vsel %vm183, %v684, %v678
  %v689 = vmul.f32 %v688, %v54
  %v690 = vmul.f32 %v687, %v55
  %v691 = vmul.f32 %v686, %v56
  %v692 = vmul.f32 %v685, %v57
  %693 = vrot.lane.b32.xlu0 %v672, 16
  %v694 = vpop.permute.xlu0 %693
  %695 = vrot.lane.b32.xlu0 %v673, 16
  %v696 = vpop.permute.xlu0 %695
  %697 = vrot.lane.b32.xlu0 %v674, 16
  %v698 = vpop.permute.xlu0 %697
  %699 = vrot.lane.b32.xlu0 %v675, 16
  %v700 = vpop.permute.xlu0 %699
  %v701 = vsel %vm200, %v698, %v700
  %v702 = vsel %vm200, %v696, %v698
  %v703 = vsel %vm200, %v694, %v696
  %v704 = vsel %vm200, %v700, %v694
  %v705 = vmul.f32 %v704, %v62
  %v706 = vmul.f32 %v703, %v63
  %v707 = vmul.f32 %v702, %v64
  %v708 = vmul.f32 %v701, %v65
  %709 = vrot.lane.b32.xlu0 %v672, 15
  %v710 = vpop.permute.xlu0 %709
  %711 = vrot.lane.b32.xlu0 %v673, 15
  %v712 = vpop.permute.xlu0 %711
  %713 = vrot.lane.b32.xlu0 %v674, 15
  %v714 = vpop.permute.xlu0 %713
  %715 = vrot.lane.b32.xlu0 %v675, 15
  %v716 = vpop.permute.xlu0 %715
  %v717 = vsel %vm217, %v714, %v716
  %v718 = vsel %vm217, %v712, %v714
  %v719 = vsel %vm217, %v710, %v712
  %v720 = vsel %vm217, %v716, %v710
  %v721 = vmul.f32 %v720, %v78
  %v722 = vmul.f32 %v719, %v79
  %v723 = vmul.f32 %v718, %v80
  %v724 = vmul.f32 %v717, %v81
  %725 = vrot.lane.b32.xlu0 %v672, 1
  %v726 = vpop.permute.xlu0 %725
  %727 = vrot.lane.b32.xlu0 %v673, 1
  %v728 = vpop.permute.xlu0 %727
  %729 = vrot.lane.b32.xlu0 %v674, 1
  %v730 = vpop.permute.xlu0 %729
  %731 = vrot.lane.b32.xlu0 %v675, 1
  %v732 = vpop.permute.xlu0 %731
  %v733 = vsel %vm234, %v730, %v732
  %v734 = vsel %vm234, %v728, %v730
  %v735 = vsel %vm234, %v726, %v728
  %v736 = vsel %vm234, %v732, %v726
  %v737 = vmul.f32 %v736, %v90
  %v738 = vmul.f32 %v735, %v91
  %v739 = vmul.f32 %v734, %v92
  %v740 = vmul.f32 %v733, %v93
  %v741 = vmul.f32 %v672, %v98
  %v742 = vmul.f32 %v673, %v99
  %v743 = vmul.f32 %v674, %v100
  %v744 = vmul.f32 %v675, %v101
  %745 = vrot.lane.b32.xlu0 %v672, 127
  %v746 = vpop.permute.xlu0 %745
  %747 = vrot.lane.b32.xlu0 %v673, 127
  %v748 = vpop.permute.xlu0 %747
  %749 = vrot.lane.b32.xlu0 %v674, 127
  %v750 = vpop.permute.xlu0 %749
  %751 = vrot.lane.b32.xlu0 %v675, 127
  %v752 = vpop.permute.xlu0 %751
  %v753 = vsel %vm281, %v750, %v752
  %v754 = vsel %vm281, %v748, %v750
  %v755 = vsel %vm281, %v746, %v748
  %v756 = vsel %vm281, %v752, %v746
  %v757 = vmul.f32 %v755, %v110
  %v758 = vmul.f32 %v754, %v111
  %v759 = vmul.f32 %v753, %v112
  %v760 = vmul.f32 %v756, %v113
  %761 = vrot.lane.b32.xlu0 %v672, 113
  %v762 = vpop.permute.xlu0 %761
  %763 = vrot.lane.b32.xlu0 %v673, 113
  %v764 = vpop.permute.xlu0 %763
  %765 = vrot.lane.b32.xlu0 %v674, 113
  %v766 = vpop.permute.xlu0 %765
  %767 = vrot.lane.b32.xlu0 %v675, 113
  %v768 = vpop.permute.xlu0 %767
  %v769 = vsel %vm298, %v766, %v768
  %v770 = vsel %vm298, %v764, %v766
  %v771 = vsel %vm298, %v762, %v764
  %v772 = vsel %vm298, %v768, %v762
  %v773 = vmul.f32 %v771, %v130
  %v774 = vmul.f32 %v770, %v131
  %v775 = vmul.f32 %v769, %v132
  %v776 = vmul.f32 %v772, %v133
  %777 = vrot.lane.b32.xlu0 %v672, 112
  %v778 = vpop.permute.xlu0 %777
  %779 = vrot.lane.b32.xlu0 %v673, 112
  %v780 = vpop.permute.xlu0 %779
  %781 = vrot.lane.b32.xlu0 %v674, 112
  %v782 = vpop.permute.xlu0 %781
  %783 = vrot.lane.b32.xlu0 %v675, 112
  %v784 = vpop.permute.xlu0 %783
  %v785 = vsel %vm315, %v782, %v784
  %v786 = vsel %vm315, %v780, %v782
  %v787 = vsel %vm315, %v778, %v780
  %v788 = vsel %vm315, %v784, %v778
  %v789 = vmul.f32 %v787, %v138
  %v790 = vmul.f32 %v786, %v139
  %v791 = vmul.f32 %v785, %v140
  %v792 = vmul.f32 %v788, %v141
  %793 = vrot.lane.b32.xlu0 %v672, 111
  %v794 = vpop.permute.xlu0 %793
  %795 = vrot.lane.b32.xlu0 %v673, 111
  %v796 = vpop.permute.xlu0 %795
  %797 = vrot.lane.b32.xlu0 %v674, 111
  %v798 = vpop.permute.xlu0 %797
  %799 = vrot.lane.b32.xlu0 %v675, 111
  %v800 = vpop.permute.xlu0 %799
  %v801 = vsel %vm332, %v798, %v800
  %v802 = vsel %vm332, %v796, %v798
  %v803 = vsel %vm332, %v794, %v796
  %v804 = vsel %vm332, %v800, %v794
  %v805 = vmul.f32 %v803, %v150
  %v806 = vmul.f32 %v802, %v151
  %v807 = vmul.f32 %v801, %v152
  %v808 = vmul.f32 %v804, %v153
  %vm809 = vcmask 588800
  %v811 = vsel %vm809, %v676, 0
  %813 = vmatprep.subr.mxu0 %v690
  %814 = vmatpush1.msra.mxu0 %v689
  %815 = vmatprep.subr.mxu0 %v706
  %816 = vmatpush1.msra.mxu0 %v705
  %817 = vmatprep.subr.mxu0 %v722
  %818 = vmatpush1.msra.mxu0 %v721
  %819 = vmatprep.subr.mxu0 %v738
  %820 = vmatpush1.msra.mxu0 %v737
  %821 = vmatprep.subr.mxu0 %v742
  %822 = vmatpush1.msra.mxu0 %v741
  %823 = vmatprep.subr.mxu0 %v758
  %824 = vmatpush1.msra.mxu0 %v757
  %825 = vmatprep.subr.mxu0 %v774
  %826 = vmatpush1.msra.mxu0 %v773
  %827 = vmatprep.subr.mxu0 %v790
  %828 = vmatpush1.msra.mxu0 %v789
  %829 = vmatprep.subr.mxu0 %v806
  %830 = vmatpush1.msra.mxu0 %v805
  %831 = vmatprep.subr.mxu0 0.0
  %832 = vmatpush1.msra.mxu0 0.0
  %833 = vmatprep.subr.mxu0 0.0
  %834 = vmatpush1.msra.mxu0 0.0
  %835 = vmatprep.subr.mxu0 0.0
  %836 = vmatpush1.msra.mxu0 0.0
  %837 = vmatprep.subr.mxu0 0.0
  %838 = vmatpush1.msra.mxu0 0.0
  %839 = vmatprep.subr.mxu0 0.0
  %840 = vmatpush1.msra.mxu0 0.0
  %841 = vmatprep.subr.mxu0 0.0
  %842 = vmatpush1.msra.mxu0 0.0
  %843 = vmatprep.subr.mxu0 0.0
  %844 = vmatpush1.msra.mxu0 0.0
  %845 = vmatprep.subr.mxu0 0.0
  %846 = vmatpush1.msra.mxu0 0.0
  %847 = vmatprep.subr.mxu0 0.0
  %848 = vmatpush1.msra.mxu0 0.0
  %849 = vmatprep.subr.mxu0 0.0
  %850 = vmatpush1.msra.mxu0 0.0
  %851 = vmatprep.subr.mxu0 0.0
  %852 = vmatpush1.msra.mxu0 0.0
  %853 = vmatprep.subr.mxu0 0.0
  %854 = vmatpush1.msra.mxu0 0.0
  %855 = vmatprep.subr.mxu0 0.0
  %856 = vmatpush1.msra.mxu0 0.0
  %857 = vmatprep.subr.mxu0 0.0
  %858 = vmatpush1.msra.mxu0 0.0
  %859 = vmatprep.subr.mxu0 0.0
  %860 = vmatpush1.msra.mxu0 0.0
  %861 = vmatprep.subr.mxu0 0.0
  %862 = vmatpush1.msra.mxu0 0.0
  %863 = vmatprep.subr.mxu0 0.0
  %864 = vmatpush1.msra.mxu0 0.0
  %865 = vmatprep.subr.mxu0 0.0
  %866 = vmatpush1.msra.mxu0 0.0
  %867 = vmatprep.subr.mxu0 0.0
  %868 = vmatpush1.msra.mxu0 0.0
  %869 = vmatprep.subr.mxu0 0.0
  %870 = vmatpush1.msra.mxu0 0.0
  %871 = vmatprep.subr.mxu0 0.0
  %872 = vmatpush1.msra.mxu0 0.0
  %873 = vmatprep.subr.mxu0 0.0
  %874 = vmatpush1.msra.mxu0 0.0
  %875 = vmatprep.subr.mxu0 0.0
  %876 = vmatpush1.msra.mxu0 0.0
  %877 = vmatprep.mubr.f32.mxu0 0.0
  %878 = vmatmul.mubr.f32.gmra.mrb[0].mxu0 %v811
  %v879 = vpop.f32.mrb[0].mxu0
  %v880 = vadd.f32 0.0, %v879
  %v881 = vpop.f32.mrb[0].mxu0
  %v882 = vadd.f32 0.0, %v881
  %883 = vdwg.mxu0
  %884 = vmatprep.subr.mxu0 %v692
  %885 = vmatpush1.msra.mxu0 %v691
  %886 = vmatprep.subr.mxu0 %v708
  %887 = vmatpush1.msra.mxu0 %v707
  %888 = vmatprep.subr.mxu0 %v724
  %889 = vmatpush1.msra.mxu0 %v723
  %890 = vmatprep.subr.mxu0 %v740
  %891 = vmatpush1.msra.mxu0 %v739
  %892 = vmatprep.subr.mxu0 %v744
  %893 = vmatpush1.msra.mxu0 %v743
  %894 = vmatprep.subr.mxu0 %v760
  %895 = vmatpush1.msra.mxu0 %v759
  %896 = vmatprep.subr.mxu0 %v776
  %897 = vmatpush1.msra.mxu0 %v775
  %898 = vmatprep.subr.mxu0 %v792
  %899 = vmatpush1.msra.mxu0 %v791
  %900 = vmatprep.subr.mxu0 %v808
  %901 = vmatpush1.msra.mxu0 %v807
  %902 = vmatprep.subr.mxu0 0.0
  %903 = vmatpush1.msra.mxu0 0.0
  %904 = vmatprep.subr.mxu0 0.0
  %905 = vmatpush1.msra.mxu0 0.0
  %906 = vmatprep.subr.mxu0 0.0
  %907 = vmatpush1.msra.mxu0 0.0
  %908 = vmatprep.subr.mxu0 0.0
  %909 = vmatpush1.msra.mxu0 0.0
  %910 = vmatprep.subr.mxu0 0.0
  %911 = vmatpush1.msra.mxu0 0.0
  %912 = vmatprep.subr.mxu0 0.0
  %913 = vmatpush1.msra.mxu0 0.0
  %914 = vmatprep.subr.mxu0 0.0
  %915 = vmatpush1.msra.mxu0 0.0
  %916 = vmatprep.subr.mxu0 0.0
  %917 = vmatpush1.msra.mxu0 0.0
  %918 = vmatprep.subr.mxu0 0.0
  %919 = vmatpush1.msra.mxu0 0.0
  %920 = vmatprep.subr.mxu0 0.0
  %921 = vmatpush1.msra.mxu0 0.0
  %922 = vmatprep.subr.mxu0 0.0
  %923 = vmatpush1.msra.mxu0 0.0
  %924 = vmatprep.subr.mxu0 0.0
  %925 = vmatpush1.msra.mxu0 0.0
  %926 = vmatprep.subr.mxu0 0.0
  %927 = vmatpush1.msra.mxu0 0.0
  %928 = vmatprep.subr.mxu0 0.0
  %929 = vmatpush1.msra.mxu0 0.0
  %930 = vmatprep.subr.mxu0 0.0
  %931 = vmatpush1.msra.mxu0 0.0
  %932 = vmatprep.subr.mxu0 0.0
  %933 = vmatpush1.msra.mxu0 0.0
  %934 = vmatprep.subr.mxu0 0.0
  %935 = vmatpush1.msra.mxu0 0.0
  %936 = vmatprep.subr.mxu0 0.0
  %937 = vmatpush1.msra.mxu0 0.0
  %938 = vmatprep.subr.mxu0 0.0
  %939 = vmatpush1.msra.mxu0 0.0
  %940 = vmatprep.subr.mxu0 0.0
  %941 = vmatpush1.msra.mxu0 0.0
  %942 = vmatprep.subr.mxu0 0.0
  %943 = vmatpush1.msra.mxu0 0.0
  %944 = vmatprep.subr.mxu0 0.0
  %945 = vmatpush1.msra.mxu0 0.0
  %946 = vmatprep.subr.mxu0 0.0
  %947 = vmatpush1.msra.mxu0 0.0
  %948 = vmatprep.mubr.f32.mxu0 0.0
  %949 = vmatmul.mubr.f32.gmra.mrb[0].mxu0 %v811
  %v950 = vpop.f32.mrb[0].mxu0
  %v951 = vadd.f32 0.0, %v950
  %v952 = vpop.f32.mrb[0].mxu0
  %v953 = vadd.f32 0.0, %v952
  %954 = vdwg.mxu0
  %v955 = vmul.f32 %v880, %v880
  %v956 = vmul.f32 %v882, %v882
  %v957 = vmul.f32 %v951, %v951
  %v958 = vmul.f32 %v953, %v953
  %v959 = vadd.f32 %v880, %v882
  %v960 = vadd.f32 %v959, %v951
  %v961 = vadd.f32 %v960, %v953
  %962 = vadd.xlane.f32.xlu0 %v961
  %v963 = vpop.xlane.xlu0 %962
  %v964 = vadd.f32 %v955, %v956
  %v965 = vadd.f32 %v964, %v957
  %v966 = vadd.f32 %v965, %v958
  %967 = vadd.xlane.f32.xlu0 %v966
  %v968 = vpop.xlane.xlu0 %967
  %v969 = vmul.f32 %v963, 0.001953125
  %v970 = vmul.f32 %v968, 0.001953125
  %v971 = vmul.f32 %v969, %v969
  %v972 = vsub.f32 %v970, %v971
  %v973 = vadd.f32 %v972, 1e-05
  %v974 = vrsqrt.pop %v973
  %v975 = vmul.f32 %v676, %v974
  %v976 = vmul.f32 %v969, %v975
  %978 = vrot.lane.b32.xlu0 %v976, 1
  %v979 = vpop.permute.xlu0 %978
  %v981 = vsub.f32 %v676, %v979
  %983 = vset.pattern.permute.xlu0 126
  %984 = vperm.xlu0 %983, %v975
  %v985 = vpop.permute.xlu0 %984
  %v987 = vmul.f32 %v880, %v985
  %v988 = vmul.f32 %v882, %v985
  %v989 = vmul.f32 %v951, %v985
  %v990 = vmul.f32 %v953, %v985
  %992 = vset.pattern.permute.xlu0 127
  %993 = vperm.xlu0 %992, %v981
  %v994 = vpop.permute.xlu0 %993
  %v996 = vadd.f32 %v987, %v994
  %v997 = vadd.f32 %v988, %v994
  %v998 = vadd.f32 %v989, %v994
  %v999 = vadd.f32 %v990, %v994
  %v1000 = vmax.f32 %v996, 0.0
  %v1001 = vmax.f32 %v997, 0.0
  %v1002 = vmax.f32 %v998, 0.0
  %v1003 = vmax.f32 %v999, 0.0
  %1004 = vrot.lane.b32.xlu0 %v1000, 127
  %v1005 = vpop.permute.xlu0 %1004
  %1006 = vrot.lane.b32.xlu0 %v1001, 127
  %v1007 = vpop.permute.xlu0 %1006
  %1008 = vrot.lane.b32.xlu0 %v1002, 127
  %v1009 = vpop.permute.xlu0 %1008
  %1010 = vrot.lane.b32.xlu0 %v1003, 127
  %v1011 = vpop.permute.xlu0 %1010
  %v1012 = vsel %vm281, %v1009, %v1011
  %v1013 = vsel %vm281, %v1007, %v1009
  %v1014 = vsel %vm281, %v1005, %v1007
  %v1015 = vsel %vm281, %v1011, %v1005
  %v1016 = vmax.f32 %v1000, %v1014
  %v1017 = vmax.f32 %v1001, %v1013
  %v1018 = vmax.f32 %v1002, %v1012
  %v1019 = vmax.f32 %v1003, %v1015
  %1020 = vrot.lane.b32.xlu0 %v1016, 112
  %v1021 = vpop.permute.xlu0 %1020
  %1022 = vrot.lane.b32.xlu0 %v1017, 112
  %v1023 = vpop.permute.xlu0 %1022
  %1024 = vrot.lane.b32.xlu0 %v1018, 112
  %v1025 = vpop.permute.xlu0 %1024
  %1026 = vrot.lane.b32.xlu0 %v1019, 112
  %v1027 = vpop.permute.xlu0 %1026
  %v1028 = vsel %vm315, %v1025, %v1027
  %v1029 = vsel %vm315, %v1023, %v1025
  %v1030 = vsel %vm315, %v1021, %v1023
  %v1031 = vsel %vm315, %v1027, %v1021
  %v1032 = vmax.f32 %v1016, %v1030
  %v1033 = vmax.f32 %v1017, %v1029
  %v1034 = vmax.f32 %v1018, %v1028
  %v1035 = vmax.f32 %v1019, %v1031
  %v1036 = vlaneseq
  %v1037 = vshrl.u32 %v1036, 7
  %v1038 = vadd.s32 %v1037, 8
  %v1039 = vadd.s32 %v1037, 16
  %v1040 = vadd.s32 %v1037, 24
  %v1041 = vadd.s32 %v1037, 32
  %v1042 = vadd.s32 %v1037, 40
  %v1043 = vadd.s32 %v1037, 48
  %v1044 = vadd.s32 %v1037, 56
  %v1045 = vadd.s32 %v1037, 64
  %v1046 = vadd.s32 %v1037, 72
  %v1047 = vadd.s32 %v1037, 80
  %v1048 = vadd.s32 %v1037, 88
  %v1049 = vadd.s32 %v1037, 96
  %v1050 = vadd.s32 %v1037, 104
  %v1051 = vadd.s32 %v1037, 112
  %v1052 = vadd.s32 %v1037, 120
  %v1053 = vadd.s32 %v1037, 128
  %v1054 = vadd.s32 %v1037, 136
  %v1055 = vadd.s32 %v1037, 144
  %v1056 = vadd.s32 %v1037, 152
  %v1057 = vadd.s32 %v1037, 160
  %v1058 = vadd.s32 %v1037, 168
  %v1059 = vadd.s32 %v1037, 176
  %v1060 = vadd.s32 %v1037, 184
  %v1061 = vadd.s32 %v1037, 192
  %v1062 = vadd.s32 %v1037, 200
  %v1063 = vadd.s32 %v1037, 208
  %v1064 = vadd.s32 %v1037, 216
  %v1065 = vadd.s32 %v1037, 224
  %v1066 = vadd.s32 %v1037, 232
  %v1067 = vadd.s32 %v1037, 240
  %v1068 = vadd.s32 %v1037, 248
  %v1069 = vadd.s32 %v1037, 256
  %v1070 = vadd.s32 %v1037, 264
  %v1071 = vadd.s32 %v1037, 272
  %v1072 = vadd.s32 %v1037, 280
  %v1073 = vadd.s32 %v1037, 288
  %v1074 = vadd.s32 %v1037, 296
  %v1075 = vadd.s32 %v1037, 304
  %v1076 = vadd.s32 %v1037, 312
  %v1077 = vadd.s32 %v1037, 320
  %v1078 = vadd.s32 %v1037, 328
  %v1079 = vadd.s32 %v1037, 336
  %v1080 = vadd.s32 %v1037, 344
  %v1081 = vadd.s32 %v1037, 352
  %v1082 = vadd.s32 %v1037, 360
  %v1083 = vadd.s32 %v1037, 368
  %v1084 = vadd.s32 %v1037, 376
  %v1085 = vadd.s32 %v1037, 384
  %v1086 = vadd.s32 %v1037, 392
  %v1087 = vadd.s32 %v1037, 400
  %v1088 = vadd.s32 %v1037, 408
  %v1089 = vadd.s32 %v1037, 416
  %v1090 = vadd.s32 %v1037, 424
  %v1091 = vadd.s32 %v1037, 432
  %v1092 = vadd.s32 %v1037, 440
  %v1093 = vadd.s32 %v1037, 448
  %v1094 = vadd.s32 %v1037, 456
  %v1095 = vadd.s32 %v1037, 464
  %v1096 = vadd.s32 %v1037, 472
  %v1097 = vadd.s32 %v1037, 480
  %v1098 = vadd.s32 %v1037, 488
  %v1099 = vadd.s32 %v1037, 496
  %v1100 = vadd.s32 %v1037, 504
  %v1101 = vshra.s32 %v1037, 8
  %v1102 = vshra.s32 %v1038, 8
  %v1103 = vshra.s32 %v1039, 8
  %v1104 = vshra.s32 %v1040, 8
  %v1105 = vshra.s32 %v1041, 8
  %v1106 = vshra.s32 %v1042, 8
  %v1107 = vshra.s32 %v1043, 8
  %v1108 = vshra.s32 %v1044, 8
  %v1109 = vshra.s32 %v1045, 8
  %v1110 = vshra.s32 %v1046, 8
  %v1111 = vshra.s32 %v1047, 8
  %v1112 = vshra.s32 %v1048, 8
  %v1113 = vshra.s32 %v1049, 8
  %v1114 = vshra.s32 %v1050, 8
  %v1115 = vshra.s32 %v1051, 8
  %v1116 = vshra.s32 %v1052, 8
  %v1117 = vshra.s32 %v1053, 8
  %v1118 = vshra.s32 %v1054, 8
  %v1119 = vshra.s32 %v1055, 8
  %v1120 = vshra.s32 %v1056, 8
  %v1121 = vshra.s32 %v1057, 8
  %v1122 = vshra.s32 %v1058, 8
  %v1123 = vshra.s32 %v1059, 8
  %v1124 = vshra.s32 %v1060, 8
  %v1125 = vshra.s32 %v1061, 8
  %v1126 = vshra.s32 %v1062, 8
  %v1127 = vshra.s32 %v1063, 8
  %v1128 = vshra.s32 %v1064, 8
  %v1129 = vshra.s32 %v1065, 8
  %v1130 = vshra.s32 %v1066, 8
  %v1131 = vshra.s32 %v1067, 8
  %v1132 = vshra.s32 %v1068, 8
  %v1133 = vshra.s32 %v1069, 8
  %v1134 = vshra.s32 %v1070, 8
  %v1135 = vshra.s32 %v1071, 8
  %v1136 = vshra.s32 %v1072, 8
  %v1137 = vshra.s32 %v1073, 8
  %v1138 = vshra.s32 %v1074, 8
  %v1139 = vshra.s32 %v1075, 8
  %v1140 = vshra.s32 %v1076, 8
  %v1141 = vshra.s32 %v1077, 8
  %v1142 = vshra.s32 %v1078, 8
  %v1143 = vshra.s32 %v1079, 8
  %v1144 = vshra.s32 %v1080, 8
  %v1145 = vshra.s32 %v1081, 8
  %v1146 = vshra.s32 %v1082, 8
  %v1147 = vshra.s32 %v1083, 8
  %v1148 = vshra.s32 %v1084, 8
  %v1149 = vshra.s32 %v1085, 8
  %v1150 = vshra.s32 %v1086, 8
  %v1151 = vshra.s32 %v1087, 8
  %v1152 = vshra.s32 %v1088, 8
  %v1153 = vshra.s32 %v1089, 8
  %v1154 = vshra.s32 %v1090, 8
  %v1155 = vshra.s32 %v1091, 8
  %v1156 = vshra.s32 %v1092, 8
  %v1157 = vshra.s32 %v1093, 8
  %v1158 = vshra.s32 %v1094, 8
  %v1159 = vshra.s32 %v1095, 8
  %v1160 = vshra.s32 %v1096, 8
  %v1161 = vshra.s32 %v1097, 8
  %v1162 = vshra.s32 %v1098, 8
  %v1163 = vshra.s32 %v1099, 8
  %v1164 = vshra.s32 %v1100, 8
  %v1165 = vand.u32 %v1037, 255
  %v1166 = vand.u32 %v1038, 255
  %v1167 = vand.u32 %v1039, 255
  %v1168 = vand.u32 %v1040, 255
  %v1169 = vand.u32 %v1041, 255
  %v1170 = vand.u32 %v1042, 255
  %v1171 = vand.u32 %v1043, 255
  %v1172 = vand.u32 %v1044, 255
  %v1173 = vand.u32 %v1045, 255
  %v1174 = vand.u32 %v1046, 255
  %v1175 = vand.u32 %v1047, 255
  %v1176 = vand.u32 %v1048, 255
  %v1177 = vand.u32 %v1049, 255
  %v1178 = vand.u32 %v1050, 255
  %v1179 = vand.u32 %v1051, 255
  %v1180 = vand.u32 %v1052, 255
  %v1181 = vand.u32 %v1053, 255
  %v1182 = vand.u32 %v1054, 255
  %v1183 = vand.u32 %v1055, 255
  %v1184 = vand.u32 %v1056, 255
  %v1185 = vand.u32 %v1057, 255
  %v1186 = vand.u32 %v1058, 255
  %v1187 = vand.u32 %v1059, 255
  %v1188 = vand.u32 %v1060, 255
  %v1189 = vand.u32 %v1061, 255
  %v1190 = vand.u32 %v1062, 255
  %v1191 = vand.u32 %v1063, 255
  %v1192 = vand.u32 %v1064, 255
  %v1193 = vand.u32 %v1065, 255
  %v1194 = vand.u32 %v1066, 255
  %v1195 = vand.u32 %v1067, 255
  %v1196 = vand.u32 %v1068, 255
  %v1197 = vand.u32 %v1069, 255
  %v1198 = vand.u32 %v1070, 255
  %v1199 = vand.u32 %v1071, 255
  %v1200 = vand.u32 %v1072, 255
  %v1201 = vand.u32 %v1073, 255
  %v1202 = vand.u32 %v1074, 255
  %v1203 = vand.u32 %v1075, 255
  %v1204 = vand.u32 %v1076, 255
  %v1205 = vand.u32 %v1077, 255
  %v1206 = vand.u32 %v1078, 255
  %v1207 = vand.u32 %v1079, 255
  %v1208 = vand.u32 %v1080, 255
  %v1209 = vand.u32 %v1081, 255
  %v1210 = vand.u32 %v1082, 255
  %v1211 = vand.u32 %v1083, 255
  %v1212 = vand.u32 %v1084, 255
  %v1213 = vand.u32 %v1085, 255
  %v1214 = vand.u32 %v1086, 255
  %v1215 = vand.u32 %v1087, 255
  %v1216 = vand.u32 %v1088, 255
  %v1217 = vand.u32 %v1089, 255
  %v1218 = vand.u32 %v1090, 255
  %v1219 = vand.u32 %v1091, 255
  %v1220 = vand.u32 %v1092, 255
  %v1221 = vand.u32 %v1093, 255
  %v1222 = vand.u32 %v1094, 255
  %v1223 = vand.u32 %v1095, 255
  %v1224 = vand.u32 %v1096, 255
  %v1225 = vand.u32 %v1097, 255
  %v1226 = vand.u32 %v1098, 255
  %v1227 = vand.u32 %v1099, 255
  %v1228 = vand.u32 %v1100, 255
  %v1229 = vshra.s32 %v1165, 4
  %v1230 = vshra.s32 %v1166, 4
  %v1231 = vshra.s32 %v1167, 4
  %v1232 = vshra.s32 %v1168, 4
  %v1233 = vshra.s32 %v1169, 4
  %v1234 = vshra.s32 %v1170, 4
  %v1235 = vshra.s32 %v1171, 4
  %v1236 = vshra.s32 %v1172, 4
  %v1237 = vshra.s32 %v1173, 4
  %v1238 = vshra.s32 %v1174, 4
  %v1239 = vshra.s32 %v1175, 4
  %v1240 = vshra.s32 %v1176, 4
  %v1241 = vshra.s32 %v1177, 4
  %v1242 = vshra.s32 %v1178, 4
  %v1243 = vshra.s32 %v1179, 4
  %v1244 = vshra.s32 %v1180, 4
  %v1245 = vshra.s32 %v1181, 4
  %v1246 = vshra.s32 %v1182, 4
  %v1247 = vshra.s32 %v1183, 4
  %v1248 = vshra.s32 %v1184, 4
  %v1249 = vshra.s32 %v1185, 4
  %v1250 = vshra.s32 %v1186, 4
  %v1251 = vshra.s32 %v1187, 4
  %v1252 = vshra.s32 %v1188, 4
  %v1253 = vshra.s32 %v1189, 4
  %v1254 = vshra.s32 %v1190, 4
  %v1255 = vshra.s32 %v1191, 4
  %v1256 = vshra.s32 %v1192, 4
  %v1257 = vshra.s32 %v1193, 4
  %v1258 = vshra.s32 %v1194, 4
  %v1259 = vshra.s32 %v1195, 4
  %v1260 = vshra.s32 %v1196, 4
  %v1261 = vshra.s32 %v1197, 4
  %v1262 = vshra.s32 %v1198, 4
  %v1263 = vshra.s32 %v1199, 4
  %v1264 = vshra.s32 %v1200, 4
  %v1265 = vshra.s32 %v1201, 4
  %v1266 = vshra.s32 %v1202, 4
  %v1267 = vshra.s32 %v1203, 4
  %v1268 = vshra.s32 %v1204, 4
  %v1269 = vshra.s32 %v1205, 4
  %v1270 = vshra.s32 %v1206, 4
  %v1271 = vshra.s32 %v1207, 4
  %v1272 = vshra.s32 %v1208, 4
  %v1273 = vshra.s32 %v1209, 4
  %v1274 = vshra.s32 %v1210, 4
  %v1275 = vshra.s32 %v1211, 4
  %v1276 = vshra.s32 %v1212, 4
  %v1277 = vshra.s32 %v1213, 4
  %v1278 = vshra.s32 %v1214, 4
  %v1279 = vshra.s32 %v1215, 4
  %v1280 = vshra.s32 %v1216, 4
  %v1281 = vshra.s32 %v1217, 4
  %v1282 = vshra.s32 %v1218, 4
  %v1283 = vshra.s32 %v1219, 4
  %v1284 = vshra.s32 %v1220, 4
  %v1285 = vshra.s32 %v1221, 4
  %v1286 = vshra.s32 %v1222, 4
  %v1287 = vshra.s32 %v1223, 4
  %v1288 = vshra.s32 %v1224, 4
  %v1289 = vshra.s32 %v1225, 4
  %v1290 = vshra.s32 %v1226, 4
  %v1291 = vshra.s32 %v1227, 4
  %v1292 = vshra.s32 %v1228, 4
  %v1293 = vand.u32 %v1165, 15
  %v1294 = vand.u32 %v1166, 15
  %v1295 = vand.u32 %v1167, 15
  %v1296 = vand.u32 %v1168, 15
  %v1297 = vand.u32 %v1169, 15
  %v1298 = vand.u32 %v1170, 15
  %v1299 = vand.u32 %v1171, 15
  %v1300 = vand.u32 %v1172, 15
  %v1301 = vand.u32 %v1173, 15
  %v1302 = vand.u32 %v1174, 15
  %v1303 = vand.u32 %v1175, 15
  %v1304 = vand.u32 %v1176, 15
  %v1305 = vand.u32 %v1177, 15
  %v1306 = vand.u32 %v1178, 15
  %v1307 = vand.u32 %v1179, 15
  %v1308 = vand.u32 %v1180, 15
  %v1309 = vand.u32 %v1181, 15
  %v1310 = vand.u32 %v1182, 15
  %v1311 = vand.u32 %v1183, 15
  %v1312 = vand.u32 %v1184, 15
  %v1313 = vand.u32 %v1185, 15
  %v1314 = vand.u32 %v1186, 15
  %v1315 = vand.u32 %v1187, 15
  %v1316 = vand.u32 %v1188, 15
  %v1317 = vand.u32 %v1189, 15
  %v1318 = vand.u32 %v1190, 15
  %v1319 = vand.u32 %v1191, 15
  %v1320 = vand.u32 %v1192, 15
  %v1321 = vand.u32 %v1193, 15
  %v1322 = vand.u32 %v1194, 15
  %v1323 = vand.u32 %v1195, 15
  %v1324 = vand.u32 %v1196, 15
  %v1325 = vand.u32 %v1197, 15
  %v1326 = vand.u32 %v1198, 15
  %v1327 = vand.u32 %v1199, 15
  %v1328 = vand.u32 %v1200, 15
  %v1329 = vand.u32 %v1201, 15
  %v1330 = vand.u32 %v1202, 15
  %v1331 = vand.u32 %v1203, 15
  %v1332 = vand.u32 %v1204, 15
  %v1333 = vand.u32 %v1205, 15
  %v1334 = vand.u32 %v1206, 15
  %v1335 = vand.u32 %v1207, 15
  %v1336 = vand.u32 %v1208, 15
  %v1337 = vand.u32 %v1209, 15
  %v1338 = vand.u32 %v1210, 15
  %v1339 = vand.u32 %v1211, 15
  %v1340 = vand.u32 %v1212, 15
  %v1341 = vand.u32 %v1213, 15
  %v1342 = vand.u32 %v1214, 15
  %v1343 = vand.u32 %v1215, 15
  %v1344 = vand.u32 %v1216, 15
  %v1345 = vand.u32 %v1217, 15
  %v1346 = vand.u32 %v1218, 15
  %v1347 = vand.u32 %v1219, 15
  %v1348 = vand.u32 %v1220, 15
  %v1349 = vand.u32 %v1221, 15
  %v1350 = vand.u32 %v1222, 15
  %v1351 = vand.u32 %v1223, 15
  %v1352 = vand.u32 %v1224, 15
  %v1353 = vand.u32 %v1225, 15
  %v1354 = vand.u32 %v1226, 15
  %v1355 = vand.u32 %v1227, 15
  %v1356 = vand.u32 %v1228, 15
  %v1357 = vshll.u32 %v1101, 6
  %v1358 = vshll.u32 %v1102, 6
  %v1359 = vshll.u32 %v1103, 6
  %v1360 = vshll.u32 %v1104, 6
  %v1361 = vshll.u32 %v1105, 6
  %v1362 = vshll.u32 %v1106, 6
  %v1363 = vshll.u32 %v1107, 6
  %v1364 = vshll.u32 %v1108, 6
  %v1365 = vshll.u32 %v1109, 6
  %v1366 = vshll.u32 %v1110, 6
  %v1367 = vshll.u32 %v1111, 6
  %v1368 = vshll.u32 %v1112, 6
  %v1369 = vshll.u32 %v1113, 6
  %v1370 = vshll.u32 %v1114, 6
  %v1371 = vshll.u32 %v1115, 6
  %v1372 = vshll.u32 %v1116, 6
  %v1373 = vshll.u32 %v1117, 6
  %v1374 = vshll.u32 %v1118, 6
  %v1375 = vshll.u32 %v1119, 6
  %v1376 = vshll.u32 %v1120, 6
  %v1377 = vshll.u32 %v1121, 6
  %v1378 = vshll.u32 %v1122, 6
  %v1379 = vshll.u32 %v1123, 6
  %v1380 = vshll.u32 %v1124, 6
  %v1381 = vshll.u32 %v1125, 6
  %v1382 = vshll.u32 %v1126, 6
  %v1383 = vshll.u32 %v1127, 6
  %v1384 = vshll.u32 %v1128, 6
  %v1385 = vshll.u32 %v1129, 6
  %v1386 = vshll.u32 %v1130, 6
  %v1387 = vshll.u32 %v1131, 6
  %v1388 = vshll.u32 %v1132, 6
  %v1389 = vshll.u32 %v1133, 6
  %v1390 = vshll.u32 %v1134, 6
  %v1391 = vshll.u32 %v1135, 6
  %v1392 = vshll.u32 %v1136, 6
  %v1393 = vshll.u32 %v1137, 6
  %v1394 = vshll.u32 %v1138, 6
  %v1395 = vshll.u32 %v1139, 6
  %v1396 = vshll.u32 %v1140, 6
  %v1397 = vshll.u32 %v1141, 6
  %v1398 = vshll.u32 %v1142, 6
  %v1399 = vshll.u32 %v1143, 6
  %v1400 = vshll.u32 %v1144, 6
  %v1401 = vshll.u32 %v1145, 6
  %v1402 = vshll.u32 %v1146, 6
  %v1403 = vshll.u32 %v1147, 6
  %v1404 = vshll.u32 %v1148, 6
  %v1405 = vshll.u32 %v1149, 6
  %v1406 = vshll.u32 %v1150, 6
  %v1407 = vshll.u32 %v1151, 6
  %v1408 = vshll.u32 %v1152, 6
  %v1409 = vshll.u32 %v1153, 6
  %v1410 = vshll.u32 %v1154, 6
  %v1411 = vshll.u32 %v1155, 6
  %v1412 = vshll.u32 %v1156, 6
  %v1413 = vshll.u32 %v1157, 6
  %v1414 = vshll.u32 %v1158, 6
  %v1415 = vshll.u32 %v1159, 6
  %v1416 = vshll.u32 %v1160, 6
  %v1417 = vshll.u32 %v1161, 6
  %v1418 = vshll.u32 %v1162, 6
  %v1419 = vshll.u32 %v1163, 6
  %v1420 = vshll.u32 %v1164, 6
  %v1421 = vshra.s32 %v1229, 1
  %v1422 = vshra.s32 %v1230, 1
  %v1423 = vshra.s32 %v1231, 1
  %v1424 = vshra.s32 %v1232, 1
  %v1425 = vshra.s32 %v1233, 1
  %v1426 = vshra.s32 %v1234, 1
  %v1427 = vshra.s32 %v1235, 1
  %v1428 = vshra.s32 %v1236, 1
  %v1429 = vshra.s32 %v1237, 1
  %v1430 = vshra.s32 %v1238, 1
  %v1431 = vshra.s32 %v1239, 1
  %v1432 = vshra.s32 %v1240, 1
  %v1433 = vshra.s32 %v1241, 1
  %v1434 = vshra.s32 %v1242, 1
  %v1435 = vshra.s32 %v1243, 1
  %v1436 = vshra.s32 %v1244, 1
  %v1437 = vshra.s32 %v1245, 1
  %v1438 = vshra.s32 %v1246, 1
  %v1439 = vshra.s32 %v1247, 1
  %v1440 = vshra.s32 %v1248, 1
  %v1441 = vshra.s32 %v1249, 1
  %v1442 = vshra.s32 %v1250, 1
  %v1443 = vshra.s32 %v1251, 1
  %v1444 = vshra.s32 %v1252, 1
  %v1445 = vshra.s32 %v1253, 1
  %v1446 = vshra.s32 %v1254, 1
  %v1447 = vshra.s32 %v1255, 1
  %v1448 = vshra.s32 %v1256, 1
  %v1449 = vshra.s32 %v1257, 1
  %v1450 = vshra.s32 %v1258, 1
  %v1451 = vshra.s32 %v1259, 1
  %v1452 = vshra.s32 %v1260, 1
  %v1453 = vshra.s32 %v1261, 1
  %v1454 = vshra.s32 %v1262, 1
  %v1455 = vshra.s32 %v1263, 1
  %v1456 = vshra.s32 %v1264, 1
  %v1457 = vshra.s32 %v1265, 1
  %v1458 = vshra.s32 %v1266, 1
  %v1459 = vshra.s32 %v1267, 1
  %v1460 = vshra.s32 %v1268, 1
  %v1461 = vshra.s32 %v1269, 1
  %v1462 = vshra.s32 %v1270, 1
  %v1463 = vshra.s32 %v1271, 1
  %v1464 = vshra.s32 %v1272, 1
  %v1465 = vshra.s32 %v1273, 1
  %v1466 = vshra.s32 %v1274, 1
  %v1467 = vshra.s32 %v1275, 1
  %v1468 = vshra.s32 %v1276, 1
  %v1469 = vshra.s32 %v1277, 1
  %v1470 = vshra.s32 %v1278, 1
  %v1471 = vshra.s32 %v1279, 1
  %v1472 = vshra.s32 %v1280, 1
  %v1473 = vshra.s32 %v1281, 1
  %v1474 = vshra.s32 %v1282, 1
  %v1475 = vshra.s32 %v1283, 1
  %v1476 = vshra.s32 %v1284, 1
  %v1477 = vshra.s32 %v1285, 1
  %v1478 = vshra.s32 %v1286, 1
  %v1479 = vshra.s32 %v1287, 1
  %v1480 = vshra.s32 %v1288, 1
  %v1481 = vshra.s32 %v1289, 1
  %v1482 = vshra.s32 %v1290, 1
  %v1483 = vshra.s32 %v1291, 1
  %v1484 = vshra.s32 %v1292, 1
  %v1485 = vshll.u32 %v1421, 3
  %v1486 = vshll.u32 %v1422, 3
  %v1487 = vshll.u32 %v1423, 3
  %v1488 = vshll.u32 %v1424, 3
  %v1489 = vshll.u32 %v1425, 3
  %v1490 = vshll.u32 %v1426, 3
  %v1491 = vshll.u32 %v1427, 3
  %v1492 = vshll.u32 %v1428, 3
  %v1493 = vshll.u32 %v1429, 3
  %v1494 = vshll.u32 %v1430, 3
  %v1495 = vshll.u32 %v1431, 3
  %v1496 = vshll.u32 %v1432, 3
  %v1497 = vshll.u32 %v1433, 3
  %v1498 = vshll.u32 %v1434, 3
  %v1499 = vshll.u32 %v1435, 3
  %v1500 = vshll.u32 %v1436, 3
  %v1501 = vshll.u32 %v1437, 3
  %v1502 = vshll.u32 %v1438, 3
  %v1503 = vshll.u32 %v1439, 3
  %v1504 = vshll.u32 %v1440, 3
  %v1505 = vshll.u32 %v1441, 3
  %v1506 = vshll.u32 %v1442, 3
  %v1507 = vshll.u32 %v1443, 3
  %v1508 = vshll.u32 %v1444, 3
  %v1509 = vshll.u32 %v1445, 3
  %v1510 = vshll.u32 %v1446, 3
  %v1511 = vshll.u32 %v1447, 3
  %v1512 = vshll.u32 %v1448, 3
  %v1513 = vshll.u32 %v1449, 3
  %v1514 = vshll.u32 %v1450, 3
  %v1515 = vshll.u32 %v1451, 3
  %v1516 = vshll.u32 %v1452, 3
  %v1517 = vshll.u32 %v1453, 3
  %v1518 = vshll.u32 %v1454, 3
  %v1519 = vshll.u32 %v1455, 3
  %v1520 = vshll.u32 %v1456, 3
  %v1521 = vshll.u32 %v1457, 3
  %v1522 = vshll.u32 %v1458, 3
  %v1523 = vshll.u32 %v1459, 3
  %v1524 = vshll.u32 %v1460, 3
  %v1525 = vshll.u32 %v1461, 3
  %v1526 = vshll.u32 %v1462, 3
  %v1527 = vshll.u32 %v1463, 3
  %v1528 = vshll.u32 %v1464, 3
  %v1529 = vshll.u32 %v1465, 3
  %v1530 = vshll.u32 %v1466, 3
  %v1531 = vshll.u32 %v1467, 3
  %v1532 = vshll.u32 %v1468, 3
  %v1533 = vshll.u32 %v1469, 3
  %v1534 = vshll.u32 %v1470, 3
  %v1535 = vshll.u32 %v1471, 3
  %v1536 = vshll.u32 %v1472, 3
  %v1537 = vshll.u32 %v1473, 3
  %v1538 = vshll.u32 %v1474, 3
  %v1539 = vshll.u32 %v1475, 3
  %v1540 = vshll.u32 %v1476, 3
  %v1541 = vshll.u32 %v1477, 3
  %v1542 = vshll.u32 %v1478, 3
  %v1543 = vshll.u32 %v1479, 3
  %v1544 = vshll.u32 %v1480, 3
  %v1545 = vshll.u32 %v1481, 3
  %v1546 = vshll.u32 %v1482, 3
  %v1547 = vshll.u32 %v1483, 3
  %v1548 = vshll.u32 %v1484, 3
  %v1549 = vadd.s32 %v1357, %v1485
  %v1550 = vadd.s32 %v1358, %v1486
  %v1551 = vadd.s32 %v1359, %v1487
  %v1552 = vadd.s32 %v1360, %v1488
  %v1553 = vadd.s32 %v1361, %v1489
  %v1554 = vadd.s32 %v1362, %v1490
  %v1555 = vadd.s32 %v1363, %v1491
  %v1556 = vadd.s32 %v1364, %v1492
  %v1557 = vadd.s32 %v1365, %v1493
  %v1558 = vadd.s32 %v1366, %v1494
  %v1559 = vadd.s32 %v1367, %v1495
  %v1560 = vadd.s32 %v1368, %v1496
  %v1561 = vadd.s32 %v1369, %v1497
  %v1562 = vadd.s32 %v1370, %v1498
  %v1563 = vadd.s32 %v1371, %v1499
  %v1564 = vadd.s32 %v1372, %v1500
  %v1565 = vadd.s32 %v1373, %v1501
  %v1566 = vadd.s32 %v1374, %v1502
  %v1567 = vadd.s32 %v1375, %v1503
  %v1568 = vadd.s32 %v1376, %v1504
  %v1569 = vadd.s32 %v1377, %v1505
  %v1570 = vadd.s32 %v1378, %v1506
  %v1571 = vadd.s32 %v1379, %v1507
  %v1572 = vadd.s32 %v1380, %v1508
  %v1573 = vadd.s32 %v1381, %v1509
  %v1574 = vadd.s32 %v1382, %v1510
  %v1575 = vadd.s32 %v1383, %v1511
  %v1576 = vadd.s32 %v1384, %v1512
  %v1577 = vadd.s32 %v1385, %v1513
  %v1578 = vadd.s32 %v1386, %v1514
  %v1579 = vadd.s32 %v1387, %v1515
  %v1580 = vadd.s32 %v1388, %v1516
  %v1581 = vadd.s32 %v1389, %v1517
  %v1582 = vadd.s32 %v1390, %v1518
  %v1583 = vadd.s32 %v1391, %v1519
  %v1584 = vadd.s32 %v1392, %v1520
  %v1585 = vadd.s32 %v1393, %v1521
  %v1586 = vadd.s32 %v1394, %v1522
  %v1587 = vadd.s32 %v1395, %v1523
  %v1588 = vadd.s32 %v1396, %v1524
  %v1589 = vadd.s32 %v1397, %v1525
  %v1590 = vadd.s32 %v1398, %v1526
  %v1591 = vadd.s32 %v1399, %v1527
  %v1592 = vadd.s32 %v1400, %v1528
  %v1593 = vadd.s32 %v1401, %v1529
  %v1594 = vadd.s32 %v1402, %v1530
  %v1595 = vadd.s32 %v1403, %v1531
  %v1596 = vadd.s32 %v1404, %v1532
  %v1597 = vadd.s32 %v1405, %v1533
  %v1598 = vadd.s32 %v1406, %v1534
  %v1599 = vadd.s32 %v1407, %v1535
  %v1600 = vadd.s32 %v1408, %v1536
  %v1601 = vadd.s32 %v1409, %v1537
  %v1602 = vadd.s32 %v1410, %v1538
  %v1603 = vadd.s32 %v1411, %v1539
  %v1604 = vadd.s32 %v1412, %v1540
  %v1605 = vadd.s32 %v1413, %v1541
  %v1606 = vadd.s32 %v1414, %v1542
  %v1607 = vadd.s32 %v1415, %v1543
  %v1608 = vadd.s32 %v1416, %v1544
  %v1609 = vadd.s32 %v1417, %v1545
  %v1610 = vadd.s32 %v1418, %v1546
  %v1611 = vadd.s32 %v1419, %v1547
  %v1612 = vadd.s32 %v1420, %v1548
  %v1613 = vshra.s32 %v1293, 1
  %v1614 = vshra.s32 %v1294, 1
  %v1615 = vshra.s32 %v1295, 1
  %v1616 = vshra.s32 %v1296, 1
  %v1617 = vshra.s32 %v1297, 1
  %v1618 = vshra.s32 %v1298, 1
  %v1619 = vshra.s32 %v1299, 1
  %v1620 = vshra.s32 %v1300, 1
  %v1621 = vshra.s32 %v1301, 1
  %v1622 = vshra.s32 %v1302, 1
  %v1623 = vshra.s32 %v1303, 1
  %v1624 = vshra.s32 %v1304, 1
  %v1625 = vshra.s32 %v1305, 1
  %v1626 = vshra.s32 %v1306, 1
  %v1627 = vshra.s32 %v1307, 1
  %v1628 = vshra.s32 %v1308, 1
  %v1629 = vshra.s32 %v1309, 1
  %v1630 = vshra.s32 %v1310, 1
  %v1631 = vshra.s32 %v1311, 1
  %v1632 = vshra.s32 %v1312, 1
  %v1633 = vshra.s32 %v1313, 1
  %v1634 = vshra.s32 %v1314, 1
  %v1635 = vshra.s32 %v1315, 1
  %v1636 = vshra.s32 %v1316, 1
  %v1637 = vshra.s32 %v1317, 1
  %v1638 = vshra.s32 %v1318, 1
  %v1639 = vshra.s32 %v1319, 1
  %v1640 = vshra.s32 %v1320, 1
  %v1641 = vshra.s32 %v1321, 1
  %v1642 = vshra.s32 %v1322, 1
  %v1643 = vshra.s32 %v1323, 1
  %v1644 = vshra.s32 %v1324, 1
  %v1645 = vshra.s32 %v1325, 1
  %v1646 = vshra.s32 %v1326, 1
  %v1647 = vshra.s32 %v1327, 1
  %v1648 = vshra.s32 %v1328, 1
  %v1649 = vshra.s32 %v1329, 1
  %v1650 = vshra.s32 %v1330, 1
  %v1651 = vshra.s32 %v1331, 1
  %v1652 = vshra.s32 %v1332, 1
  %v1653 = vshra.s32 %v1333, 1
  %v1654 = vshra.s32 %v1334, 1
  %v1655 = vshra.s32 %v1335, 1
  %v1656 = vshra.s32 %v1336, 1
  %v1657 = vshra.s32 %v1337, 1
  %v1658 = vshra.s32 %v1338, 1
  %v1659 = vshra.s32 %v1339, 1
  %v1660 = vshra.s32 %v1340, 1
  %v1661 = vshra.s32 %v1341, 1
  %v1662 = vshra.s32 %v1342, 1
  %v1663 = vshra.s32 %v1343, 1
  %v1664 = vshra.s32 %v1344, 1
  %v1665 = vshra.s32 %v1345, 1
  %v1666 = vshra.s32 %v1346, 1
  %v1667 = vshra.s32 %v1347, 1
  %v1668 = vshra.s32 %v1348, 1
  %v1669 = vshra.s32 %v1349, 1
  %v1670 = vshra.s32 %v1350, 1
  %v1671 = vshra.s32 %v1351, 1
  %v1672 = vshra.s32 %v1352, 1
  %v1673 = vshra.s32 %v1353, 1
  %v1674 = vshra.s32 %v1354, 1
  %v1675 = vshra.s32 %v1355, 1
  %v1676 = vshra.s32 %v1356, 1
  %v1677 = vadd.s32 %v1549, %v1613
  %v1678 = vadd.s32 %v1550, %v1614
  %v1679 = vadd.s32 %v1551, %v1615
  %v1680 = vadd.s32 %v1552, %v1616
  %v1681 = vadd.s32 %v1553, %v1617
  %v1682 = vadd.s32 %v1554, %v1618
  %v1683 = vadd.s32 %v1555, %v1619
  %v1684 = vadd.s32 %v1556, %v1620
  %v1685 = vadd.s32 %v1557, %v1621
  %v1686 = vadd.s32 %v1558, %v1622
  %v1687 = vadd.s32 %v1559, %v1623
  %v1688 = vadd.s32 %v1560, %v1624
  %v1689 = vadd.s32 %v1561, %v1625
  %v1690 = vadd.s32 %v1562, %v1626
  %v1691 = vadd.s32 %v1563, %v1627
  %v1692 = vadd.s32 %v1564, %v1628
  %v1693 = vadd.s32 %v1565, %v1629
  %v1694 = vadd.s32 %v1566, %v1630
  %v1695 = vadd.s32 %v1567, %v1631
  %v1696 = vadd.s32 %v1568, %v1632
  %v1697 = vadd.s32 %v1569, %v1633
  %v1698 = vadd.s32 %v1570, %v1634
  %v1699 = vadd.s32 %v1571, %v1635
  %v1700 = vadd.s32 %v1572, %v1636
  %v1701 = vadd.s32 %v1573, %v1637
  %v1702 = vadd.s32 %v1574, %v1638
  %v1703 = vadd.s32 %v1575, %v1639
  %v1704 = vadd.s32 %v1576, %v1640
  %v1705 = vadd.s32 %v1577, %v1641
  %v1706 = vadd.s32 %v1578, %v1642
  %v1707 = vadd.s32 %v1579, %v1643
  %v1708 = vadd.s32 %v1580, %v1644
  %v1709 = vadd.s32 %v1581, %v1645
  %v1710 = vadd.s32 %v1582, %v1646
  %v1711 = vadd.s32 %v1583, %v1647
  %v1712 = vadd.s32 %v1584, %v1648
  %v1713 = vadd.s32 %v1585, %v1649
  %v1714 = vadd.s32 %v1586, %v1650
  %v1715 = vadd.s32 %v1587, %v1651
  %v1716 = vadd.s32 %v1588, %v1652
  %v1717 = vadd.s32 %v1589, %v1653
  %v1718 = vadd.s32 %v1590, %v1654
  %v1719 = vadd.s32 %v1591, %v1655
  %v1720 = vadd.s32 %v1592, %v1656
  %v1721 = vadd.s32 %v1593, %v1657
  %v1722 = vadd.s32 %v1594, %v1658
  %v1723 = vadd.s32 %v1595, %v1659
  %v1724 = vadd.s32 %v1596, %v1660
  %v1725 = vadd.s32 %v1597, %v1661
  %v1726 = vadd.s32 %v1598, %v1662
  %v1727 = vadd.s32 %v1599, %v1663
  %v1728 = vadd.s32 %v1600, %v1664
  %v1729 = vadd.s32 %v1601, %v1665
  %v1730 = vadd.s32 %v1602, %v1666
  %v1731 = vadd.s32 %v1603, %v1667
  %v1732 = vadd.s32 %v1604, %v1668
  %v1733 = vadd.s32 %v1605, %v1669
  %v1734 = vadd.s32 %v1606, %v1670
  %v1735 = vadd.s32 %v1607, %v1671
  %v1736 = vadd.s32 %v1608, %v1672
  %v1737 = vadd.s32 %v1609, %v1673
  %v1738 = vadd.s32 %v1610, %v1674
  %v1739 = vadd.s32 %v1611, %v1675
  %v1740 = vadd.s32 %v1612, %v1676
  %vm1741 = vcmp.lt.s32.totalorder %v1037, 512
  %vm1742 = vcmp.lt.s32.totalorder %v1038, 512
  %vm1743 = vcmp.lt.s32.totalorder %v1039, 512
  %vm1744 = vcmp.lt.s32.totalorder %v1040, 512
  %vm1745 = vcmp.lt.s32.totalorder %v1041, 512
  %vm1746 = vcmp.lt.s32.totalorder %v1042, 512
  %vm1747 = vcmp.lt.s32.totalorder %v1043, 512
  %vm1748 = vcmp.lt.s32.totalorder %v1044, 512
  %vm1749 = vcmp.lt.s32.totalorder %v1045, 512
  %vm1750 = vcmp.lt.s32.totalorder %v1046, 512
  %vm1751 = vcmp.lt.s32.totalorder %v1047, 512
  %vm1752 = vcmp.lt.s32.totalorder %v1048, 512
  %vm1753 = vcmp.lt.s32.totalorder %v1049, 512
  %vm1754 = vcmp.lt.s32.totalorder %v1050, 512
  %vm1755 = vcmp.lt.s32.totalorder %v1051, 512
  %vm1756 = vcmp.lt.s32.totalorder %v1052, 512
  %vm1757 = vcmp.lt.s32.totalorder %v1053, 512
  %vm1758 = vcmp.lt.s32.totalorder %v1054, 512
  %vm1759 = vcmp.lt.s32.totalorder %v1055, 512
  %vm1760 = vcmp.lt.s32.totalorder %v1056, 512
  %vm1761 = vcmp.lt.s32.totalorder %v1057, 512
  %vm1762 = vcmp.lt.s32.totalorder %v1058, 512
  %vm1763 = vcmp.lt.s32.totalorder %v1059, 512
  %vm1764 = vcmp.lt.s32.totalorder %v1060, 512
  %vm1765 = vcmp.lt.s32.totalorder %v1061, 512
  %vm1766 = vcmp.lt.s32.totalorder %v1062, 512
  %vm1767 = vcmp.lt.s32.totalorder %v1063, 512
  %vm1768 = vcmp.lt.s32.totalorder %v1064, 512
  %vm1769 = vcmp.lt.s32.totalorder %v1065, 512
  %vm1770 = vcmp.lt.s32.totalorder %v1066, 512
  %vm1771 = vcmp.lt.s32.totalorder %v1067, 512
  %vm1772 = vcmp.lt.s32.totalorder %v1068, 512
  %vm1773 = vcmp.lt.s32.totalorder %v1069, 512
  %vm1774 = vcmp.lt.s32.totalorder %v1070, 512
  %vm1775 = vcmp.lt.s32.totalorder %v1071, 512
  %vm1776 = vcmp.lt.s32.totalorder %v1072, 512
  %vm1777 = vcmp.lt.s32.totalorder %v1073, 512
  %vm1778 = vcmp.lt.s32.totalorder %v1074, 512
  %vm1779 = vcmp.lt.s32.totalorder %v1075, 512
  %vm1780 = vcmp.lt.s32.totalorder %v1076, 512
  %vm1781 = vcmp.lt.s32.totalorder %v1077, 512
  %vm1782 = vcmp.lt.s32.totalorder %v1078, 512
  %vm1783 = vcmp.lt.s32.totalorder %v1079, 512
  %vm1784 = vcmp.lt.s32.totalorder %v1080, 512
  %vm1785 = vcmp.lt.s32.totalorder %v1081, 512
  %vm1786 = vcmp.lt.s32.totalorder %v1082, 512
  %vm1787 = vcmp.lt.s32.totalorder %v1083, 512
  %vm1788 = vcmp.lt.s32.totalorder %v1084, 512
  %vm1789 = vcmp.lt.s32.totalorder %v1085, 512
  %vm1790 = vcmp.lt.s32.totalorder %v1086, 512
  %vm1791 = vcmp.lt.s32.totalorder %v1087, 512
  %vm1792 = vcmp.lt.s32.totalorder %v1088, 512
  %vm1793 = vcmp.lt.s32.totalorder %v1089, 512
  %vm1794 = vcmp.lt.s32.totalorder %v1090, 512
  %vm1795 = vcmp.lt.s32.totalorder %v1091, 512
  %vm1796 = vcmp.lt.s32.totalorder %v1092, 512
  %vm1797 = vcmp.lt.s32.totalorder %v1093, 512
  %vm1798 = vcmp.lt.s32.totalorder %v1094, 512
  %vm1799 = vcmp.lt.s32.totalorder %v1095, 512
  %vm1800 = vcmp.lt.s32.totalorder %v1096, 512
  %vm1801 = vcmp.lt.s32.totalorder %v1097, 512
  %vm1802 = vcmp.lt.s32.totalorder %v1098, 512
  %vm1803 = vcmp.lt.s32.totalorder %v1099, 512
  %vm1804 = vcmp.lt.s32.totalorder %v1100, 512
  %v1805 = vand.u32 %v1229, 1
  %v1806 = vand.u32 %v1230, 1
  %v1807 = vand.u32 %v1231, 1
  %v1808 = vand.u32 %v1232, 1
  %v1809 = vand.u32 %v1233, 1
  %v1810 = vand.u32 %v1234, 1
  %v1811 = vand.u32 %v1235, 1
  %v1812 = vand.u32 %v1236, 1
  %v1813 = vand.u32 %v1237, 1
  %v1814 = vand.u32 %v1238, 1
  %v1815 = vand.u32 %v1239, 1
  %v1816 = vand.u32 %v1240, 1
  %v1817 = vand.u32 %v1241, 1
  %v1818 = vand.u32 %v1242, 1
  %v1819 = vand.u32 %v1243, 1
  %v1820 = vand.u32 %v1244, 1
  %v1821 = vand.u32 %v1245, 1
  %v1822 = vand.u32 %v1246, 1
  %v1823 = vand.u32 %v1247, 1
  %v1824 = vand.u32 %v1248, 1
  %v1825 = vand.u32 %v1249, 1
  %v1826 = vand.u32 %v1250, 1
  %v1827 = vand.u32 %v1251, 1
  %v1828 = vand.u32 %v1252, 1
  %v1829 = vand.u32 %v1253, 1
  %v1830 = vand.u32 %v1254, 1
  %v1831 = vand.u32 %v1255, 1
  %v1832 = vand.u32 %v1256, 1
  %v1833 = vand.u32 %v1257, 1
  %v1834 = vand.u32 %v1258, 1
  %v1835 = vand.u32 %v1259, 1
  %v1836 = vand.u32 %v1260, 1
  %v1837 = vand.u32 %v1261, 1
  %v1838 = vand.u32 %v1262, 1
  %v1839 = vand.u32 %v1263, 1
  %v1840 = vand.u32 %v1264, 1
  %v1841 = vand.u32 %v1265, 1
  %v1842 = vand.u32 %v1266, 1
  %v1843 = vand.u32 %v1267, 1
  %v1844 = vand.u32 %v1268, 1
  %v1845 = vand.u32 %v1269, 1
  %v1846 = vand.u32 %v1270, 1
  %v1847 = vand.u32 %v1271, 1
  %v1848 = vand.u32 %v1272, 1
  %v1849 = vand.u32 %v1273, 1
  %v1850 = vand.u32 %v1274, 1
  %v1851 = vand.u32 %v1275, 1
  %v1852 = vand.u32 %v1276, 1
  %v1853 = vand.u32 %v1277, 1
  %v1854 = vand.u32 %v1278, 1
  %v1855 = vand.u32 %v1279, 1
  %v1856 = vand.u32 %v1280, 1
  %v1857 = vand.u32 %v1281, 1
  %v1858 = vand.u32 %v1282, 1
  %v1859 = vand.u32 %v1283, 1
  %v1860 = vand.u32 %v1284, 1
  %v1861 = vand.u32 %v1285, 1
  %v1862 = vand.u32 %v1286, 1
  %v1863 = vand.u32 %v1287, 1
  %v1864 = vand.u32 %v1288, 1
  %v1865 = vand.u32 %v1289, 1
  %v1866 = vand.u32 %v1290, 1
  %v1867 = vand.u32 %v1291, 1
  %v1868 = vand.u32 %v1292, 1
  %vm1869 = vcmp.eq.s32.totalorder %v1805, 0
  %vm1870 = vcmp.eq.s32.totalorder %v1806, 0
  %vm1871 = vcmp.eq.s32.totalorder %v1807, 0
  %vm1872 = vcmp.eq.s32.totalorder %v1808, 0
  %vm1873 = vcmp.eq.s32.totalorder %v1809, 0
  %vm1874 = vcmp.eq.s32.totalorder %v1810, 0
  %vm1875 = vcmp.eq.s32.totalorder %v1811, 0
  %vm1876 = vcmp.eq.s32.totalorder %v1812, 0
  %vm1877 = vcmp.eq.s32.totalorder %v1813, 0
  %vm1878 = vcmp.eq.s32.totalorder %v1814, 0
  %vm1879 = vcmp.eq.s32.totalorder %v1815, 0
  %vm1880 = vcmp.eq.s32.totalorder %v1816, 0
  %vm1881 = vcmp.eq.s32.totalorder %v1817, 0
  %vm1882 = vcmp.eq.s32.totalorder %v1818, 0
  %vm1883 = vcmp.eq.s32.totalorder %v1819, 0
  %vm1884 = vcmp.eq.s32.totalorder %v1820, 0
  %vm1885 = vcmp.eq.s32.totalorder %v1821, 0
  %vm1886 = vcmp.eq.s32.totalorder %v1822, 0
  %vm1887 = vcmp.eq.s32.totalorder %v1823, 0
  %vm1888 = vcmp.eq.s32.totalorder %v1824, 0
  %vm1889 = vcmp.eq.s32.totalorder %v1825, 0
  %vm1890 = vcmp.eq.s32.totalorder %v1826, 0
  %vm1891 = vcmp.eq.s32.totalorder %v1827, 0
  %vm1892 = vcmp.eq.s32.totalorder %v1828, 0
  %vm1893 = vcmp.eq.s32.totalorder %v1829, 0
  %vm1894 = vcmp.eq.s32.totalorder %v1830, 0
  %vm1895 = vcmp.eq.s32.totalorder %v1831, 0
  %vm1896 = vcmp.eq.s32.totalorder %v1832, 0
  %vm1897 = vcmp.eq.s32.totalorder %v1833, 0
  %vm1898 = vcmp.eq.s32.totalorder %v1834, 0
  %vm1899 = vcmp.eq.s32.totalorder %v1835, 0
  %vm1900 = vcmp.eq.s32.totalorder %v1836, 0
  %vm1901 = vcmp.eq.s32.totalorder %v1837, 0
  %vm1902 = vcmp.eq.s32.totalorder %v1838, 0
  %vm1903 = vcmp.eq.s32.totalorder %v1839, 0
  %vm1904 = vcmp.eq.s32.totalorder %v1840, 0
  %vm1905 = vcmp.eq.s32.totalorder %v1841, 0
  %vm1906 = vcmp.eq.s32.totalorder %v1842, 0
  %vm1907 = vcmp.eq.s32.totalorder %v1843, 0
  %vm1908 = vcmp.eq.s32.totalorder %v1844, 0
  %vm1909 = vcmp.eq.s32.totalorder %v1845, 0
  %vm1910 = vcmp.eq.s32.totalorder %v1846, 0
  %vm1911 = vcmp.eq.s32.totalorder %v1847, 0
  %vm1912 = vcmp.eq.s32.totalorder %v1848, 0
  %vm1913 = vcmp.eq.s32.totalorder %v1849, 0
  %vm1914 = vcmp.eq.s32.totalorder %v1850, 0
  %vm1915 = vcmp.eq.s32.totalorder %v1851, 0
  %vm1916 = vcmp.eq.s32.totalorder %v1852, 0
  %vm1917 = vcmp.eq.s32.totalorder %v1853, 0
  %vm1918 = vcmp.eq.s32.totalorder %v1854, 0
  %vm1919 = vcmp.eq.s32.totalorder %v1855, 0
  %vm1920 = vcmp.eq.s32.totalorder %v1856, 0
  %vm1921 = vcmp.eq.s32.totalorder %v1857, 0
  %vm1922 = vcmp.eq.s32.totalorder %v1858, 0
  %vm1923 = vcmp.eq.s32.totalorder %v1859, 0
  %vm1924 = vcmp.eq.s32.totalorder %v1860, 0
  %vm1925 = vcmp.eq.s32.totalorder %v1861, 0
  %vm1926 = vcmp.eq.s32.totalorder %v1862, 0
  %vm1927 = vcmp.eq.s32.totalorder %v1863, 0
  %vm1928 = vcmp.eq.s32.totalorder %v1864, 0
  %vm1929 = vcmp.eq.s32.totalorder %v1865, 0
  %vm1930 = vcmp.eq.s32.totalorder %v1866, 0
  %vm1931 = vcmp.eq.s32.totalorder %v1867, 0
  %vm1932 = vcmp.eq.s32.totalorder %v1868, 0
  %vm1933 = vmand %vm1741, %vm1869
  %vm1934 = vmand %vm1742, %vm1870
  %vm1935 = vmand %vm1743, %vm1871
  %vm1936 = vmand %vm1744, %vm1872
  %vm1937 = vmand %vm1745, %vm1873
  %vm1938 = vmand %vm1746, %vm1874
  %vm1939 = vmand %vm1747, %vm1875
  %vm1940 = vmand %vm1748, %vm1876
  %vm1941 = vmand %vm1749, %vm1877
  %vm1942 = vmand %vm1750, %vm1878
  %vm1943 = vmand %vm1751, %vm1879
  %vm1944 = vmand %vm1752, %vm1880
  %vm1945 = vmand %vm1753, %vm1881
  %vm1946 = vmand %vm1754, %vm1882
  %vm1947 = vmand %vm1755, %vm1883
  %vm1948 = vmand %vm1756, %vm1884
  %vm1949 = vmand %vm1757, %vm1885
  %vm1950 = vmand %vm1758, %vm1886
  %vm1951 = vmand %vm1759, %vm1887
  %vm1952 = vmand %vm1760, %vm1888
  %vm1953 = vmand %vm1761, %vm1889
  %vm1954 = vmand %vm1762, %vm1890
  %vm1955 = vmand %vm1763, %vm1891
  %vm1956 = vmand %vm1764, %vm1892
  %vm1957 = vmand %vm1765, %vm1893
  %vm1958 = vmand %vm1766, %vm1894
  %vm1959 = vmand %vm1767, %vm1895
  %vm1960 = vmand %vm1768, %vm1896
  %vm1961 = vmand %vm1769, %vm1897
  %vm1962 = vmand %vm1770, %vm1898
  %vm1963 = vmand %vm1771, %vm1899
  %vm1964 = vmand %vm1772, %vm1900
  %vm1965 = vmand %vm1773, %vm1901
  %vm1966 = vmand %vm1774, %vm1902
  %vm1967 = vmand %vm1775, %vm1903
  %vm1968 = vmand %vm1776, %vm1904
  %vm1969 = vmand %vm1777, %vm1905
  %vm1970 = vmand %vm1778, %vm1906
  %vm1971 = vmand %vm1779, %vm1907
  %vm1972 = vmand %vm1780, %vm1908
  %vm1973 = vmand %vm1781, %vm1909
  %vm1974 = vmand %vm1782, %vm1910
  %vm1975 = vmand %vm1783, %vm1911
  %vm1976 = vmand %vm1784, %vm1912
  %vm1977 = vmand %vm1785, %vm1913
  %vm1978 = vmand %vm1786, %vm1914
  %vm1979 = vmand %vm1787, %vm1915
  %vm1980 = vmand %vm1788, %vm1916
  %vm1981 = vmand %vm1789, %vm1917
  %vm1982 = vmand %vm1790, %vm1918
  %vm1983 = vmand %vm1791, %vm1919
  %vm1984 = vmand %vm1792, %vm1920
  %vm1985 = vmand %vm1793, %vm1921
  %vm1986 = vmand %vm1794, %vm1922
  %vm1987 = vmand %vm1795, %vm1923
  %vm1988 = vmand %vm1796, %vm1924
  %vm1989 = vmand %vm1797, %vm1925
  %vm1990 = vmand %vm1798, %vm1926
  %vm1991 = vmand %vm1799, %vm1927
  %vm1992 = vmand %vm1800, %vm1928
  %vm1993 = vmand %vm1801, %vm1929
  %vm1994 = vmand %vm1802, %vm1930
  %vm1995 = vmand %vm1803, %vm1931
  %vm1996 = vmand %vm1804, %vm1932
  %v1997 = vand.u32 %v1293, 1
  %v1998 = vand.u32 %v1294, 1
  %v1999 = vand.u32 %v1295, 1
  %v2000 = vand.u32 %v1296, 1
  %v2001 = vand.u32 %v1297, 1
  %v2002 = vand.u32 %v1298, 1
  %v2003 = vand.u32 %v1299, 1
  %v2004 = vand.u32 %v1300, 1
  %v2005 = vand.u32 %v1301, 1
  %v2006 = vand.u32 %v1302, 1
  %v2007 = vand.u32 %v1303, 1
  %v2008 = vand.u32 %v1304, 1
  %v2009 = vand.u32 %v1305, 1
  %v2010 = vand.u32 %v1306, 1
  %v2011 = vand.u32 %v1307, 1
  %v2012 = vand.u32 %v1308, 1
  %v2013 = vand.u32 %v1309, 1
  %v2014 = vand.u32 %v1310, 1
  %v2015 = vand.u32 %v1311, 1
  %v2016 = vand.u32 %v1312, 1
  %v2017 = vand.u32 %v1313, 1
  %v2018 = vand.u32 %v1314, 1
  %v2019 = vand.u32 %v1315, 1
  %v2020 = vand.u32 %v1316, 1
  %v2021 = vand.u32 %v1317, 1
  %v2022 = vand.u32 %v1318, 1
  %v2023 = vand.u32 %v1319, 1
  %v2024 = vand.u32 %v1320, 1
  %v2025 = vand.u32 %v1321, 1
  %v2026 = vand.u32 %v1322, 1
  %v2027 = vand.u32 %v1323, 1
  %v2028 = vand.u32 %v1324, 1
  %v2029 = vand.u32 %v1325, 1
  %v2030 = vand.u32 %v1326, 1
  %v2031 = vand.u32 %v1327, 1
  %v2032 = vand.u32 %v1328, 1
  %v2033 = vand.u32 %v1329, 1
  %v2034 = vand.u32 %v1330, 1
  %v2035 = vand.u32 %v1331, 1
  %v2036 = vand.u32 %v1332, 1
  %v2037 = vand.u32 %v1333, 1
  %v2038 = vand.u32 %v1334, 1
  %v2039 = vand.u32 %v1335, 1
  %v2040 = vand.u32 %v1336, 1
  %v2041 = vand.u32 %v1337, 1
  %v2042 = vand.u32 %v1338, 1
  %v2043 = vand.u32 %v1339, 1
  %v2044 = vand.u32 %v1340, 1
  %v2045 = vand.u32 %v1341, 1
  %v2046 = vand.u32 %v1342, 1
  %v2047 = vand.u32 %v1343, 1
  %v2048 = vand.u32 %v1344, 1
  %v2049 = vand.u32 %v1345, 1
  %v2050 = vand.u32 %v1346, 1
  %v2051 = vand.u32 %v1347, 1
  %v2052 = vand.u32 %v1348, 1
  %v2053 = vand.u32 %v1349, 1
  %v2054 = vand.u32 %v1350, 1
  %v2055 = vand.u32 %v1351, 1
  %v2056 = vand.u32 %v1352, 1
  %v2057 = vand.u32 %v1353, 1
  %v2058 = vand.u32 %v1354, 1
  %v2059 = vand.u32 %v1355, 1
  %v2060 = vand.u32 %v1356, 1
  %vm2061 = vcmp.eq.s32.totalorder %v1997, 0
  %vm2062 = vcmp.eq.s32.totalorder %v1998, 0
  %vm2063 = vcmp.eq.s32.totalorder %v1999, 0
  %vm2064 = vcmp.eq.s32.totalorder %v2000, 0
  %vm2065 = vcmp.eq.s32.totalorder %v2001, 0
  %vm2066 = vcmp.eq.s32.totalorder %v2002, 0
  %vm2067 = vcmp.eq.s32.totalorder %v2003, 0
  %vm2068 = vcmp.eq.s32.totalorder %v2004, 0
  %vm2069 = vcmp.eq.s32.totalorder %v2005, 0
  %vm2070 = vcmp.eq.s32.totalorder %v2006, 0
  %vm2071 = vcmp.eq.s32.totalorder %v2007, 0
  %vm2072 = vcmp.eq.s32.totalorder %v2008, 0
  %vm2073 = vcmp.eq.s32.totalorder %v2009, 0
  %vm2074 = vcmp.eq.s32.totalorder %v2010, 0
  %vm2075 = vcmp.eq.s32.totalorder %v2011, 0
  %vm2076 = vcmp.eq.s32.totalorder %v2012, 0
  %vm2077 = vcmp.eq.s32.totalorder %v2013, 0
  %vm2078 = vcmp.eq.s32.totalorder %v2014, 0
  %vm2079 = vcmp.eq.s32.totalorder %v2015, 0
  %vm2080 = vcmp.eq.s32.totalorder %v2016, 0
  %vm2081 = vcmp.eq.s32.totalorder %v2017, 0
  %vm2082 = vcmp.eq.s32.totalorder %v2018, 0
  %vm2083 = vcmp.eq.s32.totalorder %v2019, 0
  %vm2084 = vcmp.eq.s32.totalorder %v2020, 0
  %vm2085 = vcmp.eq.s32.totalorder %v2021, 0
  %vm2086 = vcmp.eq.s32.totalorder %v2022, 0
  %vm2087 = vcmp.eq.s32.totalorder %v2023, 0
  %vm2088 = vcmp.eq.s32.totalorder %v2024, 0
  %vm2089 = vcmp.eq.s32.totalorder %v2025, 0
  %vm2090 = vcmp.eq.s32.totalorder %v2026, 0
  %vm2091 = vcmp.eq.s32.totalorder %v2027, 0
  %vm2092 = vcmp.eq.s32.totalorder %v2028, 0
  %vm2093 = vcmp.eq.s32.totalorder %v2029, 0
  %vm2094 = vcmp.eq.s32.totalorder %v2030, 0
  %vm2095 = vcmp.eq.s32.totalorder %v2031, 0
  %vm2096 = vcmp.eq.s32.totalorder %v2032, 0
  %vm2097 = vcmp.eq.s32.totalorder %v2033, 0
  %vm2098 = vcmp.eq.s32.totalorder %v2034, 0
  %vm2099 = vcmp.eq.s32.totalorder %v2035, 0
  %vm2100 = vcmp.eq.s32.totalorder %v2036, 0
  %vm2101 = vcmp.eq.s32.totalorder %v2037, 0
  %vm2102 = vcmp.eq.s32.totalorder %v2038, 0
  %vm2103 = vcmp.eq.s32.totalorder %v2039, 0
  %vm2104 = vcmp.eq.s32.totalorder %v2040, 0
  %vm2105 = vcmp.eq.s32.totalorder %v2041, 0
  %vm2106 = vcmp.eq.s32.totalorder %v2042, 0
  %vm2107 = vcmp.eq.s32.totalorder %v2043, 0
  %vm2108 = vcmp.eq.s32.totalorder %v2044, 0
  %vm2109 = vcmp.eq.s32.totalorder %v2045, 0
  %vm2110 = vcmp.eq.s32.totalorder %v2046, 0
  %vm2111 = vcmp.eq.s32.totalorder %v2047, 0
  %vm2112 = vcmp.eq.s32.totalorder %v2048, 0
  %vm2113 = vcmp.eq.s32.totalorder %v2049, 0
  %vm2114 = vcmp.eq.s32.totalorder %v2050, 0
  %vm2115 = vcmp.eq.s32.totalorder %v2051, 0
  %vm2116 = vcmp.eq.s32.totalorder %v2052, 0
  %vm2117 = vcmp.eq.s32.totalorder %v2053, 0
  %vm2118 = vcmp.eq.s32.totalorder %v2054, 0
  %vm2119 = vcmp.eq.s32.totalorder %v2055, 0
  %vm2120 = vcmp.eq.s32.totalorder %v2056, 0
  %vm2121 = vcmp.eq.s32.totalorder %v2057, 0
  %vm2122 = vcmp.eq.s32.totalorder %v2058, 0
  %vm2123 = vcmp.eq.s32.totalorder %v2059, 0
  %vm2124 = vcmp.eq.s32.totalorder %v2060, 0
  %vm2125 = vmand %vm1933, %vm2061
  %vm2126 = vmand %vm1934, %vm2062
  %vm2127 = vmand %vm1935, %vm2063
  %vm2128 = vmand %vm1936, %vm2064
  %vm2129 = vmand %vm1937, %vm2065
  %vm2130 = vmand %vm1938, %vm2066
  %vm2131 = vmand %vm1939, %vm2067
  %vm2132 = vmand %vm1940, %vm2068
  %vm2133 = vmand %vm1941, %vm2069
  %vm2134 = vmand %vm1942, %vm2070
  %vm2135 = vmand %vm1943, %vm2071
  %vm2136 = vmand %vm1944, %vm2072
  %vm2137 = vmand %vm1945, %vm2073
  %vm2138 = vmand %vm1946, %vm2074
  %vm2139 = vmand %vm1947, %vm2075
  %vm2140 = vmand %vm1948, %vm2076
  %vm2141 = vmand %vm1949, %vm2077
  %vm2142 = vmand %vm1950, %vm2078
  %vm2143 = vmand %vm1951, %vm2079
  %vm2144 = vmand %vm1952, %vm2080
  %vm2145 = vmand %vm1953, %vm2081
  %vm2146 = vmand %vm1954, %vm2082
  %vm2147 = vmand %vm1955, %vm2083
  %vm2148 = vmand %vm1956, %vm2084
  %vm2149 = vmand %vm1957, %vm2085
  %vm2150 = vmand %vm1958, %vm2086
  %vm2151 = vmand %vm1959, %vm2087
  %vm2152 = vmand %vm1960, %vm2088
  %vm2153 = vmand %vm1961, %vm2089
  %vm2154 = vmand %vm1962, %vm2090
  %vm2155 = vmand %vm1963, %vm2091
  %vm2156 = vmand %vm1964, %vm2092
  %vm2157 = vmand %vm1965, %vm2093
  %vm2158 = vmand %vm1966, %vm2094
  %vm2159 = vmand %vm1967, %vm2095
  %vm2160 = vmand %vm1968, %vm2096
  %vm2161 = vmand %vm1969, %vm2097
  %vm2162 = vmand %vm1970, %vm2098
  %vm2163 = vmand %vm1971, %vm2099
  %vm2164 = vmand %vm1972, %vm2100
  %vm2165 = vmand %vm1973, %vm2101
  %vm2166 = vmand %vm1974, %vm2102
  %vm2167 = vmand %vm1975, %vm2103
  %vm2168 = vmand %vm1976, %vm2104
  %vm2169 = vmand %vm1977, %vm2105
  %vm2170 = vmand %vm1978, %vm2106
  %vm2171 = vmand %vm1979, %vm2107
  %vm2172 = vmand %vm1980, %vm2108
  %vm2173 = vmand %vm1981, %vm2109
  %vm2174 = vmand %vm1982, %vm2110
  %vm2175 = vmand %vm1983, %vm2111
  %vm2176 = vmand %vm1984, %vm2112
  %vm2177 = vmand %vm1985, %vm2113
  %vm2178 = vmand %vm1986, %vm2114
  %vm2179 = vmand %vm1987, %vm2115
  %vm2180 = vmand %vm1988, %vm2116
  %vm2181 = vmand %vm1989, %vm2117
  %vm2182 = vmand %vm1990, %vm2118
  %vm2183 = vmand %vm1991, %vm2119
  %vm2184 = vmand %vm1992, %vm2120
  %vm2185 = vmand %vm1993, %vm2121
  %vm2186 = vmand %vm1994, %vm2122
  %vm2187 = vmand %vm1995, %vm2123
  %vm2188 = vmand %vm1996, %vm2124
  %vm2189 = vcmp.eq.s32.totalorder %v14, %v1677
  %vm2190 = vcmp.eq.s32.totalorder %v14, %v1678
  %vm2191 = vcmp.eq.s32.totalorder %v14, %v1679
  %vm2192 = vcmp.eq.s32.totalorder %v14, %v1680
  %vm2193 = vcmp.eq.s32.totalorder %v14, %v1681
  %vm2194 = vcmp.eq.s32.totalorder %v14, %v1682
  %vm2195 = vcmp.eq.s32.totalorder %v14, %v1683
  %vm2196 = vcmp.eq.s32.totalorder %v14, %v1684
  %vm2197 = vcmp.eq.s32.totalorder %v14, %v1685
  %vm2198 = vcmp.eq.s32.totalorder %v14, %v1686
  %vm2199 = vcmp.eq.s32.totalorder %v14, %v1687
  %vm2200 = vcmp.eq.s32.totalorder %v14, %v1688
  %vm2201 = vcmp.eq.s32.totalorder %v14, %v1689
  %vm2202 = vcmp.eq.s32.totalorder %v14, %v1690
  %vm2203 = vcmp.eq.s32.totalorder %v14, %v1691
  %vm2204 = vcmp.eq.s32.totalorder %v14, %v1692
  %vm2205 = vcmp.eq.s32.totalorder %v14, %v1693
  %vm2206 = vcmp.eq.s32.totalorder %v14, %v1694
  %vm2207 = vcmp.eq.s32.totalorder %v14, %v1695
  %vm2208 = vcmp.eq.s32.totalorder %v14, %v1696
  %vm2209 = vcmp.eq.s32.totalorder %v14, %v1697
  %vm2210 = vcmp.eq.s32.totalorder %v14, %v1698
  %vm2211 = vcmp.eq.s32.totalorder %v14, %v1699
  %vm2212 = vcmp.eq.s32.totalorder %v14, %v1700
  %vm2213 = vcmp.eq.s32.totalorder %v14, %v1701
  %vm2214 = vcmp.eq.s32.totalorder %v14, %v1702
  %vm2215 = vcmp.eq.s32.totalorder %v14, %v1703
  %vm2216 = vcmp.eq.s32.totalorder %v14, %v1704
  %vm2217 = vcmp.eq.s32.totalorder %v14, %v1705
  %vm2218 = vcmp.eq.s32.totalorder %v14, %v1706
  %vm2219 = vcmp.eq.s32.totalorder %v14, %v1707
  %vm2220 = vcmp.eq.s32.totalorder %v14, %v1708
  %vm2221 = vcmp.eq.s32.totalorder %v14, %v1709
  %vm2222 = vcmp.eq.s32.totalorder %v14, %v1710
  %vm2223 = vcmp.eq.s32.totalorder %v14, %v1711
  %vm2224 = vcmp.eq.s32.totalorder %v14, %v1712
  %vm2225 = vcmp.eq.s32.totalorder %v14, %v1713
  %vm2226 = vcmp.eq.s32.totalorder %v14, %v1714
  %vm2227 = vcmp.eq.s32.totalorder %v14, %v1715
  %vm2228 = vcmp.eq.s32.totalorder %v14, %v1716
  %vm2229 = vcmp.eq.s32.totalorder %v14, %v1717
  %vm2230 = vcmp.eq.s32.totalorder %v14, %v1718
  %vm2231 = vcmp.eq.s32.totalorder %v14, %v1719
  %vm2232 = vcmp.eq.s32.totalorder %v14, %v1720
  %vm2233 = vcmp.eq.s32.totalorder %v14, %v1721
  %vm2234 = vcmp.eq.s32.totalorder %v14, %v1722
  %vm2235 = vcmp.eq.s32.totalorder %v14, %v1723
  %vm2236 = vcmp.eq.s32.totalorder %v14, %v1724
  %vm2237 = vcmp.eq.s32.totalorder %v14, %v1725
  %vm2238 = vcmp.eq.s32.totalorder %v14, %v1726
  %vm2239 = vcmp.eq.s32.totalorder %v14, %v1727
  %vm2240 = vcmp.eq.s32.totalorder %v14, %v1728
  %vm2241 = vcmp.eq.s32.totalorder %v14, %v1729
  %vm2242 = vcmp.eq.s32.totalorder %v14, %v1730
  %vm2243 = vcmp.eq.s32.totalorder %v14, %v1731
  %vm2244 = vcmp.eq.s32.totalorder %v14, %v1732
  %vm2245 = vcmp.eq.s32.totalorder %v14, %v1733
  %vm2246 = vcmp.eq.s32.totalorder %v14, %v1734
  %vm2247 = vcmp.eq.s32.totalorder %v14, %v1735
  %vm2248 = vcmp.eq.s32.totalorder %v14, %v1736
  %vm2249 = vcmp.eq.s32.totalorder %v14, %v1737
  %vm2250 = vcmp.eq.s32.totalorder %v14, %v1738
  %vm2251 = vcmp.eq.s32.totalorder %v14, %v1739
  %vm2252 = vcmp.eq.s32.totalorder %v14, %v1740
  %vm2253 = vmand %vm2125, %vm2189
  %vm2254 = vmand %vm2126, %vm2190
  %vm2255 = vmand %vm2127, %vm2191
  %vm2256 = vmand %vm2128, %vm2192
  %vm2257 = vmand %vm2129, %vm2193
  %vm2258 = vmand %vm2130, %vm2194
  %vm2259 = vmand %vm2131, %vm2195
  %vm2260 = vmand %vm2132, %vm2196
  %vm2261 = vmand %vm2133, %vm2197
  %vm2262 = vmand %vm2134, %vm2198
  %vm2263 = vmand %vm2135, %vm2199
  %vm2264 = vmand %vm2136, %vm2200
  %vm2265 = vmand %vm2137, %vm2201
  %vm2266 = vmand %vm2138, %vm2202
  %vm2267 = vmand %vm2139, %vm2203
  %vm2268 = vmand %vm2140, %vm2204
  %vm2269 = vmand %vm2141, %vm2205
  %vm2270 = vmand %vm2142, %vm2206
  %vm2271 = vmand %vm2143, %vm2207
  %vm2272 = vmand %vm2144, %vm2208
  %vm2273 = vmand %vm2145, %vm2209
  %vm2274 = vmand %vm2146, %vm2210
  %vm2275 = vmand %vm2147, %vm2211
  %vm2276 = vmand %vm2148, %vm2212
  %vm2277 = vmand %vm2149, %vm2213
  %vm2278 = vmand %vm2150, %vm2214
  %vm2279 = vmand %vm2151, %vm2215
  %vm2280 = vmand %vm2152, %vm2216
  %vm2281 = vmand %vm2153, %vm2217
  %vm2282 = vmand %vm2154, %vm2218
  %vm2283 = vmand %vm2155, %vm2219
  %vm2284 = vmand %vm2156, %vm2220
  %vm2285 = vmand %vm2157, %vm2221
  %vm2286 = vmand %vm2158, %vm2222
  %vm2287 = vmand %vm2159, %vm2223
  %vm2288 = vmand %vm2160, %vm2224
  %vm2289 = vmand %vm2161, %vm2225
  %vm2290 = vmand %vm2162, %vm2226
  %vm2291 = vmand %vm2163, %vm2227
  %vm2292 = vmand %vm2164, %vm2228
  %vm2293 = vmand %vm2165, %vm2229
  %vm2294 = vmand %vm2166, %vm2230
  %vm2295 = vmand %vm2167, %vm2231
  %vm2296 = vmand %vm2168, %vm2232
  %vm2297 = vmand %vm2169, %vm2233
  %vm2298 = vmand %vm2170, %vm2234
  %vm2299 = vmand %vm2171, %vm2235
  %vm2300 = vmand %vm2172, %vm2236
  %vm2301 = vmand %vm2173, %vm2237
  %vm2302 = vmand %vm2174, %vm2238
  %vm2303 = vmand %vm2175, %vm2239
  %vm2304 = vmand %vm2176, %vm2240
  %vm2305 = vmand %vm2177, %vm2241
  %vm2306 = vmand %vm2178, %vm2242
  %vm2307 = vmand %vm2179, %vm2243
  %vm2308 = vmand %vm2180, %vm2244
  %vm2309 = vmand %vm2181, %vm2245
  %vm2310 = vmand %vm2182, %vm2246
  %vm2311 = vmand %vm2183, %vm2247
  %vm2312 = vmand %vm2184, %vm2248
  %vm2313 = vmand %vm2185, %vm2249
  %vm2314 = vmand %vm2186, %vm2250
  %vm2315 = vmand %vm2187, %vm2251
  %vm2316 = vmand %vm2188, %vm2252
  %v2317 = vsel %vm2253, 1, 0
  %v2318 = vsel %vm2254, 1, 0
  %v2319 = vsel %vm2255, 1, 0
  %v2320 = vsel %vm2256, 1, 0
  %v2321 = vsel %vm2257, 1, 0
  %v2322 = vsel %vm2258, 1, 0
  %v2323 = vsel %vm2259, 1, 0
  %v2324 = vsel %vm2260, 1, 0
  %v2325 = vsel %vm2261, 1, 0
  %v2326 = vsel %vm2262, 1, 0
  %v2327 = vsel %vm2263, 1, 0
  %v2328 = vsel %vm2264, 1, 0
  %v2329 = vsel %vm2265, 1, 0
  %v2330 = vsel %vm2266, 1, 0
  %v2331 = vsel %vm2267, 1, 0
  %v2332 = vsel %vm2268, 1, 0
  %v2333 = vsel %vm2269, 1, 0
  %v2334 = vsel %vm2270, 1, 0
  %v2335 = vsel %vm2271, 1, 0
  %v2336 = vsel %vm2272, 1, 0
  %v2337 = vsel %vm2273, 1, 0
  %v2338 = vsel %vm2274, 1, 0
  %v2339 = vsel %vm2275, 1, 0
  %v2340 = vsel %vm2276, 1, 0
  %v2341 = vsel %vm2277, 1, 0
  %v2342 = vsel %vm2278, 1, 0
  %v2343 = vsel %vm2279, 1, 0
  %v2344 = vsel %vm2280, 1, 0
  %v2345 = vsel %vm2281, 1, 0
  %v2346 = vsel %vm2282, 1, 0
  %v2347 = vsel %vm2283, 1, 0
  %v2348 = vsel %vm2284, 1, 0
  %v2349 = vsel %vm2285, 1, 0
  %v2350 = vsel %vm2286, 1, 0
  %v2351 = vsel %vm2287, 1, 0
  %v2352 = vsel %vm2288, 1, 0
  %v2353 = vsel %vm2289, 1, 0
  %v2354 = vsel %vm2290, 1, 0
  %v2355 = vsel %vm2291, 1, 0
  %v2356 = vsel %vm2292, 1, 0
  %v2357 = vsel %vm2293, 1, 0
  %v2358 = vsel %vm2294, 1, 0
  %v2359 = vsel %vm2295, 1, 0
  %v2360 = vsel %vm2296, 1, 0
  %v2361 = vsel %vm2297, 1, 0
  %v2362 = vsel %vm2298, 1, 0
  %v2363 = vsel %vm2299, 1, 0
  %v2364 = vsel %vm2300, 1, 0
  %v2365 = vsel %vm2301, 1, 0
  %v2366 = vsel %vm2302, 1, 0
  %v2367 = vsel %vm2303, 1, 0
  %v2368 = vsel %vm2304, 1, 0
  %v2369 = vsel %vm2305, 1, 0
  %v2370 = vsel %vm2306, 1, 0
  %v2371 = vsel %vm2307, 1, 0
  %v2372 = vsel %vm2308, 1, 0
  %v2373 = vsel %vm2309, 1, 0
  %v2374 = vsel %vm2310, 1, 0
  %v2375 = vsel %vm2311, 1, 0
  %v2376 = vsel %vm2312, 1, 0
  %v2377 = vsel %vm2313, 1, 0
  %v2378 = vsel %vm2314, 1, 0
  %v2379 = vsel %vm2315, 1, 0
  %v2380 = vsel %vm2316, 1, 0
  %v2381 = vcvt.s32.f32 %v2317
  %v2382 = vcvt.s32.f32 %v2318
  %v2383 = vcvt.s32.f32 %v2319
  %v2384 = vcvt.s32.f32 %v2320
  %v2385 = vcvt.s32.f32 %v2321
  %v2386 = vcvt.s32.f32 %v2322
  %v2387 = vcvt.s32.f32 %v2323
  %v2388 = vcvt.s32.f32 %v2324
  %v2389 = vcvt.s32.f32 %v2325
  %v2390 = vcvt.s32.f32 %v2326
  %v2391 = vcvt.s32.f32 %v2327
  %v2392 = vcvt.s32.f32 %v2328
  %v2393 = vcvt.s32.f32 %v2329
  %v2394 = vcvt.s32.f32 %v2330
  %v2395 = vcvt.s32.f32 %v2331
  %v2396 = vcvt.s32.f32 %v2332
  %v2397 = vcvt.s32.f32 %v2333
  %v2398 = vcvt.s32.f32 %v2334
  %v2399 = vcvt.s32.f32 %v2335
  %v2400 = vcvt.s32.f32 %v2336
  %v2401 = vcvt.s32.f32 %v2337
  %v2402 = vcvt.s32.f32 %v2338
  %v2403 = vcvt.s32.f32 %v2339
  %v2404 = vcvt.s32.f32 %v2340
  %v2405 = vcvt.s32.f32 %v2341
  %v2406 = vcvt.s32.f32 %v2342
  %v2407 = vcvt.s32.f32 %v2343
  %v2408 = vcvt.s32.f32 %v2344
  %v2409 = vcvt.s32.f32 %v2345
  %v2410 = vcvt.s32.f32 %v2346
  %v2411 = vcvt.s32.f32 %v2347
  %v2412 = vcvt.s32.f32 %v2348
  %v2413 = vcvt.s32.f32 %v2349
  %v2414 = vcvt.s32.f32 %v2350
  %v2415 = vcvt.s32.f32 %v2351
  %v2416 = vcvt.s32.f32 %v2352
  %v2417 = vcvt.s32.f32 %v2353
  %v2418 = vcvt.s32.f32 %v2354
  %v2419 = vcvt.s32.f32 %v2355
  %v2420 = vcvt.s32.f32 %v2356
  %v2421 = vcvt.s32.f32 %v2357
  %v2422 = vcvt.s32.f32 %v2358
  %v2423 = vcvt.s32.f32 %v2359
  %v2424 = vcvt.s32.f32 %v2360
  %v2425 = vcvt.s32.f32 %v2361
  %v2426 = vcvt.s32.f32 %v2362
  %v2427 = vcvt.s32.f32 %v2363
  %v2428 = vcvt.s32.f32 %v2364
  %v2429 = vcvt.s32.f32 %v2365
  %v2430 = vcvt.s32.f32 %v2366
  %v2431 = vcvt.s32.f32 %v2367
  %v2432 = vcvt.s32.f32 %v2368
  %v2433 = vcvt.s32.f32 %v2369
  %v2434 = vcvt.s32.f32 %v2370
  %v2435 = vcvt.s32.f32 %v2371
  %v2436 = vcvt.s32.f32 %v2372
  %v2437 = vcvt.s32.f32 %v2373
  %v2438 = vcvt.s32.f32 %v2374
  %v2439 = vcvt.s32.f32 %v2375
  %v2440 = vcvt.s32.f32 %v2376
  %v2441 = vcvt.s32.f32 %v2377
  %v2442 = vcvt.s32.f32 %v2378
  %v2443 = vcvt.s32.f32 %v2379
  %v2444 = vcvt.s32.f32 %v2380
  %2445 = vmatprep.subr.mxu0 0.0
  %2446 = vmatpush1.msra.mxu0 %v2381
  %2447 = vmatprep.subr.mxu0 0.0
  %2448 = vmatpush1.msra.mxu0 %v2382
  %2449 = vmatprep.subr.mxu0 0.0
  %2450 = vmatpush1.msra.mxu0 %v2383
  %2451 = vmatprep.subr.mxu0 0.0
  %2452 = vmatpush1.msra.mxu0 %v2384
  %2453 = vmatprep.subr.mxu0 0.0
  %2454 = vmatpush1.msra.mxu0 %v2385
  %2455 = vmatprep.subr.mxu0 0.0
  %2456 = vmatpush1.msra.mxu0 %v2386
  %2457 = vmatprep.subr.mxu0 0.0
  %2458 = vmatpush1.msra.mxu0 %v2387
  %2459 = vmatprep.subr.mxu0 0.0
  %2460 = vmatpush1.msra.mxu0 %v2388
  %2461 = vmatprep.subr.mxu0 0.0
  %2462 = vmatpush1.msra.mxu0 %v2389
  %2463 = vmatprep.subr.mxu0 0.0
  %2464 = vmatpush1.msra.mxu0 %v2390
  %2465 = vmatprep.subr.mxu0 0.0
  %2466 = vmatpush1.msra.mxu0 %v2391
  %2467 = vmatprep.subr.mxu0 0.0
  %2468 = vmatpush1.msra.mxu0 %v2392
  %2469 = vmatprep.subr.mxu0 0.0
  %2470 = vmatpush1.msra.mxu0 %v2393
  %2471 = vmatprep.subr.mxu0 0.0
  %2472 = vmatpush1.msra.mxu0 %v2394
  %2473 = vmatprep.subr.mxu0 0.0
  %2474 = vmatpush1.msra.mxu0 %v2395
  %2475 = vmatprep.subr.mxu0 0.0
  %2476 = vmatpush1.msra.mxu0 %v2396
  %2477 = vmatprep.subr.mxu0 0.0
  %2478 = vmatpush1.msra.mxu0 %v2397
  %2479 = vmatprep.subr.mxu0 0.0
  %2480 = vmatpush1.msra.mxu0 %v2398
  %2481 = vmatprep.subr.mxu0 0.0
  %2482 = vmatpush1.msra.mxu0 %v2399
  %2483 = vmatprep.subr.mxu0 0.0
  %2484 = vmatpush1.msra.mxu0 %v2400
  %2485 = vmatprep.subr.mxu0 0.0
  %2486 = vmatpush1.msra.mxu0 %v2401
  %2487 = vmatprep.subr.mxu0 0.0
  %2488 = vmatpush1.msra.mxu0 %v2402
  %2489 = vmatprep.subr.mxu0 0.0
  %2490 = vmatpush1.msra.mxu0 %v2403
  %2491 = vmatprep.subr.mxu0 0.0
  %2492 = vmatpush1.msra.mxu0 %v2404
  %2493 = vmatprep.subr.mxu0 0.0
  %2494 = vmatpush1.msra.mxu0 %v2405
  %2495 = vmatprep.subr.mxu0 0.0
  %2496 = vmatpush1.msra.mxu0 %v2406
  %2497 = vmatprep.subr.mxu0 0.0
  %2498 = vmatpush1.msra.mxu0 %v2407
  %2499 = vmatprep.subr.mxu0 0.0
  %2500 = vmatpush1.msra.mxu0 %v2408
  %2501 = vmatprep.subr.mxu0 0.0
  %2502 = vmatpush1.msra.mxu0 %v2409
  %2503 = vmatprep.subr.mxu0 0.0
  %2504 = vmatpush1.msra.mxu0 %v2410
  %2505 = vmatprep.subr.mxu0 0.0
  %2506 = vmatpush1.msra.mxu0 %v2411
  %2507 = vmatprep.subr.mxu0 0.0
  %2508 = vmatpush1.msra.mxu0 %v2412
  %2509 = vmatprep.mubr.f32.mxu0 %v1033
  %2510 = vmatmul.mubr.f32.gmra.mrb[0].mxu0 %v1032
  %v2511 = vpop.f32.mrb[0].mxu0
  %v2512 = vadd.f32 0.0, %v2511
  %v2513 = vpop.f32.mrb[0].mxu0
  %2514 = vdwg.mxu0
  %2515 = vmatprep.subr.mxu0 0.0
  %2516 = vmatpush1.msra.mxu0 %v2413
  %2517 = vmatprep.subr.mxu0 0.0
  %2518 = vmatpush1.msra.mxu0 %v2414
  %2519 = vmatprep.subr.mxu0 0.0
  %2520 = vmatpush1.msra.mxu0 %v2415
  %2521 = vmatprep.subr.mxu0 0.0
  %2522 = vmatpush1.msra.mxu0 %v2416
  %2523 = vmatprep.subr.mxu0 0.0
  %2524 = vmatpush1.msra.mxu0 %v2417
  %2525 = vmatprep.subr.mxu0 0.0
  %2526 = vmatpush1.msra.mxu0 %v2418
  %2527 = vmatprep.subr.mxu0 0.0
  %2528 = vmatpush1.msra.mxu0 %v2419
  %2529 = vmatprep.subr.mxu0 0.0
  %2530 = vmatpush1.msra.mxu0 %v2420
  %2531 = vmatprep.subr.mxu0 0.0
  %2532 = vmatpush1.msra.mxu0 %v2421
  %2533 = vmatprep.subr.mxu0 0.0
  %2534 = vmatpush1.msra.mxu0 %v2422
  %2535 = vmatprep.subr.mxu0 0.0
  %2536 = vmatpush1.msra.mxu0 %v2423
  %2537 = vmatprep.subr.mxu0 0.0
  %2538 = vmatpush1.msra.mxu0 %v2424
  %2539 = vmatprep.subr.mxu0 0.0
  %2540 = vmatpush1.msra.mxu0 %v2425
  %2541 = vmatprep.subr.mxu0 0.0
  %2542 = vmatpush1.msra.mxu0 %v2426
  %2543 = vmatprep.subr.mxu0 0.0
  %2544 = vmatpush1.msra.mxu0 %v2427
  %2545 = vmatprep.subr.mxu0 0.0
  %2546 = vmatpush1.msra.mxu0 %v2428
  %2547 = vmatprep.subr.mxu0 0.0
  %2548 = vmatpush1.msra.mxu0 %v2429
  %2549 = vmatprep.subr.mxu0 0.0
  %2550 = vmatpush1.msra.mxu0 %v2430
  %2551 = vmatprep.subr.mxu0 0.0
  %2552 = vmatpush1.msra.mxu0 %v2431
  %2553 = vmatprep.subr.mxu0 0.0
  %2554 = vmatpush1.msra.mxu0 %v2432
  %2555 = vmatprep.subr.mxu0 0.0
  %2556 = vmatpush1.msra.mxu0 %v2433
  %2557 = vmatprep.subr.mxu0 0.0
  %2558 = vmatpush1.msra.mxu0 %v2434
  %2559 = vmatprep.subr.mxu0 0.0
  %2560 = vmatpush1.msra.mxu0 %v2435
  %2561 = vmatprep.subr.mxu0 0.0
  %2562 = vmatpush1.msra.mxu0 %v2436
  %2563 = vmatprep.subr.mxu0 0.0
  %2564 = vmatpush1.msra.mxu0 %v2437
  %2565 = vmatprep.subr.mxu0 0.0
  %2566 = vmatpush1.msra.mxu0 %v2438
  %2567 = vmatprep.subr.mxu0 0.0
  %2568 = vmatpush1.msra.mxu0 %v2439
  %2569 = vmatprep.subr.mxu0 0.0
  %2570 = vmatpush1.msra.mxu0 %v2440
  %2571 = vmatprep.subr.mxu0 0.0
  %2572 = vmatpush1.msra.mxu0 %v2441
  %2573 = vmatprep.subr.mxu0 0.0
  %2574 = vmatpush1.msra.mxu0 %v2442
  %2575 = vmatprep.subr.mxu0 0.0
  %2576 = vmatpush1.msra.mxu0 %v2443
  %2577 = vmatprep.subr.mxu0 0.0
  %2578 = vmatpush1.msra.mxu0 %v2444
  %2579 = vmatprep.mubr.f32.mxu0 %v1035
  %2580 = vmatmul.mubr.f32.gmra.mrb[0].mxu0 %v1034
  %v2581 = vpop.f32.mrb[0].mxu0
  %v2582 = vadd.f32 %v2512, %v2581
  %v2583 = vpop.f32.mrb[0].mxu0
  %2584 = vdwg.mxu0
  %v2585 = vld [vmem:[%s1 + $0x10] sm:$0xff]
  %v2586 = vld [vmem:[%s1 + $0x18] sm:$0xf]
  %vm2587 = vcmask 64512
  %v2589 = vsel %vm2587, %v2585, 0
  %v2592 = vsel %vm2587, %v2586, 0
  %2594 = vmatprep.subr.mxu0 0.0
  %2595 = vmatpush1.msra.mxu0 %v2582
  %2596 = vmatprep.subr.mxu0 0.0
  %2597 = vmatpush1.msra.mxu0 0.0
  %2598 = vmatprep.subr.mxu0 0.0
  %2599 = vmatpush1.msra.mxu0 0.0
  %2600 = vmatprep.subr.mxu0 0.0
  %2601 = vmatpush1.msra.mxu0 0.0
  %2602 = vmatprep.subr.mxu0 0.0
  %2603 = vmatpush1.msra.mxu0 0.0
  %2604 = vmatprep.subr.mxu0 0.0
  %2605 = vmatpush1.msra.mxu0 0.0
  %2606 = vmatprep.subr.mxu0 0.0
  %2607 = vmatpush1.msra.mxu0 0.0
  %2608 = vmatprep.subr.mxu0 0.0
  %2609 = vmatpush1.msra.mxu0 0.0
  %2610 = vmatprep.subr.mxu0 0.0
  %2611 = vmatpush1.msra.mxu0 0.0
  %2612 = vmatprep.subr.mxu0 0.0
  %2613 = vmatpush1.msra.mxu0 0.0
  %2614 = vmatprep.subr.mxu0 0.0
  %2615 = vmatpush1.msra.mxu0 0.0
  %2616 = vmatprep.subr.mxu0 0.0
  %2617 = vmatpush1.msra.mxu0 0.0
  %2618 = vmatprep.subr.mxu0 0.0
  %2619 = vmatpush1.msra.mxu0 0.0
  %2620 = vmatprep.subr.mxu0 0.0
  %2621 = vmatpush1.msra.mxu0 0.0
  %2622 = vmatprep.subr.mxu0 0.0
  %2623 = vmatpush1.msra.mxu0 0.0
  %2624 = vmatprep.subr.mxu0 0.0
  %2625 = vmatpush1.msra.mxu0 0.0
  %2626 = vmatprep.subr.mxu0 0.0
  %2627 = vmatpush1.msra.mxu0 0.0
  %2628 = vmatprep.subr.mxu0 0.0
  %2629 = vmatpush1.msra.mxu0 0.0
  %2630 = vmatprep.subr.mxu0 0.0
  %2631 = vmatpush1.msra.mxu0 0.0
  %2632 = vmatprep.subr.mxu0 0.0
  %2633 = vmatpush1.msra.mxu0 0.0
  %2634 = vmatprep.subr.mxu0 0.0
  %2635 = vmatpush1.msra.mxu0 0.0
  %2636 = vmatprep.subr.mxu0 0.0
  %2637 = vmatpush1.msra.mxu0 0.0
  %2638 = vmatprep.subr.mxu0 0.0
  %2639 = vmatpush1.msra.mxu0 0.0
  %2640 = vmatprep.subr.mxu0 0.0
  %2641 = vmatpush1.msra.mxu0 0.0
  %2642 = vmatprep.subr.mxu0 0.0
  %2643 = vmatpush1.msra.mxu0 0.0
  %2644 = vmatprep.subr.mxu0 0.0
  %2645 = vmatpush1.msra.mxu0 0.0
  %2646 = vmatprep.subr.mxu0 0.0
  %2647 = vmatpush1.msra.mxu0 0.0
  %2648 = vmatprep.subr.mxu0 0.0
  %2649 = vmatpush1.msra.mxu0 0.0
  %2650 = vmatprep.subr.mxu0 0.0
  %2651 = vmatpush1.msra.mxu0 0.0
  %2652 = vmatprep.subr.mxu0 0.0
  %2653 = vmatpush1.msra.mxu0 0.0
  %2654 = vmatprep.subr.mxu0 0.0
  %2655 = vmatpush1.msra.mxu0 0.0
  %2656 = vmatprep.subr.mxu0 0.0
  %2657 = vmatpush1.msra.mxu0 0.0
  %2658 = vmatprep.mubr.f32.mxu0 0.0
  %2659 = vmatmul.mubr.f32.gmra.mrb[0].mxu0 %v2589
  %v2660 = vpop.f32.mrb[0].mxu0
  %v2661 = vadd.f32 0.0, %v2660
  %v2662 = vpop.f32.mrb[0].mxu0
  %2663 = vmatprep.mubr.f32.mxu0 0.0
  %2664 = vmatmul.mubr.f32.gmra.mrb[0].mxu0 %v2592
  %v2665 = vpop.f32.mrb[0].mxu0
  %v2666 = vadd.f32 0.0, %v2665
  %v2667 = vpop.f32.mrb[0].mxu0
  %2668 = vdwg.mxu0
  %v2669 = vmul.f32 %v2661, %v2661
  %v2670 = vmul.f32 %v2666, %v2666
  %v2673 = vrot.slane %v2669, 4
  %v2674 = vrot.slane %v2670, 4
  %v2675 = vsel %vm449, %v2673, %v2674
  %v2678 = vsel %vm449, %v2666, %v2673
  %2679 = vadd.xlane.f32.xlu0 %v2661
  %v2680 = vpop.xlane.xlu0 %2679
  %2681 = vadd.xlane.f32.xlu0 %v2678
  %v2682 = vpop.xlane.xlu0 %2681
  %2683 = vadd.xlane.f32.xlu0 %v2675
  %v2684 = vpop.xlane.xlu0 %2683
  %v2685 = vmul.f32 %v2680, 0.0078125
  %v2686 = vmul.f32 %v2682, 0.0078125
  %v2687 = vmul.f32 %v2684, 0.0078125
  %v2688 = vmul.f32 %v2685, %v2685
  %v2689 = vmul.f32 %v2686, %v2686
  %v2692 = vrot.slane %v2688, 4
  %v2693 = vrot.slane %v2689, 4
  %v2694 = vsel %vm449, %v2692, %v2693
  %v2697 = vsub.f32 %v2686, %v2692
  %v2698 = vsub.f32 %v2687, %v2694
  %v2699 = vadd.f32 %v2697, 1e-05
  %v2700 = vadd.f32 %v2698, 1e-05
  %v2701 = vrsqrt.pop %v2699
  %v2702 = vrsqrt.pop %v2700
  %v2705 = vrot.slane %v2701, 4
  %v2706 = vrot.slane %v2702, 4
  %v2707 = vsel %vm449, %v2705, %v2706
  %2708 = vrot.lane.b32.xlu0 %v2707, 126
  %v2709 = vpop.permute.xlu0 %2708
  %2710 = vrot.lane.b32.xlu0 %v2706, 126
  %v2711 = vpop.permute.xlu0 %2710
  %v2714 = vmul.f32 %v2585, %v2709
  %v2715 = vmul.f32 %v2586, %v2711
  %v2716 = vmul.f32 %v2685, %v2714
  %v2717 = vmul.f32 %v2686, %v2715
  %2720 = vrot.lane.b32.xlu0 %v2716, 1
  %v2721 = vpop.permute.xlu0 %2720
  %2722 = vrot.lane.b32.xlu0 %v2717, 1
  %v2723 = vpop.permute.xlu0 %2722
  %v2726 = vsub.f32 %v2585, %v2721
  %v2727 = vsub.f32 %v2586, %v2723
  %2729 = vset.pattern.permute.xlu0 126
  %2730 = vperm.xlu0 %2729, %v2714
  %v2731 = vpop.permute.xlu0 %2730
  %2734 = vset.pattern.permute.xlu0 126
  %2735 = vperm.xlu0 %2734, %v2715
  %v2736 = vpop.permute.xlu0 %2735
  %v2738 = vmul.f32 %v2661, %v2731
  %v2739 = vmul.f32 %v2666, %v2736
  %2741 = vset.pattern.permute.xlu0 127
  %2742 = vperm.xlu0 %2741, %v2726
  %v2743 = vpop.permute.xlu0 %2742
  %2746 = vset.pattern.permute.xlu0 127
  %2747 = vperm.xlu0 %2746, %v2727
  %v2748 = vpop.permute.xlu0 %2747
  %v2750 = vadd.f32 %v2738, %v2743
  %v2751 = vadd.f32 %v2739, %v2748
  %v2752 = vmax.f32 %v2750, 0.0
  %v2753 = vmax.f32 %v2751, 0.0
  %v2754 = vld [vmem:[%s1 + $0x20] sm:$0xff]
  %v2755 = vld [vmem:[%s1 + $0x28] sm:$0xf]
  %v2756 = vand.u32 %v14, 63
  %v2757 = vshra.s32 %v2756, 3
  %v2758 = vand.u32 %v2756, 7
  %vm2759 = vcmp.lt.s32.totalorder %v14, 128
  %vm2760 = vcmp.ge.s32.totalorder %v2757, 1
  %vm2761 = vmand %vm2759, %vm2760
  %vm2762 = vcmp.ge.s32.totalorder %v2758, 1
  %vm2763 = vmand %vm2761, %vm2762
  %v2764 = vsel %vm2763, 1, 0
  %v2765 = vcvt.s32.f32 %v2764
  %v2766 = vsel %vm2761, 1, 0
  %v2767 = vcvt.s32.f32 %v2766
  %vm2768 = vcmp.lt.s32.totalorder %v2758, 7
  %vm2769 = vmand %vm2761, %vm2768
  %v2770 = vsel %vm2769, 1, 0
  %v2771 = vcvt.s32.f32 %v2770
  %vm2772 = vmand %vm2759, %vm2762
  %v2773 = vsel %vm2772, 1, 0
  %v2774 = vcvt.s32.f32 %v2773
  %v2775 = vsel %vm2759, 1, 0
  %v2776 = vcvt.s32.f32 %v2775
  %vm2777 = vmand %vm2759, %vm2768
  %v2778 = vsel %vm2777, 1, 0
  %v2779 = vcvt.s32.f32 %v2778
  %vm2780 = vcmp.lt.s32.totalorder %v2757, 7
  %vm2781 = vmand %vm2759, %vm2780
  %vm2782 = vmand %vm2781, %vm2762
  %v2783 = vsel %vm2782, 1, 0
  %v2784 = vcvt.s32.f32 %v2783
  %v2785 = vsel %vm2781, 1, 0
  %v2786 = vcvt.s32.f32 %v2785
  %vm2787 = vmand %vm2781, %vm2768
  %v2788 = vsel %vm2787, 1, 0
  %v2789 = vcvt.s32.f32 %v2788
  %2790 = vrot.lane.b32.xlu0 %v2752, 9
  %v2791 = vpop.permute.xlu0 %2790
  %2792 = vrot.lane.b32.xlu0 %v2753, 9
  %v2793 = vpop.permute.xlu0 %2792
  %v2794 = vmul.f32 %v2791, %v2765
  %v2795 = vmul.f32 %v2793, %v2765
  %2796 = vrot.lane.b32.xlu0 %v2752, 8
  %v2797 = vpop.permute.xlu0 %2796
  %2798 = vrot.lane.b32.xlu0 %v2753, 8
  %v2799 = vpop.permute.xlu0 %2798
  %v2800 = vmul.f32 %v2797, %v2767
  %v2801 = vmul.f32 %v2799, %v2767
  %2802 = vrot.lane.b32.xlu0 %v2752, 7
  %v2803 = vpop.permute.xlu0 %2802
  %2804 = vrot.lane.b32.xlu0 %v2753, 7
  %v2805 = vpop.permute.xlu0 %2804
  %v2806 = vmul.f32 %v2803, %v2771
  %v2807 = vmul.f32 %v2805, %v2771
  %2808 = vrot.lane.b32.xlu0 %v2752, 1
  %v2809 = vpop.permute.xlu0 %2808
  %2810 = vrot.lane.b32.xlu0 %v2753, 1
  %v2811 = vpop.permute.xlu0 %2810
  %v2812 = vmul.f32 %v2809, %v2774
  %v2813 = vmul.f32 %v2811, %v2774
  %v2814 = vmul.f32 %v2752, %v2776
  %v2815 = vmul.f32 %v2753, %v2776
  %2816 = vrot.lane.b32.xlu0 %v2752, 127
  %v2817 = vpop.permute.xlu0 %2816
  %2818 = vrot.lane.b32.xlu0 %v2753, 127
  %v2819 = vpop.permute.xlu0 %2818
  %v2820 = vmul.f32 %v2817, %v2779
  %v2821 = vmul.f32 %v2819, %v2779
  %2822 = vrot.lane.b32.xlu0 %v2752, 121
  %v2823 = vpop.permute.xlu0 %2822
  %2824 = vrot.lane.b32.xlu0 %v2753, 121
  %v2825 = vpop.permute.xlu0 %2824
  %v2826 = vmul.f32 %v2823, %v2784
  %v2827 = vmul.f32 %v2825, %v2784
  %2828 = vrot.lane.b32.xlu0 %v2752, 120
  %v2829 = vpop.permute.xlu0 %2828
  %2830 = vrot.lane.b32.xlu0 %v2753, 120
  %v2831 = vpop.permute.xlu0 %2830
  %v2832 = vmul.f32 %v2829, %v2786
  %v2833 = vmul.f32 %v2831, %v2786
  %2834 = vrot.lane.b32.xlu0 %v2752, 119
  %v2835 = vpop.permute.xlu0 %2834
  %2836 = vrot.lane.b32.xlu0 %v2753, 119
  %v2837 = vpop.permute.xlu0 %2836
  %v2838 = vmul.f32 %v2835, %v2789
  %v2839 = vmul.f32 %v2837, %v2789
  %v2842 = vrot.slane %v2800, 4
  %v2843 = vrot.slane %v2801, 4
  %v2844 = vsel %vm449, %v2842, %v2843
  %v2849 = vrot.slane %v2812, 4
  %v2850 = vrot.slane %v2813, 4
  %v2851 = vsel %vm449, %v2849, %v2850
  %v2856 = vrot.slane %v2820, 4
  %v2857 = vrot.slane %v2821, 4
  %v2858 = vsel %vm449, %v2856, %v2857
  %v2863 = vrot.slane %v2832, 4
  %v2864 = vrot.slane %v2833, 4
  %v2865 = vsel %vm449, %v2863, %v2864
  %v2868 = vsel %vm449, %v2795, %v2842
  %v2869 = vsel %vm449, %v2807, %v2849
  %v2870 = vsel %vm449, %v2815, %v2856
  %v2871 = vsel %vm449, %v2827, %v2863
  %vm2872 = vcmask 883712
  %v2874 = vsel %vm2872, %v2754, 0
  %v2877 = vsel %vm2872, %v2755, 0
  %v2880 = vsel %vm449, %v2839, 0
  %2882 = vmatprep.subr.mxu0 0.0
  %2883 = vmatpush1.msra.mxu0 %v2794
  %2884 = vmatprep.subr.mxu0 0.0
  %2885 = vmatpush1.msra.mxu0 %v2868
  %2886 = vmatprep.subr.mxu0 0.0
  %2887 = vmatpush1.msra.mxu0 %v2844
  %2888 = vmatprep.subr.mxu0 0.0
  %2889 = vmatpush1.msra.mxu0 %v2806
  %2890 = vmatprep.subr.mxu0 0.0
  %2891 = vmatpush1.msra.mxu0 %v2869
  %2892 = vmatprep.subr.mxu0 0.0
  %2893 = vmatpush1.msra.mxu0 %v2851
  %2894 = vmatprep.subr.mxu0 0.0
  %2895 = vmatpush1.msra.mxu0 %v2814
  %2896 = vmatprep.subr.mxu0 0.0
  %2897 = vmatpush1.msra.mxu0 %v2870
  %2898 = vmatprep.subr.mxu0 0.0
  %2899 = vmatpush1.msra.mxu0 %v2858
  %2900 = vmatprep.subr.mxu0 0.0
  %2901 = vmatpush1.msra.mxu0 %v2826
  %2902 = vmatprep.subr.mxu0 0.0
  %2903 = vmatpush1.msra.mxu0 %v2871
  %2904 = vmatprep.subr.mxu0 0.0
  %2905 = vmatpush1.msra.mxu0 %v2865
  %2906 = vmatprep.subr.mxu0 0.0
  %2907 = vmatpush1.msra.mxu0 %v2838
  %2908 = vmatprep.subr.mxu0 0.0
  %2909 = vmatpush1.msra.mxu0 %v2880
  %2910 = vmatprep.subr.mxu0 0.0
  %2911 = vmatpush1.msra.mxu0 0.0
  %2912 = vmatprep.subr.mxu0 0.0
  %2913 = vmatpush1.msra.mxu0 0.0
  %2914 = vmatprep.subr.mxu0 0.0
  %2915 = vmatpush1.msra.mxu0 0.0
  %2916 = vmatprep.subr.mxu0 0.0
  %2917 = vmatpush1.msra.mxu0 0.0
  %2918 = vmatprep.subr.mxu0 0.0
  %2919 = vmatpush1.msra.mxu0 0.0
  %2920 = vmatprep.subr.mxu0 0.0
  %2921 = vmatpush1.msra.mxu0 0.0
  %2922 = vmatprep.subr.mxu0 0.0
  %2923 = vmatpush1.msra.mxu0 0.0
  %2924 = vmatprep.subr.mxu0 0.0
  %2925 = vmatpush1.msra.mxu0 0.0
  %2926 = vmatprep.subr.mxu0 0.0
  %2927 = vmatpush1.msra.mxu0 0.0
  %2928 = vmatprep.subr.mxu0 0.0
  %2929 = vmatpush1.msra.mxu0 0.0
  %2930 = vmatprep.subr.mxu0 0.0
  %2931 = vmatpush1.msra.mxu0 0.0
  %2932 = vmatprep.subr.mxu0 0.0
  %2933 = vmatpush1.msra.mxu0 0.0
  %2934 = vmatprep.subr.mxu0 0.0
  %2935 = vmatpush1.msra.mxu0 0.0
  %2936 = vmatprep.subr.mxu0 0.0
  %2937 = vmatpush1.msra.mxu0 0.0
  %2938 = vmatprep.subr.mxu0 0.0
  %2939 = vmatpush1.msra.mxu0 0.0
  %2940 = vmatprep.subr.mxu0 0.0
  %2941 = vmatpush1.msra.mxu0 0.0
  %2942 = vmatprep.subr.mxu0 0.0
  %2943 = vmatpush1.msra.mxu0 0.0
  %2944 = vmatprep.subr.mxu0 0.0
  %2945 = vmatpush1.msra.mxu0 0.0
  %2946 = vmatprep.mubr.f32.mxu0 0.0
  %2947 = vmatmul.mubr.f32.gmra.mrb[0].mxu0 %v2874
  %v2948 = vpop.f32.mrb[0].mxu0
  %v2949 = vadd.f32 0.0, %v2948
  %v2950 = vpop.f32.mrb[0].mxu0
  %2951 = vmatprep.mubr.f32.mxu0 0.0
  %2952 = vmatmul.mubr.f32.gmra.mrb[0].mxu0 %v2877
  %v2953 = vpop.f32.mrb[0].mxu0
  %v2954 = vadd.f32 0.0, %v2953
  %v2955 = vpop.f32.mrb[0].mxu0
  %2956 = vdwg.mxu0
  %v2957 = vmul.f32 %v2949, %v2949
  %v2958 = vmul.f32 %v2954, %v2954
  %v2961 = vrot.slane %v2957, 4
  %v2962 = vrot.slane %v2958, 4
  %v2963 = vsel %vm449, %v2961, %v2962
  %v2966 = vsel %vm449, %v2954, %v2961
  %2967 = vadd.xlane.f32.xlu0 %v2949
  %v2968 = vpop.xlane.xlu0 %2967
  %2969 = vadd.xlane.f32.xlu0 %v2966
  %v2970 = vpop.xlane.xlu0 %2969
  %2971 = vadd.xlane.f32.xlu0 %v2963
  %v2972 = vpop.xlane.xlu0 %2971
  %v2973 = vmul.f32 %v2968, 0.0078125
  %v2974 = vmul.f32 %v2970, 0.0078125
  %v2975 = vmul.f32 %v2972, 0.0078125
  %v2976 = vmul.f32 %v2973, %v2973
  %v2977 = vmul.f32 %v2974, %v2974
  %v2980 = vrot.slane %v2976, 4
  %v2981 = vrot.slane %v2977, 4
  %v2982 = vsel %vm449, %v2980, %v2981
  %v2985 = vsub.f32 %v2974, %v2980
  %v2986 = vsub.f32 %v2975, %v2982
  %v2987 = vadd.f32 %v2985, 1e-05
  %v2988 = vadd.f32 %v2986, 1e-05
  %v2989 = vrsqrt.pop %v2987
  %v2990 = vrsqrt.pop %v2988
  %v2993 = vrot.slane %v2989, 4
  %v2994 = vrot.slane %v2990, 4
  %v2995 = vsel %vm449, %v2993, %v2994
  %2996 = vrot.lane.b32.xlu0 %v2995, 126
  %v2997 = vpop.permute.xlu0 %2996
  %2998 = vrot.lane.b32.xlu0 %v2994, 126
  %v2999 = vpop.permute.xlu0 %2998
  %v3002 = vmul.f32 %v2754, %v2997
  %v3003 = vmul.f32 %v2755, %v2999
  %v3004 = vmul.f32 %v2973, %v3002
  %v3005 = vmul.f32 %v2974, %v3003
  %3008 = vrot.lane.b32.xlu0 %v3004, 1
  %v3009 = vpop.permute.xlu0 %3008
  %3010 = vrot.lane.b32.xlu0 %v3005, 1
  %v3011 = vpop.permute.xlu0 %3010
  %v3014 = vsub.f32 %v2754, %v3009
  %v3015 = vsub.f32 %v2755, %v3011
  %3017 = vset.pattern.permute.xlu0 126
  %3018 = vperm.xlu0 %3017, %v3002
  %v3019 = vpop.permute.xlu0 %3018
  %3022 = vset.pattern.permute.xlu0 126
  %3023 = vperm.xlu0 %3022, %v3003
  %v3024 = vpop.permute.xlu0 %3023
  %v3026 = vmul.f32 %v2949, %v3019
  %v3027 = vmul.f32 %v2954, %v3024
  %3029 = vset.pattern.permute.xlu0 127
  %3030 = vperm.xlu0 %3029, %v3014
  %v3031 = vpop.permute.xlu0 %3030
  %3034 = vset.pattern.permute.xlu0 127
  %3035 = vperm.xlu0 %3034, %v3015
  %v3036 = vpop.permute.xlu0 %3035
  %v3038 = vadd.f32 %v3026, %v3031
  %v3039 = vadd.f32 %v3027, %v3036
  %v3040 = vmax.f32 %v3038, 0.0
  %v3041 = vmax.f32 %v3039, 0.0
  %v3042 = vld [vmem:[%s1 + $0x30] sm:$0xff]
  %v3043 = vld [vmem:[%s1 + $0x38] sm:$0xf]
  %3044 = vrot.lane.b32.xlu0 %v3040, 9
  %v3045 = vpop.permute.xlu0 %3044
  %3046 = vrot.lane.b32.xlu0 %v3041, 9
  %v3047 = vpop.permute.xlu0 %3046
  %v3048 = vmul.f32 %v3045, %v2765
  %v3049 = vmul.f32 %v3047, %v2765
  %3050 = vrot.lane.b32.xlu0 %v3040, 8
  %v3051 = vpop.permute.xlu0 %3050
  %3052 = vrot.lane.b32.xlu0 %v3041, 8
  %v3053 = vpop.permute.xlu0 %3052
  %v3054 = vmul.f32 %v3051, %v2767
  %v3055 = vmul.f32 %v3053, %v2767
  %3056 = vrot.lane.b32.xlu0 %v3040, 7
  %v3057 = vpop.permute.xlu0 %3056
  %3058 = vrot.lane.b32.xlu0 %v3041, 7
  %v3059 = vpop.permute.xlu0 %3058
  %v3060 = vmul.f32 %v3057, %v2771
  %v3061 = vmul.f32 %v3059, %v2771
  %3062 = vrot.lane.b32.xlu0 %v3040, 1
  %v3063 = vpop.permute.xlu0 %3062
  %3064 = vrot.lane.b32.xlu0 %v3041, 1
  %v3065 = vpop.permute.xlu0 %3064
  %v3066 = vmul.f32 %v3063, %v2774
  %v3067 = vmul.f32 %v3065, %v2774
  %v3068 = vmul.f32 %v3040, %v2776
  %v3069 = vmul.f32 %v3041, %v2776
  %3070 = vrot.lane.b32.xlu0 %v3040, 127
  %v3071 = vpop.permute.xlu0 %3070
  %3072 = vrot.lane.b32.xlu0 %v3041, 127
  %v3073 = vpop.permute.xlu0 %3072
  %v3074 = vmul.f32 %v3071, %v2779
  %v3075 = vmul.f32 %v3073, %v2779
  %3076 = vrot.lane.b32.xlu0 %v3040, 121
  %v3077 = vpop.permute.xlu0 %3076
  %3078 = vrot.lane.b32.xlu0 %v3041, 121
  %v3079 = vpop.permute.xlu0 %3078
  %v3080 = vmul.f32 %v3077, %v2784
  %v3081 = vmul.f32 %v3079, %v2784
  %3082 = vrot.lane.b32.xlu0 %v3040, 120
  %v3083 = vpop.permute.xlu0 %3082
  %3084 = vrot.lane.b32.xlu0 %v3041, 120
  %v3085 = vpop.permute.xlu0 %3084
  %v3086 = vmul.f32 %v3083, %v2786
  %v3087 = vmul.f32 %v3085, %v2786
  %3088 = vrot.lane.b32.xlu0 %v3040, 119
  %v3089 = vpop.permute.xlu0 %3088
  %3090 = vrot.lane.b32.xlu0 %v3041, 119
  %v3091 = vpop.permute.xlu0 %3090
  %v3092 = vmul.f32 %v3089, %v2789
  %v3093 = vmul.f32 %v3091, %v2789
  %v3096 = vrot.slane %v3054, 4
  %v3097 = vrot.slane %v3055, 4
  %v3098 = vsel %vm449, %v3096, %v3097
  %v3103 = vrot.slane %v3066, 4
  %v3104 = vrot.slane %v3067, 4
  %v3105 = vsel %vm449, %v3103, %v3104
  %v3110 = vrot.slane %v3074, 4
  %v3111 = vrot.slane %v3075, 4
  %v3112 = vsel %vm449, %v3110, %v3111
  %v3117 = vrot.slane %v3086, 4
  %v3118 = vrot.slane %v3087, 4
  %v3119 = vsel %vm449, %v3117, %v3118
  %v3122 = vsel %vm449, %v3049, %v3096
  %v3123 = vsel %vm449, %v3061, %v3103
  %v3124 = vsel %vm449, %v3069, %v3110
  %v3125 = vsel %vm449, %v3081, %v3117
  %v3127 = vsel %vm2872, %v3042, 0
  %v3130 = vsel %vm2872, %v3043, 0
  %v3133 = vsel %vm449, %v3093, 0
  %3135 = vmatprep.subr.mxu0 0.0
  %3136 = vmatpush1.msra.mxu0 %v3048
  %3137 = vmatprep.subr.mxu0 0.0
  %3138 = vmatpush1.msra.mxu0 %v3122
  %3139 = vmatprep.subr.mxu0 0.0
  %3140 = vmatpush1.msra.mxu0 %v3098
  %3141 = vmatprep.subr.mxu0 0.0
  %3142 = vmatpush1.msra.mxu0 %v3060
  %3143 = vmatprep.subr.mxu0 0.0
  %3144 = vmatpush1.msra.mxu0 %v3123
  %3145 = vmatprep.subr.mxu0 0.0
  %3146 = vmatpush1.msra.mxu0 %v3105
  %3147 = vmatprep.subr.mxu0 0.0
  %3148 = vmatpush1.msra.mxu0 %v3068
  %3149 = vmatprep.subr.mxu0 0.0
  %3150 = vmatpush1.msra.mxu0 %v3124
  %3151 = vmatprep.subr.mxu0 0.0
  %3152 = vmatpush1.msra.mxu0 %v3112
  %3153 = vmatprep.subr.mxu0 0.0
  %3154 = vmatpush1.msra.mxu0 %v3080
  %3155 = vmatprep.subr.mxu0 0.0
  %3156 = vmatpush1.msra.mxu0 %v3125
  %3157 = vmatprep.subr.mxu0 0.0
  %3158 = vmatpush1.msra.mxu0 %v3119
  %3159 = vmatprep.subr.mxu0 0.0
  %3160 = vmatpush1.msra.mxu0 %v3092
  %3161 = vmatprep.subr.mxu0 0.0
  %3162 = vmatpush1.msra.mxu0 %v3133
  %3163 = vmatprep.subr.mxu0 0.0
  %3164 = vmatpush1.msra.mxu0 0.0
  %3165 = vmatprep.subr.mxu0 0.0
  %3166 = vmatpush1.msra.mxu0 0.0
  %3167 = vmatprep.subr.mxu0 0.0
  %3168 = vmatpush1.msra.mxu0 0.0
  %3169 = vmatprep.subr.mxu0 0.0
  %3170 = vmatpush1.msra.mxu0 0.0
  %3171 = vmatprep.subr.mxu0 0.0
  %3172 = vmatpush1.msra.mxu0 0.0
  %3173 = vmatprep.subr.mxu0 0.0
  %3174 = vmatpush1.msra.mxu0 0.0
  %3175 = vmatprep.subr.mxu0 0.0
  %3176 = vmatpush1.msra.mxu0 0.0
  %3177 = vmatprep.subr.mxu0 0.0
  %3178 = vmatpush1.msra.mxu0 0.0
  %3179 = vmatprep.subr.mxu0 0.0
  %3180 = vmatpush1.msra.mxu0 0.0
  %3181 = vmatprep.subr.mxu0 0.0
  %3182 = vmatpush1.msra.mxu0 0.0
  %3183 = vmatprep.subr.mxu0 0.0
  %3184 = vmatpush1.msra.mxu0 0.0
  %3185 = vmatprep.subr.mxu0 0.0
  %3186 = vmatpush1.msra.mxu0 0.0
  %3187 = vmatprep.subr.mxu0 0.0
  %3188 = vmatpush1.msra.mxu0 0.0
  %3189 = vmatprep.subr.mxu0 0.0
  %3190 = vmatpush1.msra.mxu0 0.0
  %3191 = vmatprep.subr.mxu0 0.0
  %3192 = vmatpush1.msra.mxu0 0.0
  %3193 = vmatprep.subr.mxu0 0.0
  %3194 = vmatpush1.msra.mxu0 0.0
  %3195 = vmatprep.subr.mxu0 0.0
  %3196 = vmatpush1.msra.mxu0 0.0
  %3197 = vmatprep.subr.mxu0 0.0
  %3198 = vmatpush1.msra.mxu0 0.0
  %3199 = vmatprep.mubr.f32.mxu0 0.0
  %3200 = vmatmul.mubr.f32.gmra.mrb[0].mxu0 %v3127
  %v3201 = vpop.f32.mrb[0].mxu0
  %v3202 = vadd.f32 0.0, %v3201
  %v3203 = vpop.f32.mrb[0].mxu0
  %3204 = vmatprep.mubr.f32.mxu0 0.0
  %3205 = vmatmul.mubr.f32.gmra.mrb[0].mxu0 %v3130
  %v3206 = vpop.f32.mrb[0].mxu0
  %v3207 = vadd.f32 0.0, %v3206
  %v3208 = vpop.f32.mrb[0].mxu0
  %3209 = vdwg.mxu0
  %v3210 = vmul.f32 %v3202, %v3202
  %v3211 = vmul.f32 %v3207, %v3207
  %v3214 = vrot.slane %v3210, 4
  %v3215 = vrot.slane %v3211, 4
  %v3216 = vsel %vm449, %v3214, %v3215
  %v3219 = vsel %vm449, %v3207, %v3214
  %3220 = vadd.xlane.f32.xlu0 %v3202
  %v3221 = vpop.xlane.xlu0 %3220
  %3222 = vadd.xlane.f32.xlu0 %v3219
  %v3223 = vpop.xlane.xlu0 %3222
  %3224 = vadd.xlane.f32.xlu0 %v3216
  %v3225 = vpop.xlane.xlu0 %3224
  %v3226 = vmul.f32 %v3221, 0.0078125
  %v3227 = vmul.f32 %v3223, 0.0078125
  %v3228 = vmul.f32 %v3225, 0.0078125
  %v3229 = vmul.f32 %v3226, %v3226
  %v3230 = vmul.f32 %v3227, %v3227
  %v3233 = vrot.slane %v3229, 4
  %v3234 = vrot.slane %v3230, 4
  %v3235 = vsel %vm449, %v3233, %v3234
  %v3238 = vsub.f32 %v3227, %v3233
  %v3239 = vsub.f32 %v3228, %v3235
  %v3240 = vadd.f32 %v3238, 1e-05
  %v3241 = vadd.f32 %v3239, 1e-05
  %v3242 = vrsqrt.pop %v3240
  %v3243 = vrsqrt.pop %v3241
  %v3246 = vrot.slane %v3242, 4
  %v3247 = vrot.slane %v3243, 4
  %v3248 = vsel %vm449, %v3246, %v3247
  %3249 = vrot.lane.b32.xlu0 %v3248, 126
  %v3250 = vpop.permute.xlu0 %3249
  %3251 = vrot.lane.b32.xlu0 %v3247, 126
  %v3252 = vpop.permute.xlu0 %3251
  %v3255 = vmul.f32 %v3042, %v3250
  %v3256 = vmul.f32 %v3043, %v3252
  %v3257 = vmul.f32 %v3226, %v3255
  %v3258 = vmul.f32 %v3227, %v3256
  %3261 = vrot.lane.b32.xlu0 %v3257, 1
  %v3262 = vpop.permute.xlu0 %3261
  %3263 = vrot.lane.b32.xlu0 %v3258, 1
  %v3264 = vpop.permute.xlu0 %3263
  %v3267 = vsub.f32 %v3042, %v3262
  %v3268 = vsub.f32 %v3043, %v3264
  %3270 = vset.pattern.permute.xlu0 126
  %3271 = vperm.xlu0 %3270, %v3255
  %v3272 = vpop.permute.xlu0 %3271
  %3275 = vset.pattern.permute.xlu0 126
  %3276 = vperm.xlu0 %3275, %v3256
  %v3277 = vpop.permute.xlu0 %3276
  %v3279 = vmul.f32 %v3202, %v3272
  %v3280 = vmul.f32 %v3207, %v3277
  %3282 = vset.pattern.permute.xlu0 127
  %3283 = vperm.xlu0 %3282, %v3267
  %v3284 = vpop.permute.xlu0 %3283
  %3287 = vset.pattern.permute.xlu0 127
  %3288 = vperm.xlu0 %3287, %v3268
  %v3289 = vpop.permute.xlu0 %3288
  %v3291 = vadd.f32 %v3279, %v3284
  %v3292 = vadd.f32 %v3280, %v3289
  %v3293 = vmax.f32 %v3291, 0.0
  %v3294 = vmax.f32 %v3292, 0.0
  %3295 = vrot.lane.b32.xlu0 %v3293, 127
  %v3296 = vpop.permute.xlu0 %3295
  %3297 = vrot.lane.b32.xlu0 %v3294, 127
  %v3298 = vpop.permute.xlu0 %3297
  %v3299 = vmax.f32 %v3293, %v3296
  %v3300 = vmax.f32 %v3294, %v3298
  %3301 = vrot.lane.b32.xlu0 %v3299, 120
  %v3302 = vpop.permute.xlu0 %3301
  %3303 = vrot.lane.b32.xlu0 %v3300, 120
  %v3304 = vpop.permute.xlu0 %3303
  %v3305 = vmax.f32 %v3299, %v3302
  %v3306 = vmax.f32 %v3300, %v3304
  %v3307 = vshra.s32 %v1037, 6
  %v3308 = vshra.s32 %v1038, 6
  %v3309 = vshra.s32 %v1039, 6
  %v3310 = vshra.s32 %v1040, 6
  %v3311 = vshra.s32 %v1041, 6
  %v3312 = vshra.s32 %v1042, 6
  %v3313 = vshra.s32 %v1043, 6
  %v3314 = vshra.s32 %v1044, 6
  %v3315 = vshra.s32 %v1045, 6
  %v3316 = vshra.s32 %v1046, 6
  %v3317 = vshra.s32 %v1047, 6
  %v3318 = vshra.s32 %v1048, 6
  %v3319 = vshra.s32 %v1049, 6
  %v3320 = vshra.s32 %v1050, 6
  %v3321 = vshra.s32 %v1051, 6
  %v3322 = vshra.s32 %v1052, 6
  %v3323 = vand.u32 %v1037, 63
  %v3324 = vand.u32 %v1038, 63
  %v3325 = vand.u32 %v1039, 63
  %v3326 = vand.u32 %v1040, 63
  %v3327 = vand.u32 %v1041, 63
  %v3328 = vand.u32 %v1042, 63
  %v3329 = vand.u32 %v1043, 63
  %v3330 = vand.u32 %v1044, 63
  %v3331 = vand.u32 %v1045, 63
  %v3332 = vand.u32 %v1046, 63
  %v3333 = vand.u32 %v1047, 63
  %v3334 = vand.u32 %v1048, 63
  %v3335 = vand.u32 %v1049, 63
  %v3336 = vand.u32 %v1050, 63
  %v3337 = vand.u32 %v1051, 63
  %v3338 = vand.u32 %v1052, 63
  %v3339 = vshra.s32 %v3323, 3
  %v3340 = vshra.s32 %v3324, 3
  %v3341 = vshra.s32 %v3325, 3
  %v3342 = vshra.s32 %v3326, 3
  %v3343 = vshra.s32 %v3327, 3
  %v3344 = vshra.s32 %v3328, 3
  %v3345 = vshra.s32 %v3329, 3
  %v3346 = vshra.s32 %v3330, 3
  %v3347 = vshra.s32 %v3331, 3
  %v3348 = vshra.s32 %v3332, 3
  %v3349 = vshra.s32 %v3333, 3
  %v3350 = vshra.s32 %v3334, 3
  %v3351 = vshra.s32 %v3335, 3
  %v3352 = vshra.s32 %v3336, 3
  %v3353 = vshra.s32 %v3337, 3
  %v3354 = vshra.s32 %v3338, 3
  %v3355 = vand.u32 %v3323, 7
  %v3356 = vand.u32 %v3324, 7
  %v3357 = vand.u32 %v3325, 7
  %v3358 = vand.u32 %v3326, 7
  %v3359 = vand.u32 %v3327, 7
  %v3360 = vand.u32 %v3328, 7
  %v3361 = vand.u32 %v3329, 7
  %v3362 = vand.u32 %v3330, 7
  %v3363 = vand.u32 %v3331, 7
  %v3364 = vand.u32 %v3332, 7
  %v3365 = vand.u32 %v3333, 7
  %v3366 = vand.u32 %v3334, 7
  %v3367 = vand.u32 %v3335, 7
  %v3368 = vand.u32 %v3336, 7
  %v3369 = vand.u32 %v3337, 7
  %v3370 = vand.u32 %v3338, 7
  %v3371 = vshll.u32 %v3307, 4
  %v3372 = vshll.u32 %v3308, 4
  %v3373 = vshll.u32 %v3309, 4
  %v3374 = vshll.u32 %v3310, 4
  %v3375 = vshll.u32 %v3311, 4
  %v3376 = vshll.u32 %v3312, 4
  %v3377 = vshll.u32 %v3313, 4
  %v3378 = vshll.u32 %v3314, 4
  %v3379 = vshll.u32 %v3315, 4
  %v3380 = vshll.u32 %v3316, 4
  %v3381 = vshll.u32 %v3317, 4
  %v3382 = vshll.u32 %v3318, 4
  %v3383 = vshll.u32 %v3319, 4
  %v3384 = vshll.u32 %v3320, 4
  %v3385 = vshll.u32 %v3321, 4
  %v3386 = vshll.u32 %v3322, 4
  %v3387 = vshra.s32 %v3339, 1
  %v3388 = vshra.s32 %v3340, 1
  %v3389 = vshra.s32 %v3341, 1
  %v3390 = vshra.s32 %v3342, 1
  %v3391 = vshra.s32 %v3343, 1
  %v3392 = vshra.s32 %v3344, 1
  %v3393 = vshra.s32 %v3345, 1
  %v3394 = vshra.s32 %v3346, 1
  %v3395 = vshra.s32 %v3347, 1
  %v3396 = vshra.s32 %v3348, 1
  %v3397 = vshra.s32 %v3349, 1
  %v3398 = vshra.s32 %v3350, 1
  %v3399 = vshra.s32 %v3351, 1
  %v3400 = vshra.s32 %v3352, 1
  %v3401 = vshra.s32 %v3353, 1
  %v3402 = vshra.s32 %v3354, 1
  %v3403 = vshll.u32 %v3387, 2
  %v3404 = vshll.u32 %v3388, 2
  %v3405 = vshll.u32 %v3389, 2
  %v3406 = vshll.u32 %v3390, 2
  %v3407 = vshll.u32 %v3391, 2
  %v3408 = vshll.u32 %v3392, 2
  %v3409 = vshll.u32 %v3393, 2
  %v3410 = vshll.u32 %v3394, 2
  %v3411 = vshll.u32 %v3395, 2
  %v3412 = vshll.u32 %v3396, 2
  %v3413 = vshll.u32 %v3397, 2
  %v3414 = vshll.u32 %v3398, 2
  %v3415 = vshll.u32 %v3399, 2
  %v3416 = vshll.u32 %v3400, 2
  %v3417 = vshll.u32 %v3401, 2
  %v3418 = vshll.u32 %v3402, 2
  %v3419 = vadd.s32 %v3371, %v3403
  %v3420 = vadd.s32 %v3372, %v3404
  %v3421 = vadd.s32 %v3373, %v3405
  %v3422 = vadd.s32 %v3374, %v3406
  %v3423 = vadd.s32 %v3375, %v3407
  %v3424 = vadd.s32 %v3376, %v3408
  %v3425 = vadd.s32 %v3377, %v3409
  %v3426 = vadd.s32 %v3378, %v3410
  %v3427 = vadd.s32 %v3379, %v3411
  %v3428 = vadd.s32 %v3380, %v3412
  %v3429 = vadd.s32 %v3381, %v3413
  %v3430 = vadd.s32 %v3382, %v3414
  %v3431 = vadd.s32 %v3383, %v3415
  %v3432 = vadd.s32 %v3384, %v3416
  %v3433 = vadd.s32 %v3385, %v3417
  %v3434 = vadd.s32 %v3386, %v3418
  %v3435 = vshra.s32 %v3355, 1
  %v3436 = vshra.s32 %v3356, 1
  %v3437 = vshra.s32 %v3357, 1
  %v3438 = vshra.s32 %v3358, 1
  %v3439 = vshra.s32 %v3359, 1
  %v3440 = vshra.s32 %v3360, 1
  %v3441 = vshra.s32 %v3361, 1
  %v3442 = vshra.s32 %v3362, 1
  %v3443 = vshra.s32 %v3363, 1
  %v3444 = vshra.s32 %v3364, 1
  %v3445 = vshra.s32 %v3365, 1
  %v3446 = vshra.s32 %v3366, 1
  %v3447 = vshra.s32 %v3367, 1
  %v3448 = vshra.s32 %v3368, 1
  %v3449 = vshra.s32 %v3369, 1
  %v3450 = vshra.s32 %v3370, 1
  %v3451 = vadd.s32 %v3419, %v3435
  %v3452 = vadd.s32 %v3420, %v3436
  %v3453 = vadd.s32 %v3421, %v3437
  %v3454 = vadd.s32 %v3422, %v3438
  %v3455 = vadd.s32 %v3423, %v3439
  %v3456 = vadd.s32 %v3424, %v3440
  %v3457 = vadd.s32 %v3425, %v3441
  %v3458 = vadd.s32 %v3426, %v3442
  %v3459 = vadd.s32 %v3427, %v3443
  %v3460 = vadd.s32 %v3428, %v3444
  %v3461 = vadd.s32 %v3429, %v3445
  %v3462 = vadd.s32 %v3430, %v3446
  %v3463 = vadd.s32 %v3431, %v3447
  %v3464 = vadd.s32 %v3432, %v3448
  %v3465 = vadd.s32 %v3433, %v3449
  %v3466 = vadd.s32 %v3434, %v3450
  %vm3467 = vcmp.lt.s32.totalorder %v1037, 128
  %vm3468 = vcmp.lt.s32.totalorder %v1038, 128
  %vm3469 = vcmp.lt.s32.totalorder %v1039, 128
  %vm3470 = vcmp.lt.s32.totalorder %v1040, 128
  %vm3471 = vcmp.lt.s32.totalorder %v1041, 128
  %vm3472 = vcmp.lt.s32.totalorder %v1042, 128
  %vm3473 = vcmp.lt.s32.totalorder %v1043, 128
  %vm3474 = vcmp.lt.s32.totalorder %v1044, 128
  %vm3475 = vcmp.lt.s32.totalorder %v1045, 128
  %vm3476 = vcmp.lt.s32.totalorder %v1046, 128
  %vm3477 = vcmp.lt.s32.totalorder %v1047, 128
  %vm3478 = vcmp.lt.s32.totalorder %v1048, 128
  %vm3479 = vcmp.lt.s32.totalorder %v1049, 128
  %vm3480 = vcmp.lt.s32.totalorder %v1050, 128
  %vm3481 = vcmp.lt.s32.totalorder %v1051, 128
  %vm3482 = vcmp.lt.s32.totalorder %v1052, 128
  %v3483 = vand.u32 %v3339, 1
  %v3484 = vand.u32 %v3340, 1
  %v3485 = vand.u32 %v3341, 1
  %v3486 = vand.u32 %v3342, 1
  %v3487 = vand.u32 %v3343, 1
  %v3488 = vand.u32 %v3344, 1
  %v3489 = vand.u32 %v3345, 1
  %v3490 = vand.u32 %v3346, 1
  %v3491 = vand.u32 %v3347, 1
  %v3492 = vand.u32 %v3348, 1
  %v3493 = vand.u32 %v3349, 1
  %v3494 = vand.u32 %v3350, 1
  %v3495 = vand.u32 %v3351, 1
  %v3496 = vand.u32 %v3352, 1
  %v3497 = vand.u32 %v3353, 1
  %v3498 = vand.u32 %v3354, 1
  %vm3499 = vcmp.eq.s32.totalorder %v3483, 0
  %vm3500 = vcmp.eq.s32.totalorder %v3484, 0
  %vm3501 = vcmp.eq.s32.totalorder %v3485, 0
  %vm3502 = vcmp.eq.s32.totalorder %v3486, 0
  %vm3503 = vcmp.eq.s32.totalorder %v3487, 0
  %vm3504 = vcmp.eq.s32.totalorder %v3488, 0
  %vm3505 = vcmp.eq.s32.totalorder %v3489, 0
  %vm3506 = vcmp.eq.s32.totalorder %v3490, 0
  %vm3507 = vcmp.eq.s32.totalorder %v3491, 0
  %vm3508 = vcmp.eq.s32.totalorder %v3492, 0
  %vm3509 = vcmp.eq.s32.totalorder %v3493, 0
  %vm3510 = vcmp.eq.s32.totalorder %v3494, 0
  %vm3511 = vcmp.eq.s32.totalorder %v3495, 0
  %vm3512 = vcmp.eq.s32.totalorder %v3496, 0
  %vm3513 = vcmp.eq.s32.totalorder %v3497, 0
  %vm3514 = vcmp.eq.s32.totalorder %v3498, 0
  %vm3515 = vmand %vm3467, %vm3499
  %vm3516 = vmand %vm3468, %vm3500
  %vm3517 = vmand %vm3469, %vm3501
  %vm3518 = vmand %vm3470, %vm3502
  %vm3519 = vmand %vm3471, %vm3503
  %vm3520 = vmand %vm3472, %vm3504
  %vm3521 = vmand %vm3473, %vm3505
  %vm3522 = vmand %vm3474, %vm3506
  %vm3523 = vmand %vm3475, %vm3507
  %vm3524 = vmand %vm3476, %vm3508
  %vm3525 = vmand %vm3477, %vm3509
  %vm3526 = vmand %vm3478, %vm3510
  %vm3527 = vmand %vm3479, %vm3511
  %vm3528 = vmand %vm3480, %vm3512
  %vm3529 = vmand %vm3481, %vm3513
  %vm3530 = vmand %vm3482, %vm3514
  %v3531 = vand.u32 %v3355, 1
  %v3532 = vand.u32 %v3356, 1
  %v3533 = vand.u32 %v3357, 1
  %v3534 = vand.u32 %v3358, 1
  %v3535 = vand.u32 %v3359, 1
  %v3536 = vand.u32 %v3360, 1
  %v3537 = vand.u32 %v3361, 1
  %v3538 = vand.u32 %v3362, 1
  %v3539 = vand.u32 %v3363, 1
  %v3540 = vand.u32 %v3364, 1
  %v3541 = vand.u32 %v3365, 1
  %v3542 = vand.u32 %v3366, 1
  %v3543 = vand.u32 %v3367, 1
  %v3544 = vand.u32 %v3368, 1
  %v3545 = vand.u32 %v3369, 1
  %v3546 = vand.u32 %v3370, 1
  %vm3547 = vcmp.eq.s32.totalorder %v3531, 0
  %vm3548 = vcmp.eq.s32.totalorder %v3532, 0
  %vm3549 = vcmp.eq.s32.totalorder %v3533, 0
  %vm3550 = vcmp.eq.s32.totalorder %v3534, 0
  %vm3551 = vcmp.eq.s32.totalorder %v3535, 0
  %vm3552 = vcmp.eq.s32.totalorder %v3536, 0
  %vm3553 = vcmp.eq.s32.totalorder %v3537, 0
  %vm3554 = vcmp.eq.s32.totalorder %v3538, 0
  %vm3555 = vcmp.eq.s32.totalorder %v3539, 0
  %vm3556 = vcmp.eq.s32.totalorder %v3540, 0
  %vm3557 = vcmp.eq.s32.totalorder %v3541, 0
  %vm3558 = vcmp.eq.s32.totalorder %v3542, 0
  %vm3559 = vcmp.eq.s32.totalorder %v3543, 0
  %vm3560 = vcmp.eq.s32.totalorder %v3544, 0
  %vm3561 = vcmp.eq.s32.totalorder %v3545, 0
  %vm3562 = vcmp.eq.s32.totalorder %v3546, 0
  %vm3563 = vmand %vm3515, %vm3547
  %vm3564 = vmand %vm3516, %vm3548
  %vm3565 = vmand %vm3517, %vm3549
  %vm3566 = vmand %vm3518, %vm3550
  %vm3567 = vmand %vm3519, %vm3551
  %vm3568 = vmand %vm3520, %vm3552
  %vm3569 = vmand %vm3521, %vm3553
  %vm3570 = vmand %vm3522, %vm3554
  %vm3571 = vmand %vm3523, %vm3555
  %vm3572 = vmand %vm3524, %vm3556
  %vm3573 = vmand %vm3525, %vm3557
  %vm3574 = vmand %vm3526, %vm3558
  %vm3575 = vmand %vm3527, %vm3559
  %vm3576 = vmand %vm3528, %vm3560
  %vm3577 = vmand %vm3529, %vm3561
  %vm3578 = vmand %vm3530, %vm3562
  %vm3579 = vcmp.eq.s32.totalorder %v14, %v3451
  %vm3580 = vcmp.eq.s32.totalorder %v14, %v3452
  %vm3581 = vcmp.eq.s32.totalorder %v14, %v3453
  %vm3582 = vcmp.eq.s32.totalorder %v14, %v3454
  %vm3583 = vcmp.eq.s32.totalorder %v14, %v3455
  %vm3584 = vcmp.eq.s32.totalorder %v14, %v3456
  %vm3585 = vcmp.eq.s32.totalorder %v14, %v3457
  %vm3586 = vcmp.eq.s32.totalorder %v14, %v3458
  %vm3587 = vcmp.eq.s32.totalorder %v14, %v3459
  %vm3588 = vcmp.eq.s32.totalorder %v14, %v3460
  %vm3589 = vcmp.eq.s32.totalorder %v14, %v3461
  %vm3590 = vcmp.eq.s32.totalorder %v14, %v3462
  %vm3591 = vcmp.eq.s32.totalorder %v14, %v3463
  %vm3592 = vcmp.eq.s32.totalorder %v14, %v3464
  %vm3593 = vcmp.eq.s32.totalorder %v14, %v3465
  %vm3594 = vcmp.eq.s32.totalorder %v14, %v3466
  %vm3595 = vmand %vm3563, %vm3579
  %vm3596 = vmand %vm3564, %vm3580
  %vm3597 = vmand %vm3565, %vm3581
  %vm3598 = vmand %vm3566, %vm3582
  %vm3599 = vmand %vm3567, %vm3583
  %vm3600 = vmand %vm3568, %vm3584
  %vm3601 = vmand %vm3569, %vm3585
  %vm3602 = vmand %vm3570, %vm3586
  %vm3603 = vmand %vm3571, %vm3587
  %vm3604 = vmand %vm3572, %vm3588
  %vm3605 = vmand %vm3573, %vm3589
  %vm3606 = vmand %vm3574, %vm3590
  %vm3607 = vmand %vm3575, %vm3591
  %vm3608 = vmand %vm3576, %vm3592
  %vm3609 = vmand %vm3577, %vm3593
  %vm3610 = vmand %vm3578, %vm3594
  %v3611 = vsel %vm3595, 1, 0
  %v3612 = vsel %vm3596, 1, 0
  %v3613 = vsel %vm3597, 1, 0
  %v3614 = vsel %vm3598, 1, 0
  %v3615 = vsel %vm3599, 1, 0
  %v3616 = vsel %vm3600, 1, 0
  %v3617 = vsel %vm3601, 1, 0
  %v3618 = vsel %vm3602, 1, 0
  %v3619 = vsel %vm3603, 1, 0
  %v3620 = vsel %vm3604, 1, 0
  %v3621 = vsel %vm3605, 1, 0
  %v3622 = vsel %vm3606, 1, 0
  %v3623 = vsel %vm3607, 1, 0
  %v3624 = vsel %vm3608, 1, 0
  %v3625 = vsel %vm3609, 1, 0
  %v3626 = vsel %vm3610, 1, 0
  %v3627 = vcvt.s32.f32 %v3611
  %v3628 = vcvt.s32.f32 %v3612
  %v3629 = vcvt.s32.f32 %v3613
  %v3630 = vcvt.s32.f32 %v3614
  %v3631 = vcvt.s32.f32 %v3615
  %v3632 = vcvt.s32.f32 %v3616
  %v3633 = vcvt.s32.f32 %v3617
  %v3634 = vcvt.s32.f32 %v3618
  %v3635 = vcvt.s32.f32 %v3619
  %v3636 = vcvt.s32.f32 %v3620
  %v3637 = vcvt.s32.f32 %v3621
  %v3638 = vcvt.s32.f32 %v3622
  %v3639 = vcvt.s32.f32 %v3623
  %v3640 = vcvt.s32.f32 %v3624
  %v3641 = vcvt.s32.f32 %v3625
  %v3642 = vcvt.s32.f32 %v3626
  %3643 = vmatprep.subr.mxu0 0.0
  %3644 = vmatpush1.msra.mxu0 %v3627
  %3645 = vmatprep.subr.mxu0 0.0
  %3646 = vmatpush1.msra.mxu0 %v3628
  %3647 = vmatprep.subr.mxu0 0.0
  %3648 = vmatpush1.msra.mxu0 %v3629
  %3649 = vmatprep.subr.mxu0 0.0
  %3650 = vmatpush1.msra.mxu0 %v3630
  %3651 = vmatprep.subr.mxu0 0.0
  %3652 = vmatpush1.msra.mxu0 %v3631
  %3653 = vmatprep.subr.mxu0 0.0
  %3654 = vmatpush1.msra.mxu0 %v3632
  %3655 = vmatprep.subr.mxu0 0.0
  %3656 = vmatpush1.msra.mxu0 %v3633
  %3657 = vmatprep.subr.mxu0 0.0
  %3658 = vmatpush1.msra.mxu0 %v3634
  %3659 = vmatprep.subr.mxu0 0.0
  %3660 = vmatpush1.msra.mxu0 %v3635
  %3661 = vmatprep.subr.mxu0 0.0
  %3662 = vmatpush1.msra.mxu0 %v3636
  %3663 = vmatprep.subr.mxu0 0.0
  %3664 = vmatpush1.msra.mxu0 %v3637
  %3665 = vmatprep.subr.mxu0 0.0
  %3666 = vmatpush1.msra.mxu0 %v3638
  %3667 = vmatprep.subr.mxu0 0.0
  %3668 = vmatpush1.msra.mxu0 %v3639
  %3669 = vmatprep.subr.mxu0 0.0
  %3670 = vmatpush1.msra.mxu0 %v3640
  %3671 = vmatprep.subr.mxu0 0.0
  %3672 = vmatpush1.msra.mxu0 %v3641
  %3673 = vmatprep.subr.mxu0 0.0
  %3674 = vmatpush1.msra.mxu0 %v3642
  %3675 = vmatprep.subr.mxu0 0.0
  %3676 = vmatpush1.msra.mxu0 0.0
  %3677 = vmatprep.subr.mxu0 0.0
  %3678 = vmatpush1.msra.mxu0 0.0
  %3679 = vmatprep.subr.mxu0 0.0
  %3680 = vmatpush1.msra.mxu0 0.0
  %3681 = vmatprep.subr.mxu0 0.0
  %3682 = vmatpush1.msra.mxu0 0.0
  %3683 = vmatprep.subr.mxu0 0.0
  %3684 = vmatpush1.msra.mxu0 0.0
  %3685 = vmatprep.subr.mxu0 0.0
  %3686 = vmatpush1.msra.mxu0 0.0
  %3687 = vmatprep.subr.mxu0 0.0
  %3688 = vmatpush1.msra.mxu0 0.0
  %3689 = vmatprep.subr.mxu0 0.0
  %3690 = vmatpush1.msra.mxu0 0.0
  %3691 = vmatprep.subr.mxu0 0.0
  %3692 = vmatpush1.msra.mxu0 0.0
  %3693 = vmatprep.subr.mxu0 0.0
  %3694 = vmatpush1.msra.mxu0 0.0
  %3695 = vmatprep.subr.mxu0 0.0
  %3696 = vmatpush1.msra.mxu0 0.0
  %3697 = vmatprep.subr.mxu0 0.0
  %3698 = vmatpush1.msra.mxu0 0.0
  %3699 = vmatprep.subr.mxu0 0.0
  %3700 = vmatpush1.msra.mxu0 0.0
  %3701 = vmatprep.subr.mxu0 0.0
  %3702 = vmatpush1.msra.mxu0 0.0
  %3703 = vmatprep.subr.mxu0 0.0
  %3704 = vmatpush1.msra.mxu0 0.0
  %3705 = vmatprep.subr.mxu0 0.0
  %3706 = vmatpush1.msra.mxu0 0.0
  %3707 = vmatprep.mubr.f32.mxu0 0.0
  %3708 = vmatmul.mubr.f32.gmra.mrb[0].mxu0 %v3305
  %v3709 = vpop.f32.mrb[0].mxu0
  %v3710 = vadd.f32 0.0, %v3709
  %v3711 = vpop.f32.mrb[0].mxu0
  %3712 = vmatprep.mubr.f32.mxu0 0.0
  %3713 = vmatmul.mubr.f32.gmra.mrb[0].mxu0 %v3306
  %v3714 = vpop.f32.mrb[0].mxu0
  %v3715 = vadd.f32 0.0, %v3714
  %v3716 = vpop.f32.mrb[0].mxu0
  %3717 = vdwg.mxu0
  %v3718 = vld [vmem:[%s1 + $0x40] sm:$0xff]
  %v3719 = vld [vmem:[%s1 + $0x48] sm:$0xf]
  %vm3720 = vcmask 97280
  %v3722 = vsel %vm3720, %v3718, 0
  %v3725 = vsel %vm3720, %v3719, 0
  %v3728 = vsel %vm449, %v3715, 0
  %3730 = vmatprep.subr.mxu0 0.0
  %3731 = vmatpush1.msra.mxu0 %v3710
  %3732 = vmatprep.subr.mxu0 0.0
  %3733 = vmatpush1.msra.mxu0 %v3728
  %3734 = vmatprep.subr.mxu0 0.0
  %3735 = vmatpush1.msra.mxu0 0.0
  %3736 = vmatprep.subr.mxu0 0.0
  %3737 = vmatpush1.msra.mxu0 0.0
  %3738 = vmatprep.subr.mxu0 0.0
  %3739 = vmatpush1.msra.mxu0 0.0
  %3740 = vmatprep.subr.mxu0 0.0
  %3741 = vmatpush1.msra.mxu0 0.0
  %3742 = vmatprep.subr.mxu0 0.0
  %3743 = vmatpush1.msra.mxu0 0.0
  %3744 = vmatprep.subr.mxu0 0.0
  %3745 = vmatpush1.msra.mxu0 0.0
  %3746 = vmatprep.subr.mxu0 0.0
  %3747 = vmatpush1.msra.mxu0 0.0
  %3748 = vmatprep.subr.mxu0 0.0
  %3749 = vmatpush1.msra.mxu0 0.0
  %3750 = vmatprep.subr.mxu0 0.0
  %3751 = vmatpush1.msra.mxu0 0.0
  %3752 = vmatprep.subr.mxu0 0.0
  %3753 = vmatpush1.msra.mxu0 0.0
  %3754 = vmatprep.subr.mxu0 0.0
  %3755 = vmatpush1.msra.mxu0 0.0
  %3756 = vmatprep.subr.mxu0 0.0
  %3757 = vmatpush1.msra.mxu0 0.0
  %3758 = vmatprep.subr.mxu0 0.0
  %3759 = vmatpush1.msra.mxu0 0.0
  %3760 = vmatprep.subr.mxu0 0.0
  %3761 = vmatpush1.msra.mxu0 0.0
  %3762 = vmatprep.subr.mxu0 0.0
  %3763 = vmatpush1.msra.mxu0 0.0
  %3764 = vmatprep.subr.mxu0 0.0
  %3765 = vmatpush1.msra.mxu0 0.0
  %3766 = vmatprep.subr.mxu0 0.0
  %3767 = vmatpush1.msra.mxu0 0.0
  %3768 = vmatprep.subr.mxu0 0.0
  %3769 = vmatpush1.msra.mxu0 0.0
  %3770 = vmatprep.subr.mxu0 0.0
  %3771 = vmatpush1.msra.mxu0 0.0
  %3772 = vmatprep.subr.mxu0 0.0
  %3773 = vmatpush1.msra.mxu0 0.0
  %3774 = vmatprep.subr.mxu0 0.0
  %3775 = vmatpush1.msra.mxu0 0.0
  %3776 = vmatprep.subr.mxu0 0.0
  %3777 = vmatpush1.msra.mxu0 0.0
  %3778 = vmatprep.subr.mxu0 0.0
  %3779 = vmatpush1.msra.mxu0 0.0
  %3780 = vmatprep.subr.mxu0 0.0
  %3781 = vmatpush1.msra.mxu0 0.0
  %3782 = vmatprep.subr.mxu0 0.0
  %3783 = vmatpush1.msra.mxu0 0.0
  %3784 = vmatprep.subr.mxu0 0.0
  %3785 = vmatpush1.msra.mxu0 0.0
  %3786 = vmatprep.subr.mxu0 0.0
  %3787 = vmatpush1.msra.mxu0 0.0
  %3788 = vmatprep.subr.mxu0 0.0
  %3789 = vmatpush1.msra.mxu0 0.0
  %3790 = vmatprep.subr.mxu0 0.0
  %3791 = vmatpush1.msra.mxu0 0.0
  %3792 = vmatprep.subr.mxu0 0.0
  %3793 = vmatpush1.msra.mxu0 0.0
  %3794 = vmatprep.mubr.f32.mxu0 0.0
  %3795 = vmatmul.mubr.f32.gmra.mrb[0].mxu0 %v3722
  %v3796 = vpop.f32.mrb[0].mxu0
  %v3797 = vadd.f32 0.0, %v3796
  %v3798 = vpop.f32.mrb[0].mxu0
  %3799 = vmatprep.mubr.f32.mxu0 0.0
  %3800 = vmatmul.mubr.f32.gmra.mrb[0].mxu0 %v3725
  %v3801 = vpop.f32.mrb[0].mxu0
  %v3802 = vadd.f32 0.0, %v3801
  %v3803 = vpop.f32.mrb[0].mxu0
  %3804 = vdwg.mxu0
  %v3805 = vmul.f32 %v3797, %v3797
  %v3806 = vmul.f32 %v3802, %v3802
  %v3809 = vrot.slane %v3805, 4
  %v3810 = vrot.slane %v3806, 4
  %v3811 = vsel %vm449, %v3809, %v3810
  %v3814 = vsel %vm449, %v3802, %v3809
  %3815 = vadd.xlane.f32.xlu0 %v3797
  %v3816 = vpop.xlane.xlu0 %3815
  %3817 = vadd.xlane.f32.xlu0 %v3814
  %v3818 = vpop.xlane.xlu0 %3817
  %3819 = vadd.xlane.f32.xlu0 %v3811
  %v3820 = vpop.xlane.xlu0 %3819
  %v3821 = vmul.f32 %v3816, 0.03125
  %v3822 = vmul.f32 %v3818, 0.03125
  %v3823 = vmul.f32 %v3820, 0.03125
  %v3824 = vmul.f32 %v3821, %v3821
  %v3825 = vmul.f32 %v3822, %v3822
  %v3828 = vrot.slane %v3824, 4
  %v3829 = vrot.slane %v3825, 4
  %v3830 = vsel %vm449, %v3828, %v3829
  %v3833 = vsub.f32 %v3822, %v3828
  %v3834 = vsub.f32 %v3823, %v3830
  %v3835 = vadd.f32 %v3833, 1e-05
  %v3836 = vadd.f32 %v3834, 1e-05
  %v3837 = vrsqrt.pop %v3835
  %v3838 = vrsqrt.pop %v3836
  %v3841 = vrot.slane %v3837, 4
  %v3842 = vrot.slane %v3838, 4
  %v3843 = vsel %vm449, %v3841, %v3842
  %3844 = vrot.lane.b32.xlu0 %v3843, 126
  %v3845 = vpop.permute.xlu0 %3844
  %3846 = vrot.lane.b32.xlu0 %v3842, 126
  %v3847 = vpop.permute.xlu0 %3846
  %v3850 = vmul.f32 %v3718, %v3845
  %v3851 = vmul.f32 %v3719, %v3847
  %v3852 = vmul.f32 %v3821, %v3850
  %v3853 = vmul.f32 %v3822, %v3851
  %3856 = vrot.lane.b32.xlu0 %v3852, 1
  %v3857 = vpop.permute.xlu0 %3856
  %3858 = vrot.lane.b32.xlu0 %v3853, 1
  %v3859 = vpop.permute.xlu0 %3858
  %v3862 = vsub.f32 %v3718, %v3857
  %v3863 = vsub.f32 %v3719, %v3859
  %3865 = vset.pattern.permute.xlu0 126
  %3866 = vperm.xlu0 %3865, %v3850
  %v3867 = vpop.permute.xlu0 %3866
  %3870 = vset.pattern.permute.xlu0 126
  %3871 = vperm.xlu0 %3870, %v3851
  %v3872 = vpop.permute.xlu0 %3871
  %v3874 = vmul.f32 %v3797, %v3867
  %v3875 = vmul.f32 %v3802, %v3872
  %3877 = vset.pattern.permute.xlu0 127
  %3878 = vperm.xlu0 %3877, %v3862
  %v3879 = vpop.permute.xlu0 %3878
  %3882 = vset.pattern.permute.xlu0 127
  %3883 = vperm.xlu0 %3882, %v3863
  %v3884 = vpop.permute.xlu0 %3883
  %v3886 = vadd.f32 %v3874, %v3879
  %v3887 = vadd.f32 %v3875, %v3884
  %v3888 = vmax.f32 %v3886, 0.0
  %v3889 = vmax.f32 %v3887, 0.0
  %v3890 = vld [vmem:[%s1 + $0x50] sm:$0xff]
  %v3891 = vld [vmem:[%s1 + $0x58] sm:$0xf]
  %v3892 = vand.u32 %v14, 15
  %v3893 = vshra.s32 %v3892, 2
  %v3894 = vand.u32 %v3892, 3
  %vm3895 = vcmp.lt.s32.totalorder %v14, 32
  %vm3896 = vcmp.ge.s32.totalorder %v3893, 1
  %vm3897 = vmand %vm3895, %vm3896
  %vm3898 = vcmp.ge.s32.totalorder %v3894, 1
  %vm3899 = vmand %vm3897, %vm3898
  %v3900 = vsel %vm3899, 1, 0
  %v3901 = vcvt.s32.f32 %v3900
  %v3902 = vsel %vm3897, 1, 0
  %v3903 = vcvt.s32.f32 %v3902
  %vm3904 = vcmp.lt.s32.totalorder %v3894, 3
  %vm3905 = vmand %vm3897, %vm3904
  %v3906 = vsel %vm3905, 1, 0
  %v3907 = vcvt.s32.f32 %v3906
  %vm3908 = vmand %vm3895, %vm3898
  %v3909 = vsel %vm3908, 1, 0
  %v3910 = vcvt.s32.f32 %v3909
  %v3911 = vsel %vm3895, 1, 0
  %v3912 = vcvt.s32.f32 %v3911
  %vm3913 = vmand %vm3895, %vm3904
  %v3914 = vsel %vm3913, 1, 0
  %v3915 = vcvt.s32.f32 %v3914
  %vm3916 = vcmp.lt.s32.totalorder %v3893, 3
  %vm3917 = vmand %vm3895, %vm3916
  %vm3918 = vmand %vm3917, %vm3898
  %v3919 = vsel %vm3918, 1, 0
  %v3920 = vcvt.s32.f32 %v3919
  %v3921 = vsel %vm3917, 1, 0
  %v3922 = vcvt.s32.f32 %v3921
  %vm3923 = vmand %vm3917, %vm3904
  %v3924 = vsel %vm3923, 1, 0
  %v3925 = vcvt.s32.f32 %v3924
  %3926 = vrot.lane.b32.xlu0 %v3888, 5
  %v3927 = vpop.permute.xlu0 %3926
  %3928 = vrot.lane.b32.xlu0 %v3889, 5
  %v3929 = vpop.permute.xlu0 %3928
  %v3930 = vmul.f32 %v3927, %v3901
  %v3931 = vmul.f32 %v3929, %v3901
  %3932 = vrot.lane.b32.xlu0 %v3888, 4
  %v3933 = vpop.permute.xlu0 %3932
  %3934 = vrot.lane.b32.xlu0 %v3889, 4
  %v3935 = vpop.permute.xlu0 %3934
  %v3936 = vmul.f32 %v3933, %v3903
  %v3937 = vmul.f32 %v3935, %v3903
  %3938 = vrot.lane.b32.xlu0 %v3888, 3
  %v3939 = vpop.permute.xlu0 %3938
  %3940 = vrot.lane.b32.xlu0 %v3889, 3
  %v3941 = vpop.permute.xlu0 %3940
  %v3942 = vmul.f32 %v3939, %v3907
  %v3943 = vmul.f32 %v3941, %v3907
  %3944 = vrot.lane.b32.xlu0 %v3888, 1
  %v3945 = vpop.permute.xlu0 %3944
  %3946 = vrot.lane.b32.xlu0 %v3889, 1
  %v3947 = vpop.permute.xlu0 %3946
  %v3948 = vmul.f32 %v3945, %v3910
  %v3949 = vmul.f32 %v3947, %v3910
  %v3950 = vmul.f32 %v3888, %v3912
  %v3951 = vmul.f32 %v3889, %v3912
  %3952 = vrot.lane.b32.xlu0 %v3888, 127
  %v3953 = vpop.permute.xlu0 %3952
  %3954 = vrot.lane.b32.xlu0 %v3889, 127
  %v3955 = vpop.permute.xlu0 %3954
  %v3956 = vmul.f32 %v3953, %v3915
  %v3957 = vmul.f32 %v3955, %v3915
  %3958 = vrot.lane.b32.xlu0 %v3888, 125
  %v3959 = vpop.permute.xlu0 %3958
  %3960 = vrot.lane.b32.xlu0 %v3889, 125
  %v3961 = vpop.permute.xlu0 %3960
  %v3962 = vmul.f32 %v3959, %v3920
  %v3963 = vmul.f32 %v3961, %v3920
  %3964 = vrot.lane.b32.xlu0 %v3888, 124
  %v3965 = vpop.permute.xlu0 %3964
  %3966 = vrot.lane.b32.xlu0 %v3889, 124
  %v3967 = vpop.permute.xlu0 %3966
  %v3968 = vmul.f32 %v3965, %v3922
  %v3969 = vmul.f32 %v3967, %v3922
  %3970 = vrot.lane.b32.xlu0 %v3888, 123
  %v3971 = vpop.permute.xlu0 %3970
  %3972 = vrot.lane.b32.xlu0 %v3889, 123
  %v3973 = vpop.permute.xlu0 %3972
  %v3974 = vmul.f32 %v3971, %v3925
  %v3975 = vmul.f32 %v3973, %v3925
  %v3978 = vrot.slane %v3936, 4
  %v3979 = vrot.slane %v3937, 4
  %v3980 = vsel %vm449, %v3978, %v3979
  %v3985 = vrot.slane %v3948, 4
  %v3986 = vrot.slane %v3949, 4
  %v3987 = vsel %vm449, %v3985, %v3986
  %v3992 = vrot.slane %v3956, 4
  %v3993 = vrot.slane %v3957, 4
  %v3994 = vsel %vm449, %v3992, %v3993
  %v3999 = vrot.slane %v3968, 4
  %v4000 = vrot.slane %v3969, 4
  %v4001 = vsel %vm449, %v3999, %v4000
  %v4004 = vsel %vm449, %v3931, %v3978
  %v4005 = vsel %vm449, %v3943, %v3985
  %v4006 = vsel %vm449, %v3951, %v3992
  %v4007 = vsel %vm449, %v3963, %v3999
  %v4009 = vsel %vm2872, %v3890, 0
  %v4012 = vsel %vm2872, %v3891, 0
  %v4015 = vsel %vm449, %v3975, 0
  %4017 = vmatprep.subr.mxu0 0.0
  %4018 = vmatpush1.msra.mxu0 %v3930
  %4019 = vmatprep.subr.mxu0 0.0
  %4020 = vmatpush1.msra.mxu0 %v4004
  %4021 = vmatprep.subr.mxu0 0.0
  %4022 = vmatpush1.msra.mxu0 %v3980
  %4023 = vmatprep.subr.mxu0 0.0
  %4024 = vmatpush1.msra.mxu0 %v3942
  %4025 = vmatprep.subr.mxu0 0.0
  %4026 = vmatpush1.msra.mxu0 %v4005
  %4027 = vmatprep.subr.mxu0 0.0
  %4028 = vmatpush1.msra.mxu0 %v3987
  %4029 = vmatprep.subr.mxu0 0.0
  %4030 = vmatpush1.msra.mxu0 %v3950
  %4031 = vmatprep.subr.mxu0 0.0
  %4032 = vmatpush1.msra.mxu0 %v4006
  %4033 = vmatprep.subr.mxu0 0.0
  %4034 = vmatpush1.msra.mxu0 %v3994
  %4035 = vmatprep.subr.mxu0 0.0
  %4036 = vmatpush1.msra.mxu0 %v3962
  %4037 = vmatprep.subr.mxu0 0.0
  %4038 = vmatpush1.msra.mxu0 %v4007
  %4039 = vmatprep.subr.mxu0 0.0
  %4040 = vmatpush1.msra.mxu0 %v4001
  %4041 = vmatprep.subr.mxu0 0.0
  %4042 = vmatpush1.msra.mxu0 %v3974
  %4043 = vmatprep.subr.mxu0 0.0
  %4044 = vmatpush1.msra.mxu0 %v4015
  %4045 = vmatprep.subr.mxu0 0.0
  %4046 = vmatpush1.msra.mxu0 0.0
  %4047 = vmatprep.subr.mxu0 0.0
  %4048 = vmatpush1.msra.mxu0 0.0
  %4049 = vmatprep.subr.mxu0 0.0
  %4050 = vmatpush1.msra.mxu0 0.0
  %4051 = vmatprep.subr.mxu0 0.0
  %4052 = vmatpush1.msra.mxu0 0.0
  %4053 = vmatprep.subr.mxu0 0.0
  %4054 = vmatpush1.msra.mxu0 0.0
  %4055 = vmatprep.subr.mxu0 0.0
  %4056 = vmatpush1.msra.mxu0 0.0
  %4057 = vmatprep.subr.mxu0 0.0
  %4058 = vmatpush1.msra.mxu0 0.0
  %4059 = vmatprep.subr.mxu0 0.0
  %4060 = vmatpush1.msra.mxu0 0.0
  %4061 = vmatprep.subr.mxu0 0.0
  %4062 = vmatpush1.msra.mxu0 0.0
  %4063 = vmatprep.subr.mxu0 0.0
  %4064 = vmatpush1.msra.mxu0 0.0
  %4065 = vmatprep.subr.mxu0 0.0
  %4066 = vmatpush1.msra.mxu0 0.0
  %4067 = vmatprep.subr.mxu0 0.0
  %4068 = vmatpush1.msra.mxu0 0.0
  %4069 = vmatprep.subr.mxu0 0.0
  %4070 = vmatpush1.msra.mxu0 0.0
  %4071 = vmatprep.subr.mxu0 0.0
  %4072 = vmatpush1.msra.mxu0 0.0
  %4073 = vmatprep.subr.mxu0 0.0
  %4074 = vmatpush1.msra.mxu0 0.0
  %4075 = vmatprep.subr.mxu0 0.0
  %4076 = vmatpush1.msra.mxu0 0.0
  %4077 = vmatprep.subr.mxu0 0.0
  %4078 = vmatpush1.msra.mxu0 0.0
  %4079 = vmatprep.subr.mxu0 0.0
  %4080 = vmatpush1.msra.mxu0 0.0
  %4081 = vmatprep.mubr.f32.mxu0 0.0
  %4082 = vmatmul.mubr.f32.gmra.mrb[0].mxu0 %v4009
  %v4083 = vpop.f32.mrb[0].mxu0
  %v4084 = vadd.f32 0.0, %v4083
  %v4085 = vpop.f32.mrb[0].mxu0
  %4086 = vmatprep.mubr.f32.mxu0 0.0
  %4087 = vmatmul.mubr.f32.gmra.mrb[0].mxu0 %v4012
  %v4088 = vpop.f32.mrb[0].mxu0
  %v4089 = vadd.f32 0.0, %v4088
  %v4090 = vpop.f32.mrb[0].mxu0
  %4091 = vdwg.mxu0
  %v4092 = vmul.f32 %v4084, %v4084
  %v4093 = vmul.f32 %v4089, %v4089
  %v4096 = vrot.slane %v4092, 4
  %v4097 = vrot.slane %v4093, 4
  %v4098 = vsel %vm449, %v4096, %v4097
  %v4101 = vsel %vm449, %v4089, %v4096
  %4102 = vadd.xlane.f32.xlu0 %v4084
  %v4103 = vpop.xlane.xlu0 %4102
  %4104 = vadd.xlane.f32.xlu0 %v4101
  %v4105 = vpop.xlane.xlu0 %4104
  %4106 = vadd.xlane.f32.xlu0 %v4098
  %v4107 = vpop.xlane.xlu0 %4106
  %v4108 = vmul.f32 %v4103, 0.03125
  %v4109 = vmul.f32 %v4105, 0.03125
  %v4110 = vmul.f32 %v4107, 0.03125
  %v4111 = vmul.f32 %v4108, %v4108
  %v4112 = vmul.f32 %v4109, %v4109
  %v4115 = vrot.slane %v4111, 4
  %v4116 = vrot.slane %v4112, 4
  %v4117 = vsel %vm449, %v4115, %v4116
  %v4120 = vsub.f32 %v4109, %v4115
  %v4121 = vsub.f32 %v4110, %v4117
  %v4122 = vadd.f32 %v4120, 1e-05
  %v4123 = vadd.f32 %v4121, 1e-05
  %v4124 = vrsqrt.pop %v4122
  %v4125 = vrsqrt.pop %v4123
  %v4128 = vrot.slane %v4124, 4
  %v4129 = vrot.slane %v4125, 4
  %v4130 = vsel %vm449, %v4128, %v4129
  %4131 = vrot.lane.b32.xlu0 %v4130, 126
  %v4132 = vpop.permute.xlu0 %4131
  %4133 = vrot.lane.b32.xlu0 %v4129, 126
  %v4134 = vpop.permute.xlu0 %4133
  %v4137 = vmul.f32 %v3890, %v4132
  %v4138 = vmul.f32 %v3891, %v4134
  %v4139 = vmul.f32 %v4108, %v4137
  %v4140 = vmul.f32 %v4109, %v4138
  %4143 = vrot.lane.b32.xlu0 %v4139, 1
  %v4144 = vpop.permute.xlu0 %4143
  %4145 = vrot.lane.b32.xlu0 %v4140, 1
  %v4146 = vpop.permute.xlu0 %4145
  %v4149 = vsub.f32 %v3890, %v4144
  %v4150 = vsub.f32 %v3891, %v4146
  %4152 = vset.pattern.permute.xlu0 126
  %4153 = vperm.xlu0 %4152, %v4137
  %v4154 = vpop.permute.xlu0 %4153
  %4157 = vset.pattern.permute.xlu0 126
  %4158 = vperm.xlu0 %4157, %v4138
  %v4159 = vpop.permute.xlu0 %4158
  %v4161 = vmul.f32 %v4084, %v4154
  %v4162 = vmul.f32 %v4089, %v4159
  %4164 = vset.pattern.permute.xlu0 127
  %4165 = vperm.xlu0 %4164, %v4149
  %v4166 = vpop.permute.xlu0 %4165
  %4169 = vset.pattern.permute.xlu0 127
  %4170 = vperm.xlu0 %4169, %v4150
  %v4171 = vpop.permute.xlu0 %4170
  %v4173 = vadd.f32 %v4161, %v4166
  %v4174 = vadd.f32 %v4162, %v4171
  %v4175 = vmax.f32 %v4173, 0.0
  %v4176 = vmax.f32 %v4174, 0.0
  %v4177 = vld [vmem:[%s1 + $0x60] sm:$0xff]
  %v4178 = vld [vmem:[%s1 + $0x68] sm:$0xf]
  %4179 = vrot.lane.b32.xlu0 %v4175, 5
  %v4180 = vpop.permute.xlu0 %4179
  %4181 = vrot.lane.b32.xlu0 %v4176, 5
  %v4182 = vpop.permute.xlu0 %4181
  %v4183 = vmul.f32 %v4180, %v3901
  %v4184 = vmul.f32 %v4182, %v3901
  %4185 = vrot.lane.b32.xlu0 %v4175, 4
  %v4186 = vpop.permute.xlu0 %4185
  %4187 = vrot.lane.b32.xlu0 %v4176, 4
  %v4188 = vpop.permute.xlu0 %4187
  %v4189 = vmul.f32 %v4186, %v3903
  %v4190 = vmul.f32 %v4188, %v3903
  %4191 = vrot.lane.b32.xlu0 %v4175, 3
  %v4192 = vpop.permute.xlu0 %4191
  %4193 = vrot.lane.b32.xlu0 %v4176, 3
  %v4194 = vpop.permute.xlu0 %4193
  %v4195 = vmul.f32 %v4192, %v3907
  %v4196 = vmul.f32 %v4194, %v3907
  %4197 = vrot.lane.b32.xlu0 %v4175, 1
  %v4198 = vpop.permute.xlu0 %4197
  %4199 = vrot.lane.b32.xlu0 %v4176, 1
  %v4200 = vpop.permute.xlu0 %4199
  %v4201 = vmul.f32 %v4198, %v3910
  %v4202 = vmul.f32 %v4200, %v3910
  %v4203 = vmul.f32 %v4175, %v3912
  %v4204 = vmul.f32 %v4176, %v3912
  %4205 = vrot.lane.b32.xlu0 %v4175, 127
  %v4206 = vpop.permute.xlu0 %4205
  %4207 = vrot.lane.b32.xlu0 %v4176, 127
  %v4208 = vpop.permute.xlu0 %4207
  %v4209 = vmul.f32 %v4206, %v3915
  %v4210 = vmul.f32 %v4208, %v3915
  %4211 = vrot.lane.b32.xlu0 %v4175, 125
  %v4212 = vpop.permute.xlu0 %4211
  %4213 = vrot.lane.b32.xlu0 %v4176, 125
  %v4214 = vpop.permute.xlu0 %4213
  %v4215 = vmul.f32 %v4212, %v3920
  %v4216 = vmul.f32 %v4214, %v3920
  %4217 = vrot.lane.b32.xlu0 %v4175, 124
  %v4218 = vpop.permute.xlu0 %4217
  %4219 = vrot.lane.b32.xlu0 %v4176, 124
  %v4220 = vpop.permute.xlu0 %4219
  %v4221 = vmul.f32 %v4218, %v3922
  %v4222 = vmul.f32 %v4220, %v3922
  %4223 = vrot.lane.b32.xlu0 %v4175, 123
  %v4224 = vpop.permute.xlu0 %4223
  %4225 = vrot.lane.b32.xlu0 %v4176, 123
  %v4226 = vpop.permute.xlu0 %4225
  %v4227 = vmul.f32 %v4224, %v3925
  %v4228 = vmul.f32 %v4226, %v3925
  %v4231 = vrot.slane %v4189, 4
  %v4232 = vrot.slane %v4190, 4
  %v4233 = vsel %vm449, %v4231, %v4232
  %v4238 = vrot.slane %v4201, 4
  %v4239 = vrot.slane %v4202, 4
  %v4240 = vsel %vm449, %v4238, %v4239
  %v4245 = vrot.slane %v4209, 4
  %v4246 = vrot.slane %v4210, 4
  %v4247 = vsel %vm449, %v4245, %v4246
  %v4252 = vrot.slane %v4221, 4
  %v4253 = vrot.slane %v4222, 4
  %v4254 = vsel %vm449, %v4252, %v4253
  %v4257 = vsel %vm449, %v4184, %v4231
  %v4258 = vsel %vm449, %v4196, %v4238
  %v4259 = vsel %vm449, %v4204, %v4245
  %v4260 = vsel %vm449, %v4216, %v4252
  %v4262 = vsel %vm2872, %v4177, 0
  %v4265 = vsel %vm2872, %v4178, 0
  %v4268 = vsel %vm449, %v4228, 0
  %4270 = vmatprep.subr.mxu0 0.0
  %4271 = vmatpush1.msra.mxu0 %v4183
  %4272 = vmatprep.subr.mxu0 0.0
  %4273 = vmatpush1.msra.mxu0 %v4257
  %4274 = vmatprep.subr.mxu0 0.0
  %4275 = vmatpush1.msra.mxu0 %v4233
  %4276 = vmatprep.subr.mxu0 0.0
  %4277 = vmatpush1.msra.mxu0 %v4195
  %4278 = vmatprep.subr.mxu0 0.0
  %4279 = vmatpush1.msra.mxu0 %v4258
  %4280 = vmatprep.subr.mxu0 0.0
  %4281 = vmatpush1.msra.mxu0 %v4240
  %4282 = vmatprep.subr.mxu0 0.0
  %4283 = vmatpush1.msra.mxu0 %v4203
  %4284 = vmatprep.subr.mxu0 0.0
  %4285 = vmatpush1.msra.mxu0 %v4259
  %4286 = vmatprep.subr.mxu0 0.0
  %4287 = vmatpush1.msra.mxu0 %v4247
  %4288 = vmatprep.subr.mxu0 0.0
  %4289 = vmatpush1.msra.mxu0 %v4215
  %4290 = vmatprep.subr.mxu0 0.0
  %4291 = vmatpush1.msra.mxu0 %v4260
  %4292 = vmatprep.subr.mxu0 0.0
  %4293 = vmatpush1.msra.mxu0 %v4254
  %4294 = vmatprep.subr.mxu0 0.0
  %4295 = vmatpush1.msra.mxu0 %v4227
  %4296 = vmatprep.subr.mxu0 0.0
  %4297 = vmatpush1.msra.mxu0 %v4268
  %4298 = vmatprep.subr.mxu0 0.0
  %4299 = vmatpush1.msra.mxu0 0.0
  %4300 = vmatprep.subr.mxu0 0.0
  %4301 = vmatpush1.msra.mxu0 0.0
  %4302 = vmatprep.subr.mxu0 0.0
  %4303 = vmatpush1.msra.mxu0 0.0
  %4304 = vmatprep.subr.mxu0 0.0
  %4305 = vmatpush1.msra.mxu0 0.0
  %4306 = vmatprep.subr.mxu0 0.0
  %4307 = vmatpush1.msra.mxu0 0.0
  %4308 = vmatprep.subr.mxu0 0.0
  %4309 = vmatpush1.msra.mxu0 0.0
  %4310 = vmatprep.subr.mxu0 0.0
  %4311 = vmatpush1.msra.mxu0 0.0
  %4312 = vmatprep.subr.mxu0 0.0
  %4313 = vmatpush1.msra.mxu0 0.0
  %4314 = vmatprep.subr.mxu0 0.0
  %4315 = vmatpush1.msra.mxu0 0.0
  %4316 = vmatprep.subr.mxu0 0.0
  %4317 = vmatpush1.msra.mxu0 0.0
  %4318 = vmatprep.subr.mxu0 0.0
  %4319 = vmatpush1.msra.mxu0 0.0
  %4320 = vmatprep.subr.mxu0 0.0
  %4321 = vmatpush1.msra.mxu0 0.0
  %4322 = vmatprep.subr.mxu0 0.0
  %4323 = vmatpush1.msra.mxu0 0.0
  %4324 = vmatprep.subr.mxu0 0.0
  %4325 = vmatpush1.msra.mxu0 0.0
  %4326 = vmatprep.subr.mxu0 0.0
  %4327 = vmatpush1.msra.mxu0 0.0
  %4328 = vmatprep.subr.mxu0 0.0
  %4329 = vmatpush1.msra.mxu0 0.0
  %4330 = vmatprep.subr.mxu0 0.0
  %4331 = vmatpush1.msra.mxu0 0.0
  %4332 = vmatprep.subr.mxu0 0.0
  %4333 = vmatpush1.msra.mxu0 0.0
  %4334 = vmatprep.mubr.f32.mxu0 0.0
  %4335 = vmatmul.mubr.f32.gmra.mrb[0].mxu0 %v4262
  %v4336 = vpop.f32.mrb[0].mxu0
  %v4337 = vadd.f32 0.0, %v4336
  %v4338 = vpop.f32.mrb[0].mxu0
  %4339 = vmatprep.mubr.f32.mxu0 0.0
  %4340 = vmatmul.mubr.f32.gmra.mrb[0].mxu0 %v4265
  %v4341 = vpop.f32.mrb[0].mxu0
  %v4342 = vadd.f32 0.0, %v4341
  %v4343 = vpop.f32.mrb[0].mxu0
  %4344 = vdwg.mxu0
  %v4345 = vmul.f32 %v4337, %v4337
  %v4346 = vmul.f32 %v4342, %v4342
  %v4349 = vrot.slane %v4345, 4
  %v4350 = vrot.slane %v4346, 4
  %v4351 = vsel %vm449, %v4349, %v4350
  %v4354 = vsel %vm449, %v4342, %v4349
  %4355 = vadd.xlane.f32.xlu0 %v4337
  %v4356 = vpop.xlane.xlu0 %4355
  %4357 = vadd.xlane.f32.xlu0 %v4354
  %v4358 = vpop.xlane.xlu0 %4357
  %4359 = vadd.xlane.f32.xlu0 %v4351
  %v4360 = vpop.xlane.xlu0 %4359
  %v4361 = vmul.f32 %v4356, 0.03125
  %v4362 = vmul.f32 %v4358, 0.03125
  %v4363 = vmul.f32 %v4360, 0.03125
  %v4364 = vmul.f32 %v4361, %v4361
  %v4365 = vmul.f32 %v4362, %v4362
  %v4368 = vrot.slane %v4364, 4
  %v4369 = vrot.slane %v4365, 4
  %v4370 = vsel %vm449, %v4368, %v4369
  %v4373 = vsub.f32 %v4362, %v4368
  %v4374 = vsub.f32 %v4363, %v4370
  %v4375 = vadd.f32 %v4373, 1e-05
  %v4376 = vadd.f32 %v4374, 1e-05
  %v4377 = vrsqrt.pop %v4375
  %v4378 = vrsqrt.pop %v4376
  %v4381 = vrot.slane %v4377, 4
  %v4382 = vrot.slane %v4378, 4
  %v4383 = vsel %vm449, %v4381, %v4382
  %4384 = vrot.lane.b32.xlu0 %v4383, 126
  %v4385 = vpop.permute.xlu0 %4384
  %4386 = vrot.lane.b32.xlu0 %v4382, 126
  %v4387 = vpop.permute.xlu0 %4386
  %v4390 = vmul.f32 %v4177, %v4385
  %v4391 = vmul.f32 %v4178, %v4387
  %v4392 = vmul.f32 %v4361, %v4390
  %v4393 = vmul.f32 %v4362, %v4391
  %4396 = vrot.lane.b32.xlu0 %v4392, 1
  %v4397 = vpop.permute.xlu0 %4396
  %4398 = vrot.lane.b32.xlu0 %v4393, 1
  %v4399 = vpop.permute.xlu0 %4398
  %v4402 = vsub.f32 %v4177, %v4397
  %v4403 = vsub.f32 %v4178, %v4399
  %4405 = vset.pattern.permute.xlu0 126
  %4406 = vperm.xlu0 %4405, %v4390
  %v4407 = vpop.permute.xlu0 %4406
  %4410 = vset.pattern.permute.xlu0 126
  %4411 = vperm.xlu0 %4410, %v4391
  %v4412 = vpop.permute.xlu0 %4411
  %v4414 = vmul.f32 %v4337, %v4407
  %v4415 = vmul.f32 %v4342, %v4412
  %4417 = vset.pattern.permute.xlu0 127
  %4418 = vperm.xlu0 %4417, %v4402
  %v4419 = vpop.permute.xlu0 %4418
  %4422 = vset.pattern.permute.xlu0 127
  %4423 = vperm.xlu0 %4422, %v4403
  %v4424 = vpop.permute.xlu0 %4423
  %v4426 = vadd.f32 %v4414, %v4419
  %v4427 = vadd.f32 %v4415, %v4424
  %v4428 = vmax.f32 %v4426, 0.0
  %v4429 = vmax.f32 %v4427, 0.0
  %v4430 = vld [vmem:[%s1 + $0x70] sm:$0xff]
  %v4431 = vld [vmem:[%s1 + $0x78] sm:$0x3]
  %4432 = vrot.lane.b32.xlu0 %v4428, 5
  %v4433 = vpop.permute.xlu0 %4432
  %4434 = vrot.lane.b32.xlu0 %v4429, 5
  %v4435 = vpop.permute.xlu0 %4434
  %v4436 = vmul.f32 %v4433, %v3901
  %v4437 = vmul.f32 %v4435, %v3901
  %4438 = vrot.lane.b32.xlu0 %v4428, 4
  %v4439 = vpop.permute.xlu0 %4438
  %4440 = vrot.lane.b32.xlu0 %v4429, 4
  %v4441 = vpop.permute.xlu0 %4440
  %v4442 = vmul.f32 %v4439, %v3903
  %v4443 = vmul.f32 %v4441, %v3903
  %4444 = vrot.lane.b32.xlu0 %v4428, 3
  %v4445 = vpop.permute.xlu0 %4444
  %4446 = vrot.lane.b32.xlu0 %v4429, 3
  %v4447 = vpop.permute.xlu0 %4446
  %v4448 = vmul.f32 %v4445, %v3907
  %v4449 = vmul.f32 %v4447, %v3907
  %4450 = vrot.lane.b32.xlu0 %v4428, 1
  %v4451 = vpop.permute.xlu0 %4450
  %4452 = vrot.lane.b32.xlu0 %v4429, 1
  %v4453 = vpop.permute.xlu0 %4452
  %v4454 = vmul.f32 %v4451, %v3910
  %v4455 = vmul.f32 %v4453, %v3910
  %v4456 = vmul.f32 %v4428, %v3912
  %v4457 = vmul.f32 %v4429, %v3912
  %4458 = vrot.lane.b32.xlu0 %v4428, 127
  %v4459 = vpop.permute.xlu0 %4458
  %4460 = vrot.lane.b32.xlu0 %v4429, 127
  %v4461 = vpop.permute.xlu0 %4460
  %v4462 = vmul.f32 %v4459, %v3915
  %v4463 = vmul.f32 %v4461, %v3915
  %4464 = vrot.lane.b32.xlu0 %v4428, 125
  %v4465 = vpop.permute.xlu0 %4464
  %4466 = vrot.lane.b32.xlu0 %v4429, 125
  %v4467 = vpop.permute.xlu0 %4466
  %v4468 = vmul.f32 %v4465, %v3920
  %v4469 = vmul.f32 %v4467, %v3920
  %4470 = vrot.lane.b32.xlu0 %v4428, 124
  %v4471 = vpop.permute.xlu0 %4470
  %4472 = vrot.lane.b32.xlu0 %v4429, 124
  %v4473 = vpop.permute.xlu0 %4472
  %v4474 = vmul.f32 %v4471, %v3922
  %v4475 = vmul.f32 %v4473, %v3922
  %4476 = vrot.lane.b32.xlu0 %v4428, 123
  %v4477 = vpop.permute.xlu0 %4476
  %4478 = vrot.lane.b32.xlu0 %v4429, 123
  %v4479 = vpop.permute.xlu0 %4478
  %v4480 = vmul.f32 %v4477, %v3925
  %v4481 = vmul.f32 %v4479, %v3925
  %v4484 = vrot.slane %v4442, 4
  %v4485 = vrot.slane %v4443, 4
  %v4486 = vsel %vm449, %v4484, %v4485
  %v4491 = vrot.slane %v4454, 4
  %v4492 = vrot.slane %v4455, 4
  %v4493 = vsel %vm449, %v4491, %v4492
  %v4498 = vrot.slane %v4462, 4
  %v4499 = vrot.slane %v4463, 4
  %v4500 = vsel %vm449, %v4498, %v4499
  %v4505 = vrot.slane %v4474, 4
  %v4506 = vrot.slane %v4475, 4
  %v4507 = vsel %vm449, %v4505, %v4506
  %v4510 = vsel %vm449, %v4437, %v4484
  %v4511 = vsel %vm449, %v4449, %v4491
  %v4512 = vsel %vm449, %v4457, %v4498
  %v4513 = vsel %vm449, %v4469, %v4505
  %v4515 = vsel %vm2872, %v4430, 0
  %v4518 = vsel %vm2872, %v4431, 0
  %v4521 = vsel %vm449, %v4481, 0
  %4523 = vmatprep.subr.mxu0 0.0
  %4524 = vmatpush1.msra.mxu0 %v4436
  %4525 = vmatprep.subr.mxu0 0.0
  %4526 = vmatpush1.msra.mxu0 %v4510
  %4527 = vmatprep.subr.mxu0 0.0
  %4528 = vmatpush1.msra.mxu0 %v4486
  %4529 = vmatprep.subr.mxu0 0.0
  %4530 = vmatpush1.msra.mxu0 %v4448
  %4531 = vmatprep.subr.mxu0 0.0
  %4532 = vmatpush1.msra.mxu0 %v4511
  %4533 = vmatprep.subr.mxu0 0.0
  %4534 = vmatpush1.msra.mxu0 %v4493
  %4535 = vmatprep.subr.mxu0 0.0
  %4536 = vmatpush1.msra.mxu0 %v4456
  %4537 = vmatprep.subr.mxu0 0.0
  %4538 = vmatpush1.msra.mxu0 %v4512
  %4539 = vmatprep.subr.mxu0 0.0
  %4540 = vmatpush1.msra.mxu0 %v4500
  %4541 = vmatprep.subr.mxu0 0.0
  %4542 = vmatpush1.msra.mxu0 %v4468
  %4543 = vmatprep.subr.mxu0 0.0
  %4544 = vmatpush1.msra.mxu0 %v4513
  %4545 = vmatprep.subr.mxu0 0.0
  %4546 = vmatpush1.msra.mxu0 %v4507
  %4547 = vmatprep.subr.mxu0 0.0
  %4548 = vmatpush1.msra.mxu0 %v4480
  %4549 = vmatprep.subr.mxu0 0.0
  %4550 = vmatpush1.msra.mxu0 %v4521
  %4551 = vmatprep.subr.mxu0 0.0
  %4552 = vmatpush1.msra.mxu0 0.0
  %4553 = vmatprep.subr.mxu0 0.0
  %4554 = vmatpush1.msra.mxu0 0.0
  %4555 = vmatprep.subr.mxu0 0.0
  %4556 = vmatpush1.msra.mxu0 0.0
  %4557 = vmatprep.subr.mxu0 0.0
  %4558 = vmatpush1.msra.mxu0 0.0
  %4559 = vmatprep.subr.mxu0 0.0
  %4560 = vmatpush1.msra.mxu0 0.0
  %4561 = vmatprep.subr.mxu0 0.0
  %4562 = vmatpush1.msra.mxu0 0.0
  %4563 = vmatprep.subr.mxu0 0.0
  %4564 = vmatpush1.msra.mxu0 0.0
  %4565 = vmatprep.subr.mxu0 0.0
  %4566 = vmatpush1.msra.mxu0 0.0
  %4567 = vmatprep.subr.mxu0 0.0
  %4568 = vmatpush1.msra.mxu0 0.0
  %4569 = vmatprep.subr.mxu0 0.0
  %4570 = vmatpush1.msra.mxu0 0.0
  %4571 = vmatprep.subr.mxu0 0.0
  %4572 = vmatpush1.msra.mxu0 0.0
  %4573 = vmatprep.subr.mxu0 0.0
  %4574 = vmatpush1.msra.mxu0 0.0
  %4575 = vmatprep.subr.mxu0 0.0
  %4576 = vmatpush1.msra.mxu0 0.0
  %4577 = vmatprep.subr.mxu0 0.0
  %4578 = vmatpush1.msra.mxu0 0.0
  %4579 = vmatprep.subr.mxu0 0.0
  %4580 = vmatpush1.msra.mxu0 0.0
  %4581 = vmatprep.subr.mxu0 0.0
  %4582 = vmatpush1.msra.mxu0 0.0
  %4583 = vmatprep.subr.mxu0 0.0
  %4584 = vmatpush1.msra.mxu0 0.0
  %4585 = vmatprep.subr.mxu0 0.0
  %4586 = vmatpush1.msra.mxu0 0.0
  %4587 = vmatprep.mubr.f32.mxu0 0.0
  %4588 = vmatmul.mubr.f32.gmra.mrb[0].mxu0 %v4515
  %v4589 = vpop.f32.mrb[0].mxu0
  %v4590 = vadd.f32 0.0, %v4589
  %v4591 = vpop.f32.mrb[0].mxu0
  %4592 = vmatprep.mubr.f32.mxu0 0.0
  %4593 = vmatmul.mubr.f32.gmra.mrb[0].mxu0 %v4518
  %v4594 = vpop.f32.mrb[0].mxu0
  %v4595 = vadd.f32 0.0, %v4594
  %v4596 = vpop.f32.mrb[0].mxu0
  %4597 = vdwg.mxu0
  %v4598 = vmul.f32 %v4590, %v4590
  %v4599 = vmul.f32 %v4595, %v4595
  %v4602 = vrot.slane %v4598, 6
  %v4603 = vrot.slane %v4599, 6
  %v4604 = vsel %vm439, %v4602, %v4603
  %v4607 = vsel %vm439, %v4595, %v4602
  %4608 = vadd.xlane.f32.xlu0 %v4590
  %v4609 = vpop.xlane.xlu0 %4608
  %4610 = vadd.xlane.f32.xlu0 %v4607
  %v4611 = vpop.xlane.xlu0 %4610
  %v4612 = vsel %vm449, %v4604, 0.0
  %4613 = vadd.xlane.f32.xlu0 %v4612
  %v4614 = vpop.xlane.xlu0 %4613
  %v4615 = vmul.f32 %v4609, 0.03125
  %v4616 = vmul.f32 %v4611, 0.03125
  %v4617 = vmul.f32 %v4614, 0.03125
  %v4618 = vmul.f32 %v4615, %v4615
  %v4619 = vmul.f32 %v4616, %v4616
  %v4622 = vrot.slane %v4618, 6
  %v4623 = vrot.slane %v4619, 6
  %v4624 = vsel %vm439, %v4622, %v4623
  %v4627 = vsub.f32 %v4616, %v4622
  %v4628 = vsub.f32 %v4617, %v4624
  %v4629 = vadd.f32 %v4627, 1e-05
  %v4630 = vadd.f32 %v4628, 1e-05
  %v4631 = vrsqrt.pop %v4629
  %v4632 = vrsqrt.pop %v4630
  %v4635 = vrot.slane %v4631, 2
  %v4636 = vrot.slane %v4632, 2
  %v4637 = vsel %vm459, %v4635, %v4636
  %4638 = vrot.lane.b32.xlu0 %v4637, 126
  %v4639 = vpop.permute.xlu0 %4638
  %4640 = vrot.lane.b32.xlu0 %v4636, 126
  %v4641 = vpop.permute.xlu0 %4640
  %v4644 = vmul.f32 %v4430, %v4639
  %v4645 = vmul.f32 %v4431, %v4641
  %v4646 = vmul.f32 %v4615, %v4644
  %v4647 = vmul.f32 %v4616, %v4645
  %4650 = vrot.lane.b32.xlu0 %v4646, 1
  %v4651 = vpop.permute.xlu0 %4650
  %4652 = vrot.lane.b32.xlu0 %v4647, 1
  %v4653 = vpop.permute.xlu0 %4652
  %v4656 = vsub.f32 %v4430, %v4651
  %v4657 = vsub.f32 %v4431, %v4653
  %4659 = vset.pattern.permute.xlu0 126
  %4660 = vperm.xlu0 %4659, %v4644
  %v4661 = vpop.permute.xlu0 %4660
  %4664 = vset.pattern.permute.xlu0 126
  %4665 = vperm.xlu0 %4664, %v4645
  %v4666 = vpop.permute.xlu0 %4665
  %v4668 = vmul.f32 %v4590, %v4661
  %v4669 = vmul.f32 %v4595, %v4666
  %4671 = vset.pattern.permute.xlu0 127
  %4672 = vperm.xlu0 %4671, %v4656
  %v4673 = vpop.permute.xlu0 %4672
  %4676 = vset.pattern.permute.xlu0 127
  %4677 = vperm.xlu0 %4676, %v4657
  %v4678 = vpop.permute.xlu0 %4677
  %v4680 = vadd.f32 %v4668, %v4673
  %v4681 = vadd.f32 %v4669, %v4678
  %v4682 = vmax.f32 %v4680, 0.0
  %v4683 = vmax.f32 %v4681, 0.0
  %v4684 = vshra.s32 %v1037, 4
  %v4685 = vshra.s32 %v1038, 4
  %v4686 = vshra.s32 %v1039, 4
  %v4687 = vshra.s32 %v1040, 4
  %v4688 = vshra.s32 %v1041, 4
  %v4689 = vshra.s32 %v1042, 4
  %v4690 = vshra.s32 %v1043, 4
  %v4691 = vshra.s32 %v1044, 4
  %v4692 = vshra.s32 %v1045, 4
  %v4693 = vshra.s32 %v1046, 4
  %v4694 = vshra.s32 %v1047, 4
  %v4695 = vshra.s32 %v1048, 4
  %v4696 = vshra.s32 %v1049, 4
  %v4697 = vshra.s32 %v1050, 4
  %v4698 = vshra.s32 %v1051, 4
  %v4699 = vshra.s32 %v1052, 4
  %vm4700 = vcmp.lt.s32.totalorder %v1037, 32
  %vm4701 = vcmp.lt.s32.totalorder %v1038, 32
  %vm4702 = vcmp.lt.s32.totalorder %v1039, 32
  %vm4703 = vcmp.lt.s32.totalorder %v1040, 32
  %vm4704 = vcmp.lt.s32.totalorder %v1041, 32
  %vm4705 = vcmp.lt.s32.totalorder %v1042, 32
  %vm4706 = vcmp.lt.s32.totalorder %v1043, 32
  %vm4707 = vcmp.lt.s32.totalorder %v1044, 32
  %vm4708 = vcmp.lt.s32.totalorder %v1045, 32
  %vm4709 = vcmp.lt.s32.totalorder %v1046, 32
  %vm4710 = vcmp.lt.s32.totalorder %v1047, 32
  %vm4711 = vcmp.lt.s32.totalorder %v1048, 32
  %vm4712 = vcmp.lt.s32.totalorder %v1049, 32
  %vm4713 = vcmp.lt.s32.totalorder %v1050, 32
  %vm4714 = vcmp.lt.s32.totalorder %v1051, 32
  %vm4715 = vcmp.lt.s32.totalorder %v1052, 32
  %vm4716 = vcmp.eq.s32.totalorder %v14, %v4684
  %vm4717 = vcmp.eq.s32.totalorder %v14, %v4685
  %vm4718 = vcmp.eq.s32.totalorder %v14, %v4686
  %vm4719 = vcmp.eq.s32.totalorder %v14, %v4687
  %vm4720 = vcmp.eq.s32.totalorder %v14, %v4688
  %vm4721 = vcmp.eq.s32.totalorder %v14, %v4689
  %vm4722 = vcmp.eq.s32.totalorder %v14, %v4690
  %vm4723 = vcmp.eq.s32.totalorder %v14, %v4691
  %vm4724 = vcmp.eq.s32.totalorder %v14, %v4692
  %vm4725 = vcmp.eq.s32.totalorder %v14, %v4693
  %vm4726 = vcmp.eq.s32.totalorder %v14, %v4694
  %vm4727 = vcmp.eq.s32.totalorder %v14, %v4695
  %vm4728 = vcmp.eq.s32.totalorder %v14, %v4696
  %vm4729 = vcmp.eq.s32.totalorder %v14, %v4697
  %vm4730 = vcmp.eq.s32.totalorder %v14, %v4698
  %vm4731 = vcmp.eq.s32.totalorder %v14, %v4699
  %vm4732 = vmand %vm4700, %vm4716
  %vm4733 = vmand %vm4701, %vm4717
  %vm4734 = vmand %vm4702, %vm4718
  %vm4735 = vmand %vm4703, %vm4719
  %vm4736 = vmand %vm4704, %vm4720
  %vm4737 = vmand %vm4705, %vm4721
  %vm4738 = vmand %vm4706, %vm4722
  %vm4739 = vmand %vm4707, %vm4723
  %vm4740 = vmand %vm4708, %vm4724
  %vm4741 = vmand %vm4709, %vm4725
  %vm4742 = vmand %vm4710, %vm4726
  %vm4743 = vmand %vm4711, %vm4727
  %vm4744 = vmand %vm4712, %vm4728
  %vm4745 = vmand %vm4713, %vm4729
  %vm4746 = vmand %vm4714, %vm4730
  %vm4747 = vmand %vm4715, %vm4731
  %v4748 = vsel %vm4732, 1, 0
  %v4749 = vsel %vm4733, 1, 0
  %v4750 = vsel %vm4734, 1, 0
  %v4751 = vsel %vm4735, 1, 0
  %v4752 = vsel %vm4736, 1, 0
  %v4753 = vsel %vm4737, 1, 0
  %v4754 = vsel %vm4738, 1, 0
  %v4755 = vsel %vm4739, 1, 0
  %v4756 = vsel %vm4740, 1, 0
  %v4757 = vsel %vm4741, 1, 0
  %v4758 = vsel %vm4742, 1, 0
  %v4759 = vsel %vm4743, 1, 0
  %v4760 = vsel %vm4744, 1, 0
  %v4761 = vsel %vm4745, 1, 0
  %v4762 = vsel %vm4746, 1, 0
  %v4763 = vsel %vm4747, 1, 0
  %v4764 = vcvt.s32.f32 %v4748
  %v4765 = vcvt.s32.f32 %v4749
  %v4766 = vcvt.s32.f32 %v4750
  %v4767 = vcvt.s32.f32 %v4751
  %v4768 = vcvt.s32.f32 %v4752
  %v4769 = vcvt.s32.f32 %v4753
  %v4770 = vcvt.s32.f32 %v4754
  %v4771 = vcvt.s32.f32 %v4755
  %v4772 = vcvt.s32.f32 %v4756
  %v4773 = vcvt.s32.f32 %v4757
  %v4774 = vcvt.s32.f32 %v4758
  %v4775 = vcvt.s32.f32 %v4759
  %v4776 = vcvt.s32.f32 %v4760
  %v4777 = vcvt.s32.f32 %v4761
  %v4778 = vcvt.s32.f32 %v4762
  %v4779 = vcvt.s32.f32 %v4763
  %v4780 = vmul.f32 %v4764, 0.0625
  %v4781 = vmul.f32 %v4765, 0.0625
  %v4782 = vmul.f32 %v4766, 0.0625
  %v4783 = vmul.f32 %v4767, 0.0625
  %v4784 = vmul.f32 %v4768, 0.0625
  %v4785 = vmul.f32 %v4769, 0.0625
  %v4786 = vmul.f32 %v4770, 0.0625
  %v4787 = vmul.f32 %v4771, 0.0625
  %v4788 = vmul.f32 %v4772, 0.0625
  %v4789 = vmul.f32 %v4773, 0.0625
  %v4790 = vmul.f32 %v4774, 0.0625
  %v4791 = vmul.f32 %v4775, 0.0625
  %v4792 = vmul.f32 %v4776, 0.0625
  %v4793 = vmul.f32 %v4777, 0.0625
  %v4794 = vmul.f32 %v4778, 0.0625
  %v4795 = vmul.f32 %v4779, 0.0625
  %4796 = vmatprep.subr.mxu0 0.0
  %4797 = vmatpush1.msra.mxu0 %v4780
  %4798 = vmatprep.subr.mxu0 0.0
  %4799 = vmatpush1.msra.mxu0 %v4781
  %4800 = vmatprep.subr.mxu0 0.0
  %4801 = vmatpush1.msra.mxu0 %v4782
  %4802 = vmatprep.subr.mxu0 0.0
  %4803 = vmatpush1.msra.mxu0 %v4783
  %4804 = vmatprep.subr.mxu0 0.0
  %4805 = vmatpush1.msra.mxu0 %v4784
  %4806 = vmatprep.subr.mxu0 0.0
  %4807 = vmatpush1.msra.mxu0 %v4785
  %4808 = vmatprep.subr.mxu0 0.0
  %4809 = vmatpush1.msra.mxu0 %v4786
  %4810 = vmatprep.subr.mxu0 0.0
  %4811 = vmatpush1.msra.mxu0 %v4787
  %4812 = vmatprep.subr.mxu0 0.0
  %4813 = vmatpush1.msra.mxu0 %v4788
  %4814 = vmatprep.subr.mxu0 0.0
  %4815 = vmatpush1.msra.mxu0 %v4789
  %4816 = vmatprep.subr.mxu0 0.0
  %4817 = vmatpush1.msra.mxu0 %v4790
  %4818 = vmatprep.subr.mxu0 0.0
  %4819 = vmatpush1.msra.mxu0 %v4791
  %4820 = vmatprep.subr.mxu0 0.0
  %4821 = vmatpush1.msra.mxu0 %v4792
  %4822 = vmatprep.subr.mxu0 0.0
  %4823 = vmatpush1.msra.mxu0 %v4793
  %4824 = vmatprep.subr.mxu0 0.0
  %4825 = vmatpush1.msra.mxu0 %v4794
  %4826 = vmatprep.subr.mxu0 0.0
  %4827 = vmatpush1.msra.mxu0 %v4795
  %4828 = vmatprep.subr.mxu0 0.0
  %4829 = vmatpush1.msra.mxu0 0.0
  %4830 = vmatprep.subr.mxu0 0.0
  %4831 = vmatpush1.msra.mxu0 0.0
  %4832 = vmatprep.subr.mxu0 0.0
  %4833 = vmatpush1.msra.mxu0 0.0
  %4834 = vmatprep.subr.mxu0 0.0
  %4835 = vmatpush1.msra.mxu0 0.0
  %4836 = vmatprep.subr.mxu0 0.0
  %4837 = vmatpush1.msra.mxu0 0.0
  %4838 = vmatprep.subr.mxu0 0.0
  %4839 = vmatpush1.msra.mxu0 0.0
  %4840 = vmatprep.subr.mxu0 0.0
  %4841 = vmatpush1.msra.mxu0 0.0
  %4842 = vmatprep.subr.mxu0 0.0
  %4843 = vmatpush1.msra.mxu0 0.0
  %4844 = vmatprep.subr.mxu0 0.0
  %4845 = vmatpush1.msra.mxu0 0.0
  %4846 = vmatprep.subr.mxu0 0.0
  %4847 = vmatpush1.msra.mxu0 0.0
  %4848 = vmatprep.subr.mxu0 0.0
  %4849 = vmatpush1.msra.mxu0 0.0
  %4850 = vmatprep.subr.mxu0 0.0
  %4851 = vmatpush1.msra.mxu0 0.0
  %4852 = vmatprep.subr.mxu0 0.0
  %4853 = vmatpush1.msra.mxu0 0.0
  %4854 = vmatprep.subr.mxu0 0.0
  %4855 = vmatpush1.msra.mxu0 0.0
  %4856 = vmatprep.subr.mxu0 0.0
  %4857 = vmatpush1.msra.mxu0 0.0
  %4858 = vmatprep.subr.mxu0 0.0
  %4859 = vmatpush1.msra.mxu0 0.0
  %4860 = vmatprep.mubr.f32.mxu0 0.0
  %4861 = vmatmul.mubr.f32.gmra.mrb[0].mxu0 %v4682
  %v4862 = vpop.f32.mrb[0].mxu0
  %v4863 = vadd.f32 0.0, %v4862
  %v4864 = vpop.f32.mrb[0].mxu0
  %4865 = vmatprep.mubr.f32.mxu0 0.0
  %4866 = vmatmul.mubr.f32.gmra.mrb[0].mxu0 %v4683
  %v4867 = vpop.f32.mrb[0].mxu0
  %v4868 = vadd.f32 0.0, %v4867
  %v4869 = vpop.f32.mrb[0].mxu0
  %4870 = vdwg.mxu0
  %v4871 = vsel %vm439, %v4868, -inf
  %v4872 = vmax.f32 %v4863, %v4871
  %v4873 = vrot.slane %v4872, 4
  %v4874 = vmax.f32 %v4872, %v4873
  %v4875 = vrot.slane %v4874, 2
  %v4876 = vmax.f32 %v4874, %v4875
  %v4877 = vrot.slane %v4876, 1
  %v4878 = vmax.f32 %v4876, %v4877
  %v4879 = vsub.f32 %v4863, %v4878
  %v4880 = vsub.f32 %v4868, %v4878
  %v4881 = vmul.f32 %v4879, 1.442695
  %v4882 = vpow.pop %v4881
  %v4883 = vmul.f32 %v4880, 1.442695
  %v4884 = vpow.pop %v4883
  %v4885 = vsel %vm439, %v4884, 0.0
  %v4886 = vadd.f32 %v4882, %v4885
  %v4887 = vrot.slane %v4886, 4
  %v4888 = vadd.f32 %v4886, %v4887
  %v4889 = vrot.slane %v4888, 2
  %v4890 = vadd.f32 %v4888, %v4889
  %v4891 = vrot.slane %v4890, 1
  %v4892 = vadd.f32 %v4890, %v4891
  %v4893 = vlog2.pop %v4892
  %v4894 = vmul.f32 %v4893, 0.6931472
  %v4895 = vsub.f32 %v4879, %v4894
  %v4896 = vsub.f32 %v4880, %v4894
  %4897 = vst [vmem:[%s2] sm:$0xff] %v4895
  %4898 = vst [vmem:[%s2 + $0x8] sm:$0x3] %v4896
  // Predicated region
  $region10: #{model_forward.1} parent=0 // pred_check
    _
  $region11: #{model_forward.1} parent=0 // pred_check_branch
    %4900 = sbr.rel (0) target = $region13
  $region12: #{model_forward.1} parent=0 // pred_region
    _
  $region13: #{model_forward.1} parent=0 // pred_fallthru
    _
  // Predicated region
  $region14: #{model_forward.1} parent=0 // pred_check
    _
  $region15: #{model_forward.1} parent=0 // pred_check_branch
    %4902 = sbr.rel (0) target = $region17
  $region16: #{model_forward.1} parent=0 // pred_region
    _
  $region17: #{model_forward.1} parent=0 // pred_fallthru
    _

</llo_original>
